<compile_context>
chip_gen: v7x
topology: tpu7x:2x2x1
jax: 0.10.0
libtpu: 0.0.40
codegen_flags: <defaults>
</compile_context>

<pallas_src>
import math

import jax
import jax.numpy as jnp
from jax.experimental import pallas as pl
from jax.experimental.pallas import tpu as pltpu


# ------------------------------- helpers ------------------------------------

_CONV_TILE_ROWS = 256     # target rows per grid step for conv kernels
_EW_TILE_ROWS = 512       # target rows per grid step for elementwise kernels


def _lcm(a, b):
    return a * b // math.gcd(a, b)


def _round_up(a, b):
    return (a + b - 1) // b * b


def _pick_tile(n, unit, target):
    """Largest multiple of `unit` that divides `n` and is <= max(target, unit)."""
    m = n // unit
    dmax = max(1, min(m, max(target, unit) // unit))
    for d in range(dmax, 0, -1):
        if m % d == 0:
            return d * unit
    return unit


def _im2col3x3(x):
    """NHWC -> (N*H*W, 9*C) patches for a 3x3 'same' conv (stride 1, pad 1)."""
    N, H, W, C = x.shape
    xp = jnp.pad(x, ((0, 0), (1, 1), (1, 1), (0, 0)))
    taps = [xp[:, dy:dy + H, dx:dx + W, :] for dy in range(3) for dx in range(3)]
    return jnp.concatenate(taps, axis=-1).reshape(N * H * W, 9 * C)


# ----------------------------- Pallas kernels -------------------------------

def _conv_stats_kernel(p_ref, w_ref, z_ref, sum_ref, sq_ref):
    """z = patches @ w ; accumulate per-channel sum / sum-of-squares of z."""
    @pl.when(pl.program_id(0) == 0)
    def _():
        sum_ref[...] = jnp.zeros_like(sum_ref)
        sq_ref[...] = jnp.zeros_like(sq_ref)

    z = jnp.dot(p_ref[...], w_ref[...], preferred_element_type=jnp.float32)
    z_ref[...] = z
    sum_ref[...] += jnp.sum(z, axis=0, keepdims=True)
    sq_ref[...] += jnp.sum(z * z, axis=0, keepdims=True)


def _dual_conv_stats_kernel(pa_ref, wa_ref, pb_ref, wb_ref,
                            z_ref, sum_ref, sq_ref):
    """z = pa @ wa + pb @ wb ; accumulate per-channel sum / sum-of-squares."""
    @pl.when(pl.program_id(0) == 0)
    def _():
        sum_ref[...] = jnp.zeros_like(sum_ref)
        sq_ref[...] = jnp.zeros_like(sq_ref)

    z = jnp.dot(pa_ref[...], wa_ref[...], preferred_element_type=jnp.float32)
    z = z + jnp.dot(pb_ref[...], wb_ref[...], preferred_element_type=jnp.float32)
    z_ref[...] = z
    sum_ref[...] += jnp.sum(z, axis=0, keepdims=True)
    sq_ref[...] += jnp.sum(z * z, axis=0, keepdims=True)


def _scale_shift_relu_kernel(z_ref, sc_ref, sh_ref, o_ref):
    """Folded BN affine + ReLU on a lane-dense slab."""
    o_ref[...] = jnp.maximum(z_ref[...] * sc_ref[...] + sh_ref[...], 0.0)


def _final_fuse_kernel(z_ref, x_ref, w_ref, sc_ref, sh_ref, o_ref):
    """Folded BN affine of z + 1x1 identity conv (x @ w) + add + ReLU."""
    ident = jnp.dot(x_ref[...], w_ref[...], preferred_element_type=jnp.float32)
    o_ref[...] = jnp.maximum(z_ref[...] * sc_ref[...] + sh_ref[...] + ident, 0.0)


# ---------------------------- pallas wrappers --------------------------------

def _conv3x3_with_stats(xs, ws):
    """Fused sum of 3x3 convs (bias dropped, it cancels under BN) + stats.

    xs: list of 1 or 2 NHWC inputs (same N, H, W).
    ws: matching list of (3, 3, Cin_i, Cout) weights.
    Returns (z_padded (NHWp, Cout), ssum (1, Cout), ssq (1, Cout), meta).
    """
    N, H, W, _ = xs[0].shape
    for x in xs:
        assert x.shape[:3] == (N, H, W)
    Cout = ws[0].shape[-1]
    nhw = N * H * W

    # Row padding unit: sublane multiple (8), image width W (so the lane-dense
    # reshape in the normalize kernel works), and the lane-packing factor k.
    k = max(1, 128 // Cout)
    unit = _lcm(_lcm(8, W), k)
    nhw_p = _round_up(nhw, unit)
    tile = _pick_tile(nhw_p, unit, _CONV_TILE_ROWS)
    grid = (nhw_p // tile,)

    args, in_specs = [], []
    for x, w in zip(xs, ws):
        p = _im2col3x3(x)
        if nhw_p != nhw:
            p = jnp.pad(p, ((0, nhw_p - nhw), (0, 0)))   # zero rows -> zero z
        K = p.shape[1]
        args += [p, w.reshape(K, Cout)]
        in_specs += [pl.BlockSpec((tile, K), lambda i: (i, 0)),
                     pl.BlockSpec((K, Cout), lambda i: (0, 0))]

    kernel = _conv_stats_kernel if len(xs) == 1 else _dual_conv_stats_kernel
    z, ssum, ssq = pl.pallas_call(
        kernel,
        out_shape=(jax.ShapeDtypeStruct((nhw_p, Cout), jnp.float32),
                   jax.ShapeDtypeStruct((1, Cout), jnp.float32),
                   jax.ShapeDtypeStruct((1, Cout), jnp.float32)),
        grid=grid,
        in_specs=in_specs,
        out_specs=(pl.BlockSpec((tile, Cout), lambda i: (i, 0)),
                   pl.BlockSpec((1, Cout), lambda i: (0, 0)),   # resident acc
                   pl.BlockSpec((1, Cout), lambda i: (0, 0))),  # resident acc
        compiler_params=pltpu.CompilerParams(
            dimension_semantics=("arbitrary",)),   # stats accumulate across it
    )(*args)
    return z, ssum, ssq, (N, H, W, nhw, nhw_p)


def _bn_scale_shift(ssum, ssq, count, gamma, beta, eps=1e-5):
    """Fold training-mode BN (biased var, eps=1e-5) into per-channel scale/shift."""
    mean = ssum / count
    var = ssq / count - mean * mean
    inv = jax.lax.rsqrt(var + eps)
    scale = gamma.reshape(1, -1) * inv
    shift = beta.reshape(1, -1) - mean * scale
    return scale, shift


def _scale_shift_relu(z, scale, shift, meta):
    """Lane-dense folded-BN + ReLU; returns NHWC activation (padding removed)."""
    N, H, W, nhw, nhw_p = meta
    C = z.shape[-1]
    k = max(1, 128 // C)
    if nhw_p % k != 0:            # safety fallback (not hit in this config)
        k = 1
    rows, lane = nhw_p // k, k * C
    zr = z.reshape(rows, lane)
    sc = jnp.tile(scale.reshape(-1), k).reshape(1, lane)
    sh = jnp.tile(shift.reshape(-1), k).reshape(1, lane)

    unit = 8 if rows % 8 == 0 else rows
    tile = _pick_tile(rows, unit, _EW_TILE_ROWS)
    out = pl.pallas_call(
        _scale_shift_relu_kernel,
        out_shape=jax.ShapeDtypeStruct((rows, lane), jnp.float32),
        grid=(rows // tile,),
        in_specs=[pl.BlockSpec((tile, lane), lambda i: (i, 0)),
                  pl.BlockSpec((1, lane), lambda i: (0, 0)),
                  pl.BlockSpec((1, lane), lambda i: (0, 0))],
        out_specs=pl.BlockSpec((tile, lane), lambda i: (i, 0)),
        compiler_params=pltpu.CompilerParams(
            dimension_semantics=("parallel",)),
    )(zr, sc, sh)
    return out.reshape(nhw_p, C)[:nhw].reshape(N, H, W, C)


def _final_fuse(z, in_h, w_id, scale, shift_plus_bias, meta):
    """relu(BN-affine(z) + in_h @ w_id + b_id); b_id folded into shift."""
    N, H, W, nhw, nhw_p = meta
    Cout = z.shape[-1]
    Cin = in_h.shape[-1]
    xf = in_h.reshape(nhw, Cin)
    if nhw_p != nhw:
        xf = jnp.pad(xf, ((0, nhw_p - nhw), (0, 0)))

    unit = 8 if nhw_p % 8 == 0 else nhw_p
    tile = _pick_tile(nhw_p, unit, _CONV_TILE_ROWS)
    out = pl.pallas_call(
        _final_fuse_kernel,
        out_shape=jax.ShapeDtypeStruct((nhw_p, Cout), jnp.float32),
        grid=(nhw_p // tile,),
        in_specs=[pl.BlockSpec((tile, Cout), lambda i: (i, 0)),
                  pl.BlockSpec((tile, Cin), lambda i: (i, 0)),
                  pl.BlockSpec((Cin, Cout), lambda i: (0, 0)),
                  pl.BlockSpec((1, Cout), lambda i: (0, 0)),
                  pl.BlockSpec((1, Cout), lambda i: (0, 0))],
        out_specs=pl.BlockSpec((tile, Cout), lambda i: (i, 0)),
        compiler_params=pltpu.CompilerParams(
            dimension_semantics=("parallel",)),
    )(z, xf, w_id, scale, shift_plus_bias)
    return out.reshape(nhw_p, Cout)[:nhw].reshape(N, H, W, Cout)


def conv_bn_relu(xs, ws, gamma, beta):
    """relu(BN(sum_i conv3x3(x_i, w_i))) with training-mode batch statistics."""
    z, ssum, ssq, meta = _conv3x3_with_stats(xs, ws)
    scale, shift = _bn_scale_shift(ssum, ssq, float(meta[3]), gamma, beta)
    return _scale_shift_relu(z, scale, shift, meta)


# ------------------------------ JAX glue ops ---------------------------------

def avg_pool2(x):                      # nn.AvgPool2d((2,2), stride=2), NHWC
    N, H, W, C = x.shape
    return x.reshape(N, H // 2, 2, W // 2, 2, C).mean(axis=(2, 4))


def upsample2(x):                      # nn.Upsample(scale_factor=2, 'nearest')
    return jnp.repeat(jnp.repeat(x, 2, axis=1), 2, axis=2)


# --------------------------- parameters & forward ----------------------------

def init_params(key, in_hc, in_lc, out_c):
    mid = min(in_hc, in_lc)
    conv3_shapes = {
        'h2h_0': (in_hc, mid), 'l2l_0': (in_lc, mid),
        'h2h_1': (mid, mid), 'h2l_1': (mid, mid),
        'l2h_1': (mid, mid), 'l2l_1': (mid, mid),
        'h2h_2': (mid, mid), 'l2h_2': (mid, mid),
        'h2h_3': (mid, out_c),
    }
    bn_shapes = {'bnh_0': mid, 'bnl_0': mid, 'bnh_1': mid,
                 'bnl_1': mid, 'bnh_2': mid, 'bnh_3': out_c}
    keys = iter(jax.random.split(key, 2 * len(conv3_shapes) + 2 * len(bn_shapes) + 2))
    p = {}
    for name, (ci, co) in conv3_shapes.items():
        p[name + '_w'] = 0.1 * jax.random.normal(next(keys), (3, 3, ci, co), jnp.float32)
        p[name + '_b'] = 0.1 * jax.random.normal(next(keys), (co,), jnp.float32)
    for name, c in bn_shapes.items():
        p[name + '_g'] = 1.0 + 0.1 * jax.random.normal(next(keys), (c,), jnp.float32)
        p[name + '_b'] = 0.1 * jax.random.normal(next(keys), (c,), jnp.float32)
    p['identity_w'] = 0.1 * jax.random.normal(next(keys), (in_hc, out_c), jnp.float32)
    p['identity_b'] = 0.1 * jax.random.normal(next(keys), (out_c,), jnp.float32)
    return p


def conv_2nV1_forward(in_h_nchw, in_l_nchw, p):
    """main == 0 branch of conv_2nV1.forward. Inputs/outputs are NCHW."""
    in_h = jnp.transpose(in_h_nchw, (0, 2, 3, 1))   # -> NHWC
    in_l = jnp.transpose(in_l_nchw, (0, 2, 3, 1))

    # stage 0: conv + BN + ReLU (3x3 conv biases cancel under training BN)
    h = conv_bn_relu([in_h], [p['h2h_0_w']], p['bnh_0_g'], p['bnh_0_b'])
    l = conv_bn_relu([in_l], [p['l2l_0_w']], p['bnl_0_g'], p['bnl_0_b'])

    # stage 1: both convs + add + BN stats fused in one kernel per branch
    h_new = conv_bn_relu([h, upsample2(l)], [p['h2h_1_w'], p['l2h_1_w']],
                         p['bnh_1_g'], p['bnh_1_b'])
    l_new = conv_bn_relu([l, avg_pool2(h)], [p['l2l_1_w'], p['h2l_1_w']],
                         p['bnl_1_g'], p['bnl_1_b'])
    h, l = h_new, l_new

    # stage 2 (main == 0)
    h_fuse = conv_bn_relu([h, upsample2(l)], [p['h2h_2_w'], p['l2h_2_w']],
                          p['bnh_2_g'], p['bnh_2_b'])

    # stage 3: conv(+stats) then fused BN-affine + 1x1 identity + add + ReLU
    z, ssum, ssq, meta = _conv3x3_with_stats([h_fuse], [p['h2h_3_w']])
    scale, shift = _bn_scale_shift(ssum, ssq, float(meta[3]),
                                   p['bnh_3_g'], p['bnh_3_b'])
    shift_pb = shift + p['identity_b'].reshape(1, -1)
    out = _final_fuse(z, in_h, p['identity_w'], scale, shift_pb, meta)

    return jnp.transpose(out, (0, 3, 1, 2))          # -> NCHW


# ------------------------- pure-XLA reference (check) ------------------------

def _ref_conv3x3(x, w, b):
    out = jax.lax.conv_general_dilated(
        x, w, window_strides=(1, 1), padding='SAME',
        dimension_numbers=('NHWC', 'HWIO', 'NHWC'),
        precision=jax.lax.Precision.HIGHEST)
    return out + b


def _ref_bn(z, g, b, eps=1e-5):
    mean = z.mean(axis=(0, 1, 2), keepdims=True)
    var = ((z - mean) ** 2).mean(axis=(0, 1, 2), keepdims=True)
    return (z - mean) * jax.lax.rsqrt(var + eps) * g + b


def _ref_forward(in_h_nchw, in_l_nchw, p):
    relu = lambda x: jnp.maximum(x, 0.0)
    in_h = jnp.transpose(in_h_nchw, (0, 2, 3, 1))
    in_l = jnp.transpose(in_l_nchw, (0, 2, 3, 1))
    h = relu(_ref_bn(_ref_conv3x3(in_h, p['h2h_0_w'], p['h2h_0_b']),
                     p['bnh_0_g'], p['bnh_0_b']))
    l = relu(_ref_bn(_ref_conv3x3(in_l, p['l2l_0_w'], p['l2l_0_b']),
                     p['bnl_0_g'], p['bnl_0_b']))
    h2h = _ref_conv3x3(h, p['h2h_1_w'], p['h2h_1_b'])
    h2l = _ref_conv3x3(avg_pool2(h), p['h2l_1_w'], p['h2l_1_b'])
    l2l = _ref_conv3x3(l, p['l2l_1_w'], p['l2l_1_b'])
    l2h = _ref_conv3x3(upsample2(l), p['l2h_1_w'], p['l2h_1_b'])
    h = relu(_ref_bn(h2h + l2h, p['bnh_1_g'], p['bnh_1_b']))
    l = relu(_ref_bn(l2l + h2l, p['bnl_1_g'], p['bnl_1_b']))
    h2h = _ref_conv3x3(h, p['h2h_2_w'], p['h2h_2_b'])
    l2h = _ref_conv3x3(upsample2(l), p['l2h_2_w'], p['l2h_2_b'])
    h_fuse = relu(_ref_bn(h2h + l2h, p['bnh_2_g'], p['bnh_2_b']))
    z = _ref_bn(_ref_conv3x3(h_fuse, p['h2h_3_w'], p['h2h_3_b']),
                p['bnh_3_g'], p['bnh_3_b'])
    ident = jnp.einsum('nhwc,cd->nhwd', in_h, p['identity_w'],
                       precision=jax.lax.Precision.HIGHEST) + p['identity_b']
    out = relu(z + ident)
    return jnp.transpose(out, (0, 3, 1, 2))


# ---------------------------------- main -------------------------------------

if __name__ == "__main__":
    key = jax.random.PRNGKey(0)
    k_h, k_l, k_p = jax.random.split(key, 3)

    in_hc, in_lc, out_c = 8, 16, 8
    in_h = jax.random.normal(k_h, (2, in_hc, 16, 16), jnp.float32)   # high-res
    in_l = jax.random.normal(k_l, (2, in_lc, 8, 8), jnp.float32)     # low-res
    params = init_params(k_p, in_hc, in_lc, out_c)

    fwd = jax.jit(conv_2nV1_forward)
    out = fwd(in_h, in_l, params)
    jax.block_until_ready(out)
    assert out.shape == (2, out_c, 16, 16) and out.dtype == jnp.float32

    # sanity check against a pure-XLA reference (loose tol for MXU precision)
    ref = jax.jit(_ref_forward)(in_h, in_l, params)
    jax.block_until_ready(ref)
    max_err = float(jnp.max(jnp.abs(out - ref)))
    assert max_err < 5e-2, f"mismatch vs reference: max abs err = {max_err}"

    print("KERNEL_OK")
</pallas_src>

<mosaic_0001>
module attributes {stable_mosaic.version = 11 : i64} {
  func.func @_conv_stats_kernel(%arg0: i32, %arg1: memref<256x72xf32, #tpu.memory_space<vmem>>, %arg2: memref<72x8xf32, #tpu.memory_space<vmem>>, %arg3: memref<256x8xf32, #tpu.memory_space<vmem>>, %arg4: memref<1x8xf32, #tpu.memory_space<vmem>>, %arg5: memref<1x8xf32, #tpu.memory_space<vmem>>) attributes {dimension_semantics = [#tpu.dimension_semantics<arbitrary>], iteration_bounds = array<i64: 2>, scalar_prefetch = 0 : i64, scratch_operands = 0 : i64, tpu.core_type = #tpu.core_type<tc>, window_params = [{transform_indices = @transform_0, window_bounds = array<i64: 256, 72>}, {pipeline_mode = #tpu.pipeline_mode<synchronous>, transform_indices = @transform_1, window_bounds = array<i64: 72, 8>}, {transform_indices = @transform_2, window_bounds = array<i64: 256, 8>}, {pipeline_mode = #tpu.pipeline_mode<synchronous>, transform_indices = @transform_3, window_bounds = array<i64: 1, 8>}, {pipeline_mode = #tpu.pipeline_mode<synchronous>, transform_indices = @transform_4, window_bounds = array<i64: 1, 8>}]} {
    %c0_i32 = arith.constant 0 : i32
    %0 = arith.cmpi eq, %arg0, %c0_i32 : i32
    %1 = arith.extui %0 : i1 to i32
    %c0_i32_0 = arith.constant 0 : i32
    %2 = arith.cmpi ne, %1, %c0_i32_0 : i32
    scf.if %2 {
      %cst_16 = arith.constant 0.000000e+00 : f32
      %18 = vector.broadcast %cst_16 : f32 to vector<1x8xf32>
      %c0_17 = arith.constant 0 : index
      %c0_18 = arith.constant 0 : index
      %19 = vector.load %arg4[%c0_17, %c0_18] : memref<1x8xf32, #tpu.memory_space<vmem>>, vector<1x8xf32>
      tpu.vector_store %arg4[%c0_17, %c0_18], %18 {strides = array<i32>} : memref<1x8xf32, #tpu.memory_space<vmem>>, vector<1x8xf32>,
      %cst_19 = arith.constant 0.000000e+00 : f32
      %20 = vector.broadcast %cst_19 : f32 to vector<1x8xf32>
      %c0_20 = arith.constant 0 : index
      %c0_21 = arith.constant 0 : index
      %21 = vector.load %arg5[%c0_20, %c0_21] : memref<1x8xf32, #tpu.memory_space<vmem>>, vector<1x8xf32>
      tpu.vector_store %arg5[%c0_20, %c0_21], %20 {strides = array<i32>} : memref<1x8xf32, #tpu.memory_space<vmem>>, vector<1x8xf32>,
    } else {
    }
    %c0 = arith.constant 0 : index
    %c0_1 = arith.constant 0 : index
    %3 = vector.load %arg1[%c0, %c0_1] : memref<256x72xf32, #tpu.memory_space<vmem>>, vector<256x72xf32>
    %c0_2 = arith.constant 0 : index
    %c0_3 = arith.constant 0 : index
    %4 = vector.load %arg2[%c0_2, %c0_3] : memref<72x8xf32, #tpu.memory_space<vmem>>, vector<72x8xf32>
    %cst = arith.constant dense<0.000000e+00> : vector<256x8xf32>
    %5 = tpu.matmul %3, %4, %cst {dimension_numbers = #tpu.dot_dimension_numbers<[1], [0], [0], [1], [0, 0, 1, 1], [], []>} : vector<256x72xf32>, vector<72x8xf32>, vector<256x8xf32> -> vector<256x8xf32>
    %c0_4 = arith.constant 0 : index
    %c0_5 = arith.constant 0 : index
    %6 = vector.load %arg3[%c0_4, %c0_5] : memref<256x8xf32, #tpu.memory_space<vmem>>, vector<256x8xf32>
    tpu.vector_store %arg3[%c0_4, %c0_5], %5 {strides = array<i32>} : memref<256x8xf32, #tpu.memory_space<vmem>>, vector<256x8xf32>,
    %c0_6 = arith.constant 0 : index
    %c0_7 = arith.constant 0 : index
    %7 = vector.load %arg4[%c0_6, %c0_7] : memref<1x8xf32, #tpu.memory_space<vmem>>, vector<1x8xf32>
    %cst_8 = arith.constant dense<0.000000e+00> : vector<8xf32>
    %8 = vector.multi_reduction <add>, %5, %cst_8 [0] : vector<256x8xf32> to vector<8xf32>
    %9 = vector.shape_cast %8 : vector<8xf32> to vector<1x8xf32>
    %10 = arith.addf %7, %9 : vector<1x8xf32>
    %c0_9 = arith.constant 0 : index
    %c0_10 = arith.constant 0 : index
    %11 = vector.load %arg4[%c0_9, %c0_10] : memref<1x8xf32, #tpu.memory_space<vmem>>, vector<1x8xf32>
    tpu.vector_store %arg4[%c0_9, %c0_10], %10 {strides = array<i32>} : memref<1x8xf32, #tpu.memory_space<vmem>>, vector<1x8xf32>,
    %c0_11 = arith.constant 0 : index
    %c0_12 = arith.constant 0 : index
    %12 = vector.load %arg5[%c0_11, %c0_12] : memref<1x8xf32, #tpu.memory_space<vmem>>, vector<1x8xf32>
    %13 = arith.mulf %5, %5 : vector<256x8xf32>
    %cst_13 = arith.constant dense<0.000000e+00> : vector<8xf32>
    %14 = vector.multi_reduction <add>, %13, %cst_13 [0] : vector<256x8xf32> to vector<8xf32>
    %15 = vector.shape_cast %14 : vector<8xf32> to vector<1x8xf32>
    %16 = arith.addf %12, %15 : vector<1x8xf32>
    %c0_14 = arith.constant 0 : index
    %c0_15 = arith.constant 0 : index
    %17 = vector.load %arg5[%c0_14, %c0_15] : memref<1x8xf32, #tpu.memory_space<vmem>>, vector<1x8xf32>
    tpu.vector_store %arg5[%c0_14, %c0_15], %16 {strides = array<i32>} : memref<1x8xf32, #tpu.memory_space<vmem>>, vector<1x8xf32>,
    return
  }
  func.func @transform_0(%arg0: i32) -> (i32, i32) {
    %c0_i32 = arith.constant 0 : i32
    %c0_i32_0 = arith.constant 0 : i32
    return %arg0, %c0_i32 : i32, i32
  }
  func.func @transform_1(%arg0: i32) -> (i32, i32) {
    %c0_i32 = arith.constant 0 : i32
    %c0_i32_0 = arith.constant 0 : i32
    %c0_i32_1 = arith.constant 0 : i32
    return %c0_i32, %c0_i32_0 : i32, i32
  }
  func.func @transform_2(%arg0: i32) -> (i32, i32) {
    %c0_i32 = arith.constant 0 : i32
    %c0_i32_0 = arith.constant 0 : i32
    return %arg0, %c0_i32 : i32, i32
  }
  func.func @transform_3(%arg0: i32) -> (i32, i32) {
    %c0_i32 = arith.constant 0 : i32
    %c0_i32_0 = arith.constant 0 : i32
    %c0_i32_1 = arith.constant 0 : i32
    return %c0_i32, %c0_i32_0 : i32, i32
  }
  func.func @transform_4(%arg0: i32) -> (i32, i32) {
    %c0_i32 = arith.constant 0 : i32
    %c0_i32_0 = arith.constant 0 : i32
    %c0_i32_1 = arith.constant 0 : i32
    return %c0_i32, %c0_i32_0 : i32, i32
  }
}

module attributes {stable_mosaic.version = 11 : i64} {
  func.func @_scale_shift_relu_kernel(%arg0: i32, %arg1: memref<32x128xf32, #tpu.memory_space<vmem>>, %arg2: memref<1x128xf32, #tpu.memory_space<vmem>>, %arg3: memref<1x128xf32, #tpu.memory_space<vmem>>, %arg4: memref<32x128xf32, #tpu.memory_space<vmem>>) attributes {dimension_semantics = [#tpu.dimension_semantics<parallel>], iteration_bounds = array<i64: 1>, scalar_prefetch = 0 : i64, scratch_operands = 0 : i64, tpu.core_type = #tpu.core_type<tc>, window_params = [{transform_indices = @transform_0, window_bounds = array<i64: 32, 128>}, {pipeline_mode = #tpu.pipeline_mode<synchronous>, transform_indices = @transform_1, window_bounds = array<i64: 1, 128>}, {pipeline_mode = #tpu.pipeline_mode<synchronous>, transform_indices = @transform_2, window_bounds = array<i64: 1, 128>}, {transform_indices = @transform_3, window_bounds = array<i64: 32, 128>}]} {
    %c0 = arith.constant 0 : index
    %c0_0 = arith.constant 0 : index
    %0 = vector.load %arg1[%c0, %c0_0] : memref<32x128xf32, #tpu.memory_space<vmem>>, vector<32x128xf32>
    %c0_1 = arith.constant 0 : index
    %c0_2 = arith.constant 0 : index
    %1 = vector.load %arg2[%c0_1, %c0_2] : memref<1x128xf32, #tpu.memory_space<vmem>>, vector<1x128xf32>
    %2 = vector.broadcast %1 : vector<1x128xf32> to vector<32x128xf32>
    %3 = arith.mulf %0, %2 : vector<32x128xf32>
    %c0_3 = arith.constant 0 : index
    %c0_4 = arith.constant 0 : index
    %4 = vector.load %arg3[%c0_3, %c0_4] : memref<1x128xf32, #tpu.memory_space<vmem>>, vector<1x128xf32>
    %5 = vector.broadcast %4 : vector<1x128xf32> to vector<32x128xf32>
    %6 = arith.addf %3, %5 : vector<32x128xf32>
    %cst = arith.constant 0.000000e+00 : f32
    %7 = vector.broadcast %cst : f32 to vector<32x128xf32>
    %8 = arith.maximumf %6, %7 : vector<32x128xf32>
    %c0_5 = arith.constant 0 : index
    %c0_6 = arith.constant 0 : index
    %9 = vector.load %arg4[%c0_5, %c0_6] : memref<32x128xf32, #tpu.memory_space<vmem>>, vector<32x128xf32>
    tpu.vector_store %arg4[%c0_5, %c0_6], %8 {strides = array<i32>} : memref<32x128xf32, #tpu.memory_space<vmem>>, vector<32x128xf32>,
    return
  }
  func.func @transform_0(%arg0: i32) -> (i32, i32) {
    %c0_i32 = arith.constant 0 : i32
    %c0_i32_0 = arith.constant 0 : i32
    return %arg0, %c0_i32 : i32, i32
  }
  func.func @transform_1(%arg0: i32) -> (i32, i32) {
    %c0_i32 = arith.constant 0 : i32
    %c0_i32_0 = arith.constant 0 : i32
    %c0_i32_1 = arith.constant 0 : i32
    return %c0_i32, %c0_i32_0 : i32, i32
  }
  func.func @transform_2(%arg0: i32) -> (i32, i32) {
    %c0_i32 = arith.constant 0 : i32
    %c0_i32_0 = arith.constant 0 : i32
    %c0_i32_1 = arith.constant 0 : i32
    return %c0_i32, %c0_i32_0 : i32, i32
  }
  func.func @transform_3(%arg0: i32) -> (i32, i32) {
    %c0_i32 = arith.constant 0 : i32
    %c0_i32_0 = arith.constant 0 : i32
    return %arg0, %c0_i32 : i32, i32
  }
}

module attributes {stable_mosaic.version = 11 : i64} {
  func.func @_conv_stats_kernel(%arg0: i32, %arg1: memref<128x144xf32, #tpu.memory_space<vmem>>, %arg2: memref<144x8xf32, #tpu.memory_space<vmem>>, %arg3: memref<128x8xf32, #tpu.memory_space<vmem>>, %arg4: memref<1x8xf32, #tpu.memory_space<vmem>>, %arg5: memref<1x8xf32, #tpu.memory_space<vmem>>) attributes {dimension_semantics = [#tpu.dimension_semantics<arbitrary>], iteration_bounds = array<i64: 1>, scalar_prefetch = 0 : i64, scratch_operands = 0 : i64, tpu.core_type = #tpu.core_type<tc>, window_params = [{transform_indices = @transform_0, window_bounds = array<i64: 128, 144>}, {pipeline_mode = #tpu.pipeline_mode<synchronous>, transform_indices = @transform_1, window_bounds = array<i64: 144, 8>}, {transform_indices = @transform_2, window_bounds = array<i64: 128, 8>}, {pipeline_mode = #tpu.pipeline_mode<synchronous>, transform_indices = @transform_3, window_bounds = array<i64: 1, 8>}, {pipeline_mode = #tpu.pipeline_mode<synchronous>, transform_indices = @transform_4, window_bounds = array<i64: 1, 8>}]} {
    %c0_i32 = arith.constant 0 : i32
    %0 = arith.cmpi eq, %arg0, %c0_i32 : i32
    %1 = arith.extui %0 : i1 to i32
    %c0_i32_0 = arith.constant 0 : i32
    %2 = arith.cmpi ne, %1, %c0_i32_0 : i32
    scf.if %2 {
      %cst_16 = arith.constant 0.000000e+00 : f32
      %18 = vector.broadcast %cst_16 : f32 to vector<1x8xf32>
      %c0_17 = arith.constant 0 : index
      %c0_18 = arith.constant 0 : index
      %19 = vector.load %arg4[%c0_17, %c0_18] : memref<1x8xf32, #tpu.memory_space<vmem>>, vector<1x8xf32>
      tpu.vector_store %arg4[%c0_17, %c0_18], %18 {strides = array<i32>} : memref<1x8xf32, #tpu.memory_space<vmem>>, vector<1x8xf32>,
      %cst_19 = arith.constant 0.000000e+00 : f32
      %20 = vector.broadcast %cst_19 : f32 to vector<1x8xf32>
      %c0_20 = arith.constant 0 : index
      %c0_21 = arith.constant 0 : index
      %21 = vector.load %arg5[%c0_20, %c0_21] : memref<1x8xf32, #tpu.memory_space<vmem>>, vector<1x8xf32>
      tpu.vector_store %arg5[%c0_20, %c0_21], %20 {strides = array<i32>} : memref<1x8xf32, #tpu.memory_space<vmem>>, vector<1x8xf32>,
    } else {
    }
    %c0 = arith.constant 0 : index
    %c0_1 = arith.constant 0 : index
    %3 = vector.load %arg1[%c0, %c0_1] : memref<128x144xf32, #tpu.memory_space<vmem>>, vector<128x144xf32>
    %c0_2 = arith.constant 0 : index
    %c0_3 = arith.constant 0 : index
    %4 = vector.load %arg2[%c0_2, %c0_3] : memref<144x8xf32, #tpu.memory_space<vmem>>, vector<144x8xf32>
    %cst = arith.constant dense<0.000000e+00> : vector<128x8xf32>
    %5 = tpu.matmul %3, %4, %cst {dimension_numbers = #tpu.dot_dimension_numbers<[1], [0], [0], [1], [0, 0, 1, 1], [], []>} : vector<128x144xf32>, vector<144x8xf32>, vector<128x8xf32> -> vector<128x8xf32>
    %c0_4 = arith.constant 0 : index
    %c0_5 = arith.constant 0 : index
    %6 = vector.load %arg3[%c0_4, %c0_5] : memref<128x8xf32, #tpu.memory_space<vmem>>, vector<128x8xf32>
    tpu.vector_store %arg3[%c0_4, %c0_5], %5 {strides = array<i32>} : memref<128x8xf32, #tpu.memory_space<vmem>>, vector<128x8xf32>,
    %c0_6 = arith.constant 0 : index
    %c0_7 = arith.constant 0 : index
    %7 = vector.load %arg4[%c0_6, %c0_7] : memref<1x8xf32, #tpu.memory_space<vmem>>, vector<1x8xf32>
    %cst_8 = arith.constant dense<0.000000e+00> : vector<8xf32>
    %8 = vector.multi_reduction <add>, %5, %cst_8 [0] : vector<128x8xf32> to vector<8xf32>
    %9 = vector.shape_cast %8 : vector<8xf32> to vector<1x8xf32>
    %10 = arith.addf %7, %9 : vector<1x8xf32>
    %c0_9 = arith.constant 0 : index
    %c0_10 = arith.constant 0 : index
    %11 = vector.load %arg4[%c0_9, %c0_10] : memref<1x8xf32, #tpu.memory_space<vmem>>, vector<1x8xf32>
    tpu.vector_store %arg4[%c0_9, %c0_10], %10 {strides = array<i32>} : memref<1x8xf32, #tpu.memory_space<vmem>>, vector<1x8xf32>,
    %c0_11 = arith.constant 0 : index
    %c0_12 = arith.constant 0 : index
    %12 = vector.load %arg5[%c0_11, %c0_12] : memref<1x8xf32, #tpu.memory_space<vmem>>, vector<1x8xf32>
    %13 = arith.mulf %5, %5 : vector<128x8xf32>
    %cst_13 = arith.constant dense<0.000000e+00> : vector<8xf32>
    %14 = vector.multi_reduction <add>, %13, %cst_13 [0] : vector<128x8xf32> to vector<8xf32>
    %15 = vector.shape_cast %14 : vector<8xf32> to vector<1x8xf32>
    %16 = arith.addf %12, %15 : vector<1x8xf32>
    %c0_14 = arith.constant 0 : index
    %c0_15 = arith.constant 0 : index
    %17 = vector.load %arg5[%c0_14, %c0_15] : memref<1x8xf32, #tpu.memory_space<vmem>>, vector<1x8xf32>
    tpu.vector_store %arg5[%c0_14, %c0_15], %16 {strides = array<i32>} : memref<1x8xf32, #tpu.memory_space<vmem>>, vector<1x8xf32>,
    return
  }
  func.func @transform_0(%arg0: i32) -> (i32, i32) {
    %c0_i32 = arith.constant 0 : i32
    %c0_i32_0 = arith.constant 0 : i32
    return %arg0, %c0_i32 : i32, i32
  }
  func.func @transform_1(%arg0: i32) -> (i32, i32) {
    %c0_i32 = arith.constant 0 : i32
    %c0_i32_0 = arith.constant 0 : i32
    %c0_i32_1 = arith.constant 0 : i32
    return %c0_i32, %c0_i32_0 : i32, i32
  }
  func.func @transform_2(%arg0: i32) -> (i32, i32) {
    %c0_i32 = arith.constant 0 : i32
    %c0_i32_0 = arith.constant 0 : i32
    return %arg0, %c0_i32 : i32, i32
  }
  func.func @transform_3(%arg0: i32) -> (i32, i32) {
    %c0_i32 = arith.constant 0 : i32
    %c0_i32_0 = arith.constant 0 : i32
    %c0_i32_1 = arith.constant 0 : i32
    return %c0_i32, %c0_i32_0 : i32, i32
  }
  func.func @transform_4(%arg0: i32) -> (i32, i32) {
    %c0_i32 = arith.constant 0 : i32
    %c0_i32_0 = arith.constant 0 : i32
    %c0_i32_1 = arith.constant 0 : i32
    return %c0_i32, %c0_i32_0 : i32, i32
  }
}

module attributes {stable_mosaic.version = 11 : i64} {
  func.func @_scale_shift_relu_kernel(%arg0: i32, %arg1: memref<8x128xf32, #tpu.memory_space<vmem>>, %arg2: memref<1x128xf32, #tpu.memory_space<vmem>>, %arg3: memref<1x128xf32, #tpu.memory_space<vmem>>, %arg4: memref<8x128xf32, #tpu.memory_space<vmem>>) attributes {dimension_semantics = [#tpu.dimension_semantics<parallel>], iteration_bounds = array<i64: 1>, scalar_prefetch = 0 : i64, scratch_operands = 0 : i64, tpu.core_type = #tpu.core_type<tc>, window_params = [{transform_indices = @transform_0, window_bounds = array<i64: 8, 128>}, {pipeline_mode = #tpu.pipeline_mode<synchronous>, transform_indices = @transform_1, window_bounds = array<i64: 1, 128>}, {pipeline_mode = #tpu.pipeline_mode<synchronous>, transform_indices = @transform_2, window_bounds = array<i64: 1, 128>}, {transform_indices = @transform_3, window_bounds = array<i64: 8, 128>}]} {
    %c0 = arith.constant 0 : index
    %c0_0 = arith.constant 0 : index
    %0 = vector.load %arg1[%c0, %c0_0] : memref<8x128xf32, #tpu.memory_space<vmem>>, vector<8x128xf32>
    %c0_1 = arith.constant 0 : index
    %c0_2 = arith.constant 0 : index
    %1 = vector.load %arg2[%c0_1, %c0_2] : memref<1x128xf32, #tpu.memory_space<vmem>>, vector<1x128xf32>
    %2 = vector.broadcast %1 : vector<1x128xf32> to vector<8x128xf32>
    %3 = arith.mulf %0, %2 : vector<8x128xf32>
    %c0_3 = arith.constant 0 : index
    %c0_4 = arith.constant 0 : index
    %4 = vector.load %arg3[%c0_3, %c0_4] : memref<1x128xf32, #tpu.memory_space<vmem>>, vector<1x128xf32>
    %5 = vector.broadcast %4 : vector<1x128xf32> to vector<8x128xf32>
    %6 = arith.addf %3, %5 : vector<8x128xf32>
    %cst = arith.constant 0.000000e+00 : f32
    %7 = vector.broadcast %cst : f32 to vector<8x128xf32>
    %8 = arith.maximumf %6, %7 : vector<8x128xf32>
    %c0_5 = arith.constant 0 : index
    %c0_6 = arith.constant 0 : index
    %9 = vector.load %arg4[%c0_5, %c0_6] : memref<8x128xf32, #tpu.memory_space<vmem>>, vector<8x128xf32>
    tpu.vector_store %arg4[%c0_5, %c0_6], %8 {strides = array<i32>} : memref<8x128xf32, #tpu.memory_space<vmem>>, vector<8x128xf32>,
    return
  }
  func.func @transform_0(%arg0: i32) -> (i32, i32) {
    %c0_i32 = arith.constant 0 : i32
    %c0_i32_0 = arith.constant 0 : i32
    return %arg0, %c0_i32 : i32, i32
  }
  func.func @transform_1(%arg0: i32) -> (i32, i32) {
    %c0_i32 = arith.constant 0 : i32
    %c0_i32_0 = arith.constant 0 : i32
    %c0_i32_1 = arith.constant 0 : i32
    return %c0_i32, %c0_i32_0 : i32, i32
  }
  func.func @transform_2(%arg0: i32) -> (i32, i32) {
    %c0_i32 = arith.constant 0 : i32
    %c0_i32_0 = arith.constant 0 : i32
    %c0_i32_1 = arith.constant 0 : i32
    return %c0_i32, %c0_i32_0 : i32, i32
  }
  func.func @transform_3(%arg0: i32) -> (i32, i32) {
    %c0_i32 = arith.constant 0 : i32
    %c0_i32_0 = arith.constant 0 : i32
    return %arg0, %c0_i32 : i32, i32
  }
}

module attributes {stable_mosaic.version = 11 : i64} {
  func.func @_dual_conv_stats_kernel(%arg0: i32, %arg1: memref<256x72xf32, #tpu.memory_space<vmem>>, %arg2: memref<72x8xf32, #tpu.memory_space<vmem>>, %arg3: memref<256x72xf32, #tpu.memory_space<vmem>>, %arg4: memref<72x8xf32, #tpu.memory_space<vmem>>, %arg5: memref<256x8xf32, #tpu.memory_space<vmem>>, %arg6: memref<1x8xf32, #tpu.memory_space<vmem>>, %arg7: memref<1x8xf32, #tpu.memory_space<vmem>>) attributes {dimension_semantics = [#tpu.dimension_semantics<arbitrary>], iteration_bounds = array<i64: 2>, scalar_prefetch = 0 : i64, scratch_operands = 0 : i64, tpu.core_type = #tpu.core_type<tc>, window_params = [{transform_indices = @transform_0, window_bounds = array<i64: 256, 72>}, {pipeline_mode = #tpu.pipeline_mode<synchronous>, transform_indices = @transform_1, window_bounds = array<i64: 72, 8>}, {transform_indices = @transform_2, window_bounds = array<i64: 256, 72>}, {pipeline_mode = #tpu.pipeline_mode<synchronous>, transform_indices = @transform_3, window_bounds = array<i64: 72, 8>}, {transform_indices = @transform_4, window_bounds = array<i64: 256, 8>}, {pipeline_mode = #tpu.pipeline_mode<synchronous>, transform_indices = @transform_5, window_bounds = array<i64: 1, 8>}, {pipeline_mode = #tpu.pipeline_mode<synchronous>, transform_indices = @transform_6, window_bounds = array<i64: 1, 8>}]} {
    %c0_i32 = arith.constant 0 : i32
    %0 = arith.cmpi eq, %arg0, %c0_i32 : i32
    %1 = arith.extui %0 : i1 to i32
    %c0_i32_0 = arith.constant 0 : i32
    %2 = arith.cmpi ne, %1, %c0_i32_0 : i32
    scf.if %2 {
      %cst_21 = arith.constant 0.000000e+00 : f32
      %22 = vector.broadcast %cst_21 : f32 to vector<1x8xf32>
      %c0_22 = arith.constant 0 : index
      %c0_23 = arith.constant 0 : index
      %23 = vector.load %arg6[%c0_22, %c0_23] : memref<1x8xf32, #tpu.memory_space<vmem>>, vector<1x8xf32>
      tpu.vector_store %arg6[%c0_22, %c0_23], %22 {strides = array<i32>} : memref<1x8xf32, #tpu.memory_space<vmem>>, vector<1x8xf32>,
      %cst_24 = arith.constant 0.000000e+00 : f32
      %24 = vector.broadcast %cst_24 : f32 to vector<1x8xf32>
      %c0_25 = arith.constant 0 : index
      %c0_26 = arith.constant 0 : index
      %25 = vector.load %arg7[%c0_25, %c0_26] : memref<1x8xf32, #tpu.memory_space<vmem>>, vector<1x8xf32>
      tpu.vector_store %arg7[%c0_25, %c0_26], %24 {strides = array<i32>} : memref<1x8xf32, #tpu.memory_space<vmem>>, vector<1x8xf32>,
    } else {
    }
    %c0 = arith.constant 0 : index
    %c0_1 = arith.constant 0 : index
    %3 = vector.load %arg1[%c0, %c0_1] : memref<256x72xf32, #tpu.memory_space<vmem>>, vector<256x72xf32>
    %c0_2 = arith.constant 0 : index
    %c0_3 = arith.constant 0 : index
    %4 = vector.load %arg2[%c0_2, %c0_3] : memref<72x8xf32, #tpu.memory_space<vmem>>, vector<72x8xf32>
    %cst = arith.constant dense<0.000000e+00> : vector<256x8xf32>
    %5 = tpu.matmul %3, %4, %cst {dimension_numbers = #tpu.dot_dimension_numbers<[1], [0], [0], [1], [0, 0, 1, 1], [], []>} : vector<256x72xf32>, vector<72x8xf32>, vector<256x8xf32> -> vector<256x8xf32>
    %c0_4 = arith.constant 0 : index
    %c0_5 = arith.constant 0 : index
    %6 = vector.load %arg3[%c0_4, %c0_5] : memref<256x72xf32, #tpu.memory_space<vmem>>, vector<256x72xf32>
    %c0_6 = arith.constant 0 : index
    %c0_7 = arith.constant 0 : index
    %7 = vector.load %arg4[%c0_6, %c0_7] : memref<72x8xf32, #tpu.memory_space<vmem>>, vector<72x8xf32>
    %cst_8 = arith.constant dense<0.000000e+00> : vector<256x8xf32>
    %8 = tpu.matmul %6, %7, %cst_8 {dimension_numbers = #tpu.dot_dimension_numbers<[1], [0], [0], [1], [0, 0, 1, 1], [], []>} : vector<256x72xf32>, vector<72x8xf32>, vector<256x8xf32> -> vector<256x8xf32>
    %9 = arith.addf %5, %8 : vector<256x8xf32>
    %c0_9 = arith.constant 0 : index
    %c0_10 = arith.constant 0 : index
    %10 = vector.load %arg5[%c0_9, %c0_10] : memref<256x8xf32, #tpu.memory_space<vmem>>, vector<256x8xf32>
    tpu.vector_store %arg5[%c0_9, %c0_10], %9 {strides = array<i32>} : memref<256x8xf32, #tpu.memory_space<vmem>>, vector<256x8xf32>,
    %c0_11 = arith.constant 0 : index
    %c0_12 = arith.constant 0 : index
    %11 = vector.load %arg6[%c0_11, %c0_12] : memref<1x8xf32, #tpu.memory_space<vmem>>, vector<1x8xf32>
    %cst_13 = arith.constant dense<0.000000e+00> : vector<8xf32>
    %12 = vector.multi_reduction <add>, %9, %cst_13 [0] : vector<256x8xf32> to vector<8xf32>
    %13 = vector.shape_cast %12 : vector<8xf32> to vector<1x8xf32>
    %14 = arith.addf %11, %13 : vector<1x8xf32>
    %c0_14 = arith.constant 0 : index
    %c0_15 = arith.constant 0 : index
    %15 = vector.load %arg6[%c0_14, %c0_15] : memref<1x8xf32, #tpu.memory_space<vmem>>, vector<1x8xf32>
    tpu.vector_store %arg6[%c0_14, %c0_15], %14 {strides = array<i32>} : memref<1x8xf32, #tpu.memory_space<vmem>>, vector<1x8xf32>,
    %c0_16 = arith.constant 0 : index
    %c0_17 = arith.constant 0 : index
    %16 = vector.load %arg7[%c0_16, %c0_17] : memref<1x8xf32, #tpu.memory_space<vmem>>, vector<1x8xf32>
    %17 = arith.mulf %9, %9 : vector<256x8xf32>
    %cst_18 = arith.constant dense<0.000000e+00> : vector<8xf32>
    %18 = vector.multi_reduction <add>, %17, %cst_18 [0] : vector<256x8xf32> to vector<8xf32>
    %19 = vector.shape_cast %18 : vector<8xf32> to vector<1x8xf32>
    %20 = arith.addf %16, %19 : vector<1x8xf32>
    %c0_19 = arith.constant 0 : index
    %c0_20 = arith.constant 0 : index
    %21 = vector.load %arg7[%c0_19, %c0_20] : memref<1x8xf32, #tpu.memory_space<vmem>>, vector<1x8xf32>
    tpu.vector_store %arg7[%c0_19, %c0_20], %20 {strides = array<i32>} : memref<1x8xf32, #tpu.memory_space<vmem>>, vector<1x8xf32>,
    return
  }
  func.func @transform_0(%arg0: i32) -> (i32, i32) {
    %c0_i32 = arith.constant 0 : i32
    %c0_i32_0 = arith.constant 0 : i32
    return %arg0, %c0_i32 : i32, i32
  }
  func.func @transform_1(%arg0: i32) -> (i32, i32) {
    %c0_i32 = arith.constant 0 : i32
    %c0_i32_0 = arith.constant 0 : i32
    %c0_i32_1 = arith.constant 0 : i32
    return %c0_i32, %c0_i32_0 : i32, i32
  }
  func.func @transform_2(%arg0: i32) -> (i32, i32) {
    %c0_i32 = arith.constant 0 : i32
    %c0_i32_0 = arith.constant 0 : i32
    return %arg0, %c0_i32 : i32, i32
  }
  func.func @transform_3(%arg0: i32) -> (i32, i32) {
    %c0_i32 = arith.constant 0 : i32
    %c0_i32_0 = arith.constant 0 : i32
    %c0_i32_1 = arith.constant 0 : i32
    return %c0_i32, %c0_i32_0 : i32, i32
  }
  func.func @transform_4(%arg0: i32) -> (i32, i32) {
    %c0_i32 = arith.constant 0 : i32
    %c0_i32_0 = arith.constant 0 : i32
    return %arg0, %c0_i32 : i32, i32
  }
  func.func @transform_5(%arg0: i32) -> (i32, i32) {
    %c0_i32 = arith.constant 0 : i32
    %c0_i32_0 = arith.constant 0 : i32
    %c0_i32_1 = arith.constant 0 : i32
    return %c0_i32, %c0_i32_0 : i32, i32
  }
  func.func @transform_6(%arg0: i32) -> (i32, i32) {
    %c0_i32 = arith.constant 0 : i32
    %c0_i32_0 = arith.constant 0 : i32
    %c0_i32_1 = arith.constant 0 : i32
    return %c0_i32, %c0_i32_0 : i32, i32
  }
}

module attributes {stable_mosaic.version = 11 : i64} {
  func.func @_dual_conv_stats_kernel(%arg0: i32, %arg1: memref<128x72xf32, #tpu.memory_space<vmem>>, %arg2: memref<72x8xf32, #tpu.memory_space<vmem>>, %arg3: memref<128x72xf32, #tpu.memory_space<vmem>>, %arg4: memref<72x8xf32, #tpu.memory_space<vmem>>, %arg5: memref<128x8xf32, #tpu.memory_space<vmem>>, %arg6: memref<1x8xf32, #tpu.memory_space<vmem>>, %arg7: memref<1x8xf32, #tpu.memory_space<vmem>>) attributes {dimension_semantics = [#tpu.dimension_semantics<arbitrary>], iteration_bounds = array<i64: 1>, scalar_prefetch = 0 : i64, scratch_operands = 0 : i64, tpu.core_type = #tpu.core_type<tc>, window_params = [{transform_indices = @transform_0, window_bounds = array<i64: 128, 72>}, {pipeline_mode = #tpu.pipeline_mode<synchronous>, transform_indices = @transform_1, window_bounds = array<i64: 72, 8>}, {transform_indices = @transform_2, window_bounds = array<i64: 128, 72>}, {pipeline_mode = #tpu.pipeline_mode<synchronous>, transform_indices = @transform_3, window_bounds = array<i64: 72, 8>}, {transform_indices = @transform_4, window_bounds = array<i64: 128, 8>}, {pipeline_mode = #tpu.pipeline_mode<synchronous>, transform_indices = @transform_5, window_bounds = array<i64: 1, 8>}, {pipeline_mode = #tpu.pipeline_mode<synchronous>, transform_indices = @transform_6, window_bounds = array<i64: 1, 8>}]} {
    %c0_i32 = arith.constant 0 : i32
    %0 = arith.cmpi eq, %arg0, %c0_i32 : i32
    %1 = arith.extui %0 : i1 to i32
    %c0_i32_0 = arith.constant 0 : i32
    %2 = arith.cmpi ne, %1, %c0_i32_0 : i32
    scf.if %2 {
      %cst_21 = arith.constant 0.000000e+00 : f32
      %22 = vector.broadcast %cst_21 : f32 to vector<1x8xf32>
      %c0_22 = arith.constant 0 : index
      %c0_23 = arith.constant 0 : index
      %23 = vector.load %arg6[%c0_22, %c0_23] : memref<1x8xf32, #tpu.memory_space<vmem>>, vector<1x8xf32>
      tpu.vector_store %arg6[%c0_22, %c0_23], %22 {strides = array<i32>} : memref<1x8xf32, #tpu.memory_space<vmem>>, vector<1x8xf32>,
      %cst_24 = arith.constant 0.000000e+00 : f32
      %24 = vector.broadcast %cst_24 : f32 to vector<1x8xf32>
      %c0_25 = arith.constant 0 : index
      %c0_26 = arith.constant 0 : index
      %25 = vector.load %arg7[%c0_25, %c0_26] : memref<1x8xf32, #tpu.memory_space<vmem>>, vector<1x8xf32>
      tpu.vector_store %arg7[%c0_25, %c0_26], %24 {strides = array<i32>} : memref<1x8xf32, #tpu.memory_space<vmem>>, vector<1x8xf32>,
    } else {
    }
    %c0 = arith.constant 0 : index
    %c0_1 = arith.constant 0 : index
    %3 = vector.load %arg1[%c0, %c0_1] : memref<128x72xf32, #tpu.memory_space<vmem>>, vector<128x72xf32>
    %c0_2 = arith.constant 0 : index
    %c0_3 = arith.constant 0 : index
    %4 = vector.load %arg2[%c0_2, %c0_3] : memref<72x8xf32, #tpu.memory_space<vmem>>, vector<72x8xf32>
    %cst = arith.constant dense<0.000000e+00> : vector<128x8xf32>
    %5 = tpu.matmul %3, %4, %cst {dimension_numbers = #tpu.dot_dimension_numbers<[1], [0], [0], [1], [0, 0, 1, 1], [], []>} : vector<128x72xf32>, vector<72x8xf32>, vector<128x8xf32> -> vector<128x8xf32>
    %c0_4 = arith.constant 0 : index
    %c0_5 = arith.constant 0 : index
    %6 = vector.load %arg3[%c0_4, %c0_5] : memref<128x72xf32, #tpu.memory_space<vmem>>, vector<128x72xf32>
    %c0_6 = arith.constant 0 : index
    %c0_7 = arith.constant 0 : index
    %7 = vector.load %arg4[%c0_6, %c0_7] : memref<72x8xf32, #tpu.memory_space<vmem>>, vector<72x8xf32>
    %cst_8 = arith.constant dense<0.000000e+00> : vector<128x8xf32>
    %8 = tpu.matmul %6, %7, %cst_8 {dimension_numbers = #tpu.dot_dimension_numbers<[1], [0], [0], [1], [0, 0, 1, 1], [], []>} : vector<128x72xf32>, vector<72x8xf32>, vector<128x8xf32> -> vector<128x8xf32>
    %9 = arith.addf %5, %8 : vector<128x8xf32>
    %c0_9 = arith.constant 0 : index
    %c0_10 = arith.constant 0 : index
    %10 = vector.load %arg5[%c0_9, %c0_10] : memref<128x8xf32, #tpu.memory_space<vmem>>, vector<128x8xf32>
    tpu.vector_store %arg5[%c0_9, %c0_10], %9 {strides = array<i32>} : memref<128x8xf32, #tpu.memory_space<vmem>>, vector<128x8xf32>,
    %c0_11 = arith.constant 0 : index
    %c0_12 = arith.constant 0 : index
    %11 = vector.load %arg6[%c0_11, %c0_12] : memref<1x8xf32, #tpu.memory_space<vmem>>, vector<1x8xf32>
    %cst_13 = arith.constant dense<0.000000e+00> : vector<8xf32>
    %12 = vector.multi_reduction <add>, %9, %cst_13 [0] : vector<128x8xf32> to vector<8xf32>
    %13 = vector.shape_cast %12 : vector<8xf32> to vector<1x8xf32>
    %14 = arith.addf %11, %13 : vector<1x8xf32>
    %c0_14 = arith.constant 0 : index
    %c0_15 = arith.constant 0 : index
    %15 = vector.load %arg6[%c0_14, %c0_15] : memref<1x8xf32, #tpu.memory_space<vmem>>, vector<1x8xf32>
    tpu.vector_store %arg6[%c0_14, %c0_15], %14 {strides = array<i32>} : memref<1x8xf32, #tpu.memory_space<vmem>>, vector<1x8xf32>,
    %c0_16 = arith.constant 0 : index
    %c0_17 = arith.constant 0 : index
    %16 = vector.load %arg7[%c0_16, %c0_17] : memref<1x8xf32, #tpu.memory_space<vmem>>, vector<1x8xf32>
    %17 = arith.mulf %9, %9 : vector<128x8xf32>
    %cst_18 = arith.constant dense<0.000000e+00> : vector<8xf32>
    %18 = vector.multi_reduction <add>, %17, %cst_18 [0] : vector<128x8xf32> to vector<8xf32>
    %19 = vector.shape_cast %18 : vector<8xf32> to vector<1x8xf32>
    %20 = arith.addf %16, %19 : vector<1x8xf32>
    %c0_19 = arith.constant 0 : index
    %c0_20 = arith.constant 0 : index
    %21 = vector.load %arg7[%c0_19, %c0_20] : memref<1x8xf32, #tpu.memory_space<vmem>>, vector<1x8xf32>
    tpu.vector_store %arg7[%c0_19, %c0_20], %20 {strides = array<i32>} : memref<1x8xf32, #tpu.memory_space<vmem>>, vector<1x8xf32>,
    return
  }
  func.func @transform_0(%arg0: i32) -> (i32, i32) {
    %c0_i32 = arith.constant 0 : i32
    %c0_i32_0 = arith.constant 0 : i32
    return %arg0, %c0_i32 : i32, i32
  }
  func.func @transform_1(%arg0: i32) -> (i32, i32) {
    %c0_i32 = arith.constant 0 : i32
    %c0_i32_0 = arith.constant 0 : i32
    %c0_i32_1 = arith.constant 0 : i32
    return %c0_i32, %c0_i32_0 : i32, i32
  }
  func.func @transform_2(%arg0: i32) -> (i32, i32) {
    %c0_i32 = arith.constant 0 : i32
    %c0_i32_0 = arith.constant 0 : i32
    return %arg0, %c0_i32 : i32, i32
  }
  func.func @transform_3(%arg0: i32) -> (i32, i32) {
    %c0_i32 = arith.constant 0 : i32
    %c0_i32_0 = arith.constant 0 : i32
    %c0_i32_1 = arith.constant 0 : i32
    return %c0_i32, %c0_i32_0 : i32, i32
  }
  func.func @transform_4(%arg0: i32) -> (i32, i32) {
    %c0_i32 = arith.constant 0 : i32
    %c0_i32_0 = arith.constant 0 : i32
    return %arg0, %c0_i32 : i32, i32
  }
  func.func @transform_5(%arg0: i32) -> (i32, i32) {
    %c0_i32 = arith.constant 0 : i32
    %c0_i32_0 = arith.constant 0 : i32
    %c0_i32_1 = arith.constant 0 : i32
    return %c0_i32, %c0_i32_0 : i32, i32
  }
  func.func @transform_6(%arg0: i32) -> (i32, i32) {
    %c0_i32 = arith.constant 0 : i32
    %c0_i32_0 = arith.constant 0 : i32
    %c0_i32_1 = arith.constant 0 : i32
    return %c0_i32, %c0_i32_0 : i32, i32
  }
}

module attributes {stable_mosaic.version = 11 : i64} {
  func.func @_final_fuse_kernel(%arg0: i32, %arg1: memref<256x8xf32, #tpu.memory_space<vmem>>, %arg2: memref<256x8xf32, #tpu.memory_space<vmem>>, %arg3: memref<8x8xf32, #tpu.memory_space<vmem>>, %arg4: memref<1x8xf32, #tpu.memory_space<vmem>>, %arg5: memref<1x8xf32, #tpu.memory_space<vmem>>, %arg6: memref<256x8xf32, #tpu.memory_space<vmem>>) attributes {dimension_semantics = [#tpu.dimension_semantics<parallel>], iteration_bounds = array<i64: 2>, scalar_prefetch = 0 : i64, scratch_operands = 0 : i64, tpu.core_type = #tpu.core_type<tc>, window_params = [{transform_indices = @transform_0, window_bounds = array<i64: 256, 8>}, {transform_indices = @transform_1, window_bounds = array<i64: 256, 8>}, {pipeline_mode = #tpu.pipeline_mode<synchronous>, transform_indices = @transform_2, window_bounds = array<i64: 8, 8>}, {pipeline_mode = #tpu.pipeline_mode<synchronous>, transform_indices = @transform_3, window_bounds = array<i64: 1, 8>}, {pipeline_mode = #tpu.pipeline_mode<synchronous>, transform_indices = @transform_4, window_bounds = array<i64: 1, 8>}, {transform_indices = @transform_5, window_bounds = array<i64: 256, 8>}]} {
    %c0 = arith.constant 0 : index
    %c0_0 = arith.constant 0 : index
    %0 = vector.load %arg2[%c0, %c0_0] : memref<256x8xf32, #tpu.memory_space<vmem>>, vector<256x8xf32>
    %c0_1 = arith.constant 0 : index
    %c0_2 = arith.constant 0 : index
    %1 = vector.load %arg3[%c0_1, %c0_2] : memref<8x8xf32, #tpu.memory_space<vmem>>, vector<8x8xf32>
    %cst = arith.constant dense<0.000000e+00> : vector<256x8xf32>
    %2 = tpu.matmul %0, %1, %cst {dimension_numbers = #tpu.dot_dimension_numbers<[1], [0], [0], [1], [0, 0, 1, 1], [], []>} : vector<256x8xf32>, vector<8x8xf32>, vector<256x8xf32> -> vector<256x8xf32>
    %c0_3 = arith.constant 0 : index
    %c0_4 = arith.constant 0 : index
    %3 = vector.load %arg1[%c0_3, %c0_4] : memref<256x8xf32, #tpu.memory_space<vmem>>, vector<256x8xf32>
    %c0_5 = arith.constant 0 : index
    %c0_6 = arith.constant 0 : index
    %4 = vector.load %arg4[%c0_5, %c0_6] : memref<1x8xf32, #tpu.memory_space<vmem>>, vector<1x8xf32>
    %5 = vector.broadcast %4 : vector<1x8xf32> to vector<256x8xf32>
    %6 = arith.mulf %3, %5 : vector<256x8xf32>
    %c0_7 = arith.constant 0 : index
    %c0_8 = arith.constant 0 : index
    %7 = vector.load %arg5[%c0_7, %c0_8] : memref<1x8xf32, #tpu.memory_space<vmem>>, vector<1x8xf32>
    %8 = vector.broadcast %7 : vector<1x8xf32> to vector<256x8xf32>
    %9 = arith.addf %6, %8 : vector<256x8xf32>
    %10 = arith.addf %9, %2 : vector<256x8xf32>
    %cst_9 = arith.constant 0.000000e+00 : f32
    %11 = vector.broadcast %cst_9 : f32 to vector<256x8xf32>
    %12 = arith.maximumf %10, %11 : vector<256x8xf32>
    %c0_10 = arith.constant 0 : index
    %c0_11 = arith.constant 0 : index
    %13 = vector.load %arg6[%c0_10, %c0_11] : memref<256x8xf32, #tpu.memory_space<vmem>>, vector<256x8xf32>
    tpu.vector_store %arg6[%c0_10, %c0_11], %12 {strides = array<i32>} : memref<256x8xf32, #tpu.memory_space<vmem>>, vector<256x8xf32>,
    return
  }
  func.func @transform_0(%arg0: i32) -> (i32, i32) {
    %c0_i32 = arith.constant 0 : i32
    %c0_i32_0 = arith.constant 0 : i32
    return %arg0, %c0_i32 : i32, i32
  }
  func.func @transform_1(%arg0: i32) -> (i32, i32) {
    %c0_i32 = arith.constant 0 : i32
    %c0_i32_0 = arith.constant 0 : i32
    return %arg0, %c0_i32 : i32, i32
  }
  func.func @transform_2(%arg0: i32) -> (i32, i32) {
    %c0_i32 = arith.constant 0 : i32
    %c0_i32_0 = arith.constant 0 : i32
    %c0_i32_1 = arith.constant 0 : i32
    return %c0_i32, %c0_i32_0 : i32, i32
  }
  func.func @transform_3(%arg0: i32) -> (i32, i32) {
    %c0_i32 = arith.constant 0 : i32
    %c0_i32_0 = arith.constant 0 : i32
    %c0_i32_1 = arith.constant 0 : i32
    return %c0_i32, %c0_i32_0 : i32, i32
  }
  func.func @transform_4(%arg0: i32) -> (i32, i32) {
    %c0_i32 = arith.constant 0 : i32
    %c0_i32_0 = arith.constant 0 : i32
    %c0_i32_1 = arith.constant 0 : i32
    return %c0_i32, %c0_i32_0 : i32, i32
  }
  func.func @transform_5(%arg0: i32) -> (i32, i32) {
    %c0_i32 = arith.constant 0 : i32
    %c0_i32_0 = arith.constant 0 : i32
    return %arg0, %c0_i32 : i32, i32
  }
}

</mosaic_0001>

<llo_original>
// kernel: tile.42
$region0: #{tile.42}
  #allocation0 [shape = 's32[1]{0}', space=sflag, size = 0x4, scoped, tag = 'scoped memory for tile.42']
  %s0 = inlined_call_operand.vmem [shape: f32[8], index: 0, kind: input, shape index: {}]
  %s1 = inlined_call_operand.vmem [shape: f32[16,8], index: 1, kind: output, shape index: {}]
  // Predicated region
  $region2: #{tile.42} parent=0 // pred_check
    _
  $region3: #{tile.42} parent=0 // pred_check_branch
    %3 = sbr.rel (0) target = $region5
  $region4: #{tile.42} parent=0 // pred_region
    _
  $region5: #{tile.42} parent=0 // pred_fallthru
    _
  %v4 = vld [vmem:[%s0] ss:$0 sm:$0xff]
  %5 = vst [vmem:[%s1] sm:$0xff] %v4
  %s6 = scalar_lea.vmem %s1, 8
  %7 = vst [vmem:[%s6] sm:$0xff] %v4

// kernel: tile.43
$region0: #{tile.43}
  %s0 = inlined_call_operand.vmem [shape: f32[16,8], index: 0, kind: input, shape index: {}]
  %s1 = inlined_call_operand.vmem [shape: f32[1,128], index: 1, kind: output, shape index: {}]
  $region1: #{tile.43} parent=0
    #allocation0 [shape = 'u8[4096]{0}', space=vmem, size = 0x1000, scoped, tag = 'scoped mem for output reshape']
    %v2 = vld [vmem:[%s0] sm:$0x1]
    %vm3 = vcmask 64512
    %4 = vst.msk [vmem:[#allocation0] sm:$0x1] %vm3, %v2
    %s5 = scalar_lea.vmem %s0, 15
    %v6 = vld [vmem:[%s5] sm:$0x1]
    %7 = vrot.lane.b32.xlu0 %v6, 120
    %v8 = vpop.permute.xlu0 %7
    %vm9 = vcmask 1048512
    %10 = vst.msk [vmem:[#allocation0] sm:$0x1] %vm9, %v8
    %s11 = scalar_lea.vmem %s0, 14
    %v12 = vld [vmem:[%s11] sm:$0x1]
    %13 = vrot.lane.b32.xlu0 %v12, 112
    %v14 = vpop.permute.xlu0 %13
    %vm15 = vcmask 982912
    %16 = vst.msk [vmem:[#allocation0] sm:$0x1] %vm15, %v14
    %s17 = scalar_lea.vmem %s0, 13
    %v18 = vld [vmem:[%s17] sm:$0x1]
    %19 = vrot.lane.b32.xlu0 %v18, 104
    %v20 = vpop.permute.xlu0 %19
    %vm21 = vcmask 917312
    %22 = vst.msk [vmem:[#allocation0] sm:$0x1] %vm21, %v20
    %s23 = scalar_lea.vmem %s0, 12
    %v24 = vld [vmem:[%s23] sm:$0x1]
    %25 = vrot.lane.b32.xlu0 %v24, 96
    %v26 = vpop.permute.xlu0 %25
    %vm27 = vcmask 851712
    %28 = vst.msk [vmem:[#allocation0] sm:$0x1] %vm27, %v26
    %s29 = scalar_lea.vmem %s0, 11
    %v30 = vld [vmem:[%s29] sm:$0x1]
    %31 = vrot.lane.b32.xlu0 %v30, 88
    %v32 = vpop.permute.xlu0 %31
    %vm33 = vcmask 786112
    %34 = vst.msk [vmem:[#allocation0] sm:$0x1] %vm33, %v32
    %s35 = scalar_lea.vmem %s0, 10
    %v36 = vld [vmem:[%s35] sm:$0x1]
    %37 = vrot.lane.b32.xlu0 %v36, 80
    %v38 = vpop.permute.xlu0 %37
    %vm39 = vcmask 720512
    %40 = vst.msk [vmem:[#allocation0] sm:$0x1] %vm39, %v38
    %s41 = scalar_lea.vmem %s0, 9
    %v42 = vld [vmem:[%s41] sm:$0x1]
    %43 = vrot.lane.b32.xlu0 %v42, 72
    %v44 = vpop.permute.xlu0 %43
    %vm45 = vcmask 654912
    %46 = vst.msk [vmem:[#allocation0] sm:$0x1] %vm45, %v44
    %s47 = scalar_lea.vmem %s0, 8
    %v48 = vld [vmem:[%s47] sm:$0x1]
    %49 = vrot.lane.b32.xlu0 %v48, 64
    %v50 = vpop.permute.xlu0 %49
    %vm51 = vcmask 589312
    %52 = vst.msk [vmem:[#allocation0] sm:$0x1] %vm51, %v50
    %s53 = scalar_lea.vmem %s0, 7
    %v54 = vld [vmem:[%s53] sm:$0x1]
    %55 = vrot.lane.b32.xlu0 %v54, 56
    %v56 = vpop.permute.xlu0 %55
    %vm57 = vcmask 523712
    %58 = vst.msk [vmem:[#allocation0] sm:$0x1] %vm57, %v56
    %s59 = scalar_lea.vmem %s0, 6
    %v60 = vld [vmem:[%s59] sm:$0x1]
    %61 = vrot.lane.b32.xlu0 %v60, 48
    %v62 = vpop.permute.xlu0 %61
    %vm63 = vcmask 458112
    %64 = vst.msk [vmem:[#allocation0] sm:$0x1] %vm63, %v62
    %s65 = scalar_lea.vmem %s0, 5
    %v66 = vld [vmem:[%s65] sm:$0x1]
    %67 = vrot.lane.b32.xlu0 %v66, 40
    %v68 = vpop.permute.xlu0 %67
    %vm69 = vcmask 392512
    %70 = vst.msk [vmem:[#allocation0] sm:$0x1] %vm69, %v68
    %s71 = scalar_lea.vmem %s0, 4
    %v72 = vld [vmem:[%s71] sm:$0x1]
    %73 = vrot.lane.b32.xlu0 %v72, 32
    %v74 = vpop.permute.xlu0 %73
    %vm75 = vcmask 326912
    %76 = vst.msk [vmem:[#allocation0] sm:$0x1] %vm75, %v74
    %s77 = scalar_lea.vmem %s0, 3
    %v78 = vld [vmem:[%s77] sm:$0x1]
    %79 = vrot.lane.b32.xlu0 %v78, 24
    %v80 = vpop.permute.xlu0 %79
    %vm81 = vcmask 261312
    %82 = vst.msk [vmem:[#allocation0] sm:$0x1] %vm81, %v80
    %s83 = scalar_lea.vmem %s0, 2
    %v84 = vld [vmem:[%s83] sm:$0x1]
    %85 = vrot.lane.b32.xlu0 %v84, 16
    %v86 = vpop.permute.xlu0 %85
    %vm87 = vcmask 195712
    %88 = vst.msk [vmem:[#allocation0] sm:$0x1] %vm87, %v86
    %s89 = scalar_lea.vmem %s0, 1
    %v90 = vld [vmem:[%s89] sm:$0x1]
    %91 = vrot.lane.b32.xlu0 %v90, 8
    %v92 = vpop.permute.xlu0 %91
    %vm93 = vcmask 130112
    %94 = vst.msk [vmem:[#allocation0] sm:$0x1] %vm93, %v92
    %s96 = sshllo.u32 0, 1
    %v98 = vld [vmem:[#allocation0] sm:%s96]
    %s99 = sshllo.u32 0, 1
    %100 = vst [vmem:[%s1] sm:%s99] %v98

// kernel: conv_2nV1_forward.12
$region0: #{conv_2nV1_forward.12}
  #allocation0 [shape = 'u32[]', space=smem, size = 0x4, offset = 0x4, fixed_abs, tag = 'smem constant byte address 0x4 - core index']
  #allocation1 [shape = 'u32[144,128]{1,0:T(1,128)}', space=vmem, size = 0x12000, scoped, tag = 'internal scratch']
  %s0 = inlined_call_operand.vmem [shape: f32[512,72], index: 0, kind: input, shape index: {}]
  %s1 = inlined_call_operand.vmem [shape: f32[72,8], index: 1, kind: input, shape index: {}]
  %s2 = inlined_call_operand.vmem [shape: f32[512,8], index: 2, kind: output, shape index: {0}]
  %s3 = inlined_call_operand.vmem [shape: f32[1,8], index: 3, kind: output, shape index: {1}]
  %s4 = inlined_call_operand.vmem [shape: f32[1,8], index: 4, kind: output, shape index: {2}]
  %5 = xla_tuple %s2, %s3, %s4
  %s6 = sld [smem:[#allocation0]]
  $region61: #{conv_2nV1_forward.12} parent=0
    _
  %s8 = ssub.s32 1, %s6
  %s9 = scalar_select 0, %s8, %s6
  loop: start=0, step=1, limit=4
  $region2: #{conv_2nV1_forward.12} parent=0 // loop_pre_header
    _
  $region3: #{conv_2nV1_forward.12} parent=0 // loop_header
    %s11 = sphi 0, %s15
    %p12 = scmp.ge.s32.totalorder %s11, 4
    %s21 = sphi 0, %s23
    %s24 = sphi 0, %s21
    %s25 = sphi 0, %s24
    %s41 = sphi 0, %s25
    %s45 = sphi 0, %s45
    %s47 = sphi 0, %s45
    %s48 = sphi 0, %s47
    %s62 = sphi 0, %s48
    %s68 = sphi 0, %s70
    %s71 = sphi 0, %s68
    %s72 = sphi 0, %s71
    %s88 = sphi 0, %s72
    %s92 = sphi 0, %s92
    %s94 = sphi 0, %s92
    %s95 = sphi 0, %s94
    %s109 = sphi 0, %s95
    %s113 = sphi 0, %s113
    %s115 = sphi 0, %s113
    %s116 = sphi 0, %s115
    %s130 = sphi 0, %s116
  $region4: #{conv_2nV1_forward.12} parent=0 // loop_header_branch
    %14 = sbr.rel (%p12) target = $region8
  $region5: #{conv_2nV1_forward.12} parent=0 // loop_body
    %s16 = ssub.s32 %s11, 1
    %s17 = ssub.s32 %s11, 2
    %s18 = sadd.s32 %s11, 1
    %s19 = ssub.s32 %s11, %s18
    %p20 = scmp.eq.s32.totalorder %s19, 0
    %s22 = sadd.s32 %s21, 1
    %s23 = scalar_select %p20, %s21, %s22
    %p26 = pneg %p20
    %p27 = scmp.eq.s32.totalorder %s11, 1
    %p28 = por %p26, %p27
    %p29 = scmp.ne.s32.totalorder %s21, %s24
    %p30 = scmp.eq.s32.totalorder %s11, 0
    %p31 = por %p29, %p30
    %p32 = scmp.ne.s32.totalorder %s21, %s24
    %p33 = scmp.eq.s32.totalorder %s16, 1
    %p34 = por %p32, %p33
    %p35 = scmp.ne.s32.totalorder %s24, %s25
    %p36 = scmp.eq.s32.totalorder %s16, 0
    %p37 = por %p35, %p36
    %p38 = scmp.ne.s32.totalorder %s24, %s25
    %p39 = scmp.eq.s32.totalorder %s17, 1
    %p40 = por %p38, %p39
    %p42 = scmp.ne.s32.totalorder %s25, %s41
    %p43 = scmp.eq.s32.totalorder %s17, 0
    %p44 = por %p42, %p43
    %s46 = sadd.s32 %s45, 1
    %p49 = scmp.eq.s32.totalorder %s11, 1
    %p50 = scmp.ne.s32.totalorder %s45, %s47
    %p51 = scmp.eq.s32.totalorder %s11, 0
    %p52 = por %p50, %p51
    %p53 = scmp.ne.s32.totalorder %s45, %s47
    %p54 = scmp.eq.s32.totalorder %s16, 1
    %p55 = por %p53, %p54
    %p56 = scmp.ne.s32.totalorder %s47, %s48
    %p57 = scmp.eq.s32.totalorder %s16, 0
    %p58 = por %p56, %p57
    %p59 = scmp.ne.s32.totalorder %s47, %s48
    %p60 = scmp.eq.s32.totalorder %s17, 1
    %p61 = por %p59, %p60
    %p63 = scmp.ne.s32.totalorder %s48, %s62
    %p64 = scmp.eq.s32.totalorder %s17, 0
    %p65 = por %p63, %p64
    %s66 = ssub.s32 %s11, %s18
    %p67 = scmp.eq.s32.totalorder %s66, 0
    %s69 = sadd.s32 %s68, 1
    %s70 = scalar_select %p67, %s68, %s69
    %p73 = pneg %p67
    %p74 = scmp.eq.s32.totalorder %s11, 1
    %p75 = por %p73, %p74
    %p76 = scmp.ne.s32.totalorder %s68, %s71
    %p77 = scmp.eq.s32.totalorder %s11, 0
    %p78 = por %p76, %p77
    %p79 = scmp.ne.s32.totalorder %s68, %s71
    %p80 = scmp.eq.s32.totalorder %s16, 1
    %p81 = por %p79, %p80
    %p82 = scmp.ne.s32.totalorder %s71, %s72
    %p83 = scmp.eq.s32.totalorder %s16, 0
    %p84 = por %p82, %p83
    %p85 = scmp.ne.s32.totalorder %s71, %s72
    %p86 = scmp.eq.s32.totalorder %s17, 1
    %p87 = por %p85, %p86
    %p89 = scmp.ne.s32.totalorder %s72, %s88
    %p90 = scmp.eq.s32.totalorder %s17, 0
    %p91 = por %p89, %p90
    %s93 = sadd.s32 %s92, 1
    %p96 = scmp.eq.s32.totalorder %s11, 1
    %p97 = scmp.ne.s32.totalorder %s92, %s94
    %p98 = scmp.eq.s32.totalorder %s11, 0
    %p99 = por %p97, %p98
    %p100 = scmp.ne.s32.totalorder %s92, %s94
    %p101 = scmp.eq.s32.totalorder %s16, 1
    %p102 = por %p100, %p101
    %p103 = scmp.ne.s32.totalorder %s94, %s95
    %p104 = scmp.eq.s32.totalorder %s16, 0
    %p105 = por %p103, %p104
    %p106 = scmp.ne.s32.totalorder %s94, %s95
    %p107 = scmp.eq.s32.totalorder %s17, 1
    %p108 = por %p106, %p107
    %p110 = scmp.ne.s32.totalorder %s95, %s109
    %p111 = scmp.eq.s32.totalorder %s17, 0
    %p112 = por %p110, %p111
    %s114 = sadd.s32 %s113, 1
    %p117 = scmp.eq.s32.totalorder %s11, 1
    %p118 = scmp.ne.s32.totalorder %s113, %s115
    %p119 = scmp.eq.s32.totalorder %s11, 0
    %p120 = por %p118, %p119
    %p121 = scmp.ne.s32.totalorder %s113, %s115
    %p122 = scmp.eq.s32.totalorder %s16, 1
    %p123 = por %p121, %p122
    %p124 = scmp.ne.s32.totalorder %s115, %s116
    %p125 = scmp.eq.s32.totalorder %s16, 0
    %p126 = por %p124, %p125
    %p127 = scmp.ne.s32.totalorder %s115, %s116
    %p128 = scmp.eq.s32.totalorder %s17, 1
    %p129 = por %p127, %p128
    %p131 = scmp.ne.s32.totalorder %s116, %s130
    %p132 = scmp.eq.s32.totalorder %s17, 0
    %p133 = por %p131, %p132
    %p134 = scmp.le.s32.totalorder 1, %s11
    %p135 = scmp.lt.s32.totalorder %s11, 3
    %p136 = pnand %p134, %p135
    %p137 = pneg %p136
    // Predicated region
    $region9: #{conv_2nV1_forward.12} parent=5 // pred_check
      _
    $region10: #{conv_2nV1_forward.12} parent=5 // pred_check_branch
      %139 = sbr.rel (%p136) target = $region12
    $region11: #{conv_2nV1_forward.12} parent=5 // pred_region
      %s140 = ssub.s32 %s11, 1
      // Predicated region
      $region13: #{conv_2nV1_forward.12} parent=11 // pred_check
        %p141 = pneg %p58
      $region14: #{conv_2nV1_forward.12} parent=11 // pred_check_branch
        %143 = sbr.rel (%p141) target = $region16
      $region15: #{conv_2nV1_forward.12} parent=11 // pred_region
        _
      $region16: #{conv_2nV1_forward.12} parent=11 // pred_fallthru
        _
    $region12: #{conv_2nV1_forward.12} parent=5 // pred_fallthru
      _
    %p144 = scmp.lt.s32.totalorder %s11, 2
    // Predicated region
    $region17: #{conv_2nV1_forward.12} parent=5 // pred_check
      %p145 = pneg %p144
    $region18: #{conv_2nV1_forward.12} parent=5 // pred_check_branch
      %147 = sbr.rel (%p145) target = $region20
    $region19: #{conv_2nV1_forward.12} parent=5 // pred_region
      // Predicated region
      $region21: #{conv_2nV1_forward.12} parent=19 // pred_check
        %p148 = pneg %p31
      $region22: #{conv_2nV1_forward.12} parent=19 // pred_check_branch
        %150 = sbr.rel (%p148) target = $region24
      $region23: #{conv_2nV1_forward.12} parent=19 // pred_region
        %s151 = smul.u32 32, %s11
        %p152 = scmp.lt.s32.totalorder %s151, 63
        %s153 = scalar_select %p152, %s151, 63
        %s154 = smul.addr %s153, 8
        %s155 = scalar_lea.vmem %s0, %s154
        %s156 = smul.u32 32, %s11
      $region24: #{conv_2nV1_forward.12} parent=19 // pred_fallthru
        _
    $region20: #{conv_2nV1_forward.12} parent=5 // pred_fallthru
      _
    %p157 = scmp.le.s32.totalorder 1, %s11
    %p158 = scmp.lt.s32.totalorder %s11, 3
    %p159 = pnand %p157, %p158
    %p160 = pneg %p159
    // Predicated region
    $region25: #{conv_2nV1_forward.12} parent=5 // pred_check
      _
    $region26: #{conv_2nV1_forward.12} parent=5 // pred_check_branch
      %162 = sbr.rel (%p159) target = $region28
    $region27: #{conv_2nV1_forward.12} parent=5 // pred_region
      %s163 = ssub.s32 %s11, 1
      %s164 = smul.u32 32, %s16
      %p165 = scmp.lt.s32.totalorder %s164, 63
      %s166 = scalar_select %p165, %s164, 63
      %s167 = smul.addr %s166, 8
      %s168 = scalar_lea.vmem %s0, %s167
      %p169 = pneg %p37
      %p170 = pneg %p34
      %p171 = pneg %p58
      %p172 = pneg %p55
      %p173 = pneg %p84
      %p174 = pneg %p81
      %s175 = smul.u32 32, %s16
      %p176 = scmp.lt.s32.totalorder %s175, 63
      %s177 = scalar_select %p176, %s175, 63
      %s178 = smul.addr %s177, 8
      %s179 = scalar_lea.vmem %s2, %s178
      %p180 = pneg %p105
      %p181 = pneg %p102
      %p182 = pneg %p126
      %p183 = pneg %p123
      %s184 = smul.u32 32, %s16
      %p185 = scmp.lt.s32.totalorder %s184, 63
      %s186 = scalar_select %p185, %s184, 63
      %s187 = smul.addr %s186, 8
      %s188 = scalar_lea.vmem %s0, %s187
      %s189 = smul.u32 32, %s16
      %s190 = smul.u32 32, %s16
      %p191 = scmp.lt.s32.totalorder %s190, 63
      %s192 = scalar_select %p191, %s190, 63
      %s193 = smul.addr %s192, 8
      %s194 = scalar_lea.vmem %s2, %s193
      %s195 = smul.u32 32, %s16
      %p196 = scmp.eq.s32.totalorder %s16, 0
      // Predicated region
      $region29: #{conv_2nV1_forward.12} parent=27 // pred_check
        %p197 = pneg %p196
      $region30: #{conv_2nV1_forward.12} parent=27 // pred_check_branch
        %199 = sbr.rel (%p197) target = $region32
      $region31: #{conv_2nV1_forward.12} parent=27 // pred_region
        %vm200 = vcmask 57344
        %201 = vst.msk [vmem:[%s3] sm:$0x1] %vm200, 0.0
        %202 = vst.msk [vmem:[%s4] sm:$0x1] %vm200, 0.0
      $region32: #{conv_2nV1_forward.12} parent=27 // pred_fallthru
        _
      %v203 = vld [vmem:[%s188] sm:$0xff]
      %v204 = vld [vmem:[%s188 + $0x8] sm:$0xff]
      %v205 = vld [vmem:[%s188 + $0x10] sm:$0xff]
      %v206 = vld [vmem:[%s188 + $0x18] sm:$0xff]
      %v207 = vld [vmem:[%s188 + $0x20] sm:$0xff]
      %v208 = vld [vmem:[%s188 + $0x28] sm:$0xff]
      %v209 = vld [vmem:[%s188 + $0x30] sm:$0xff]
      %v210 = vld [vmem:[%s188 + $0x38] sm:$0xff]
      %v211 = vld [vmem:[%s188 + $0x40] sm:$0xff]
      %v212 = vld [vmem:[%s188 + $0x48] sm:$0xff]
      %v213 = vld [vmem:[%s188 + $0x50] sm:$0xff]
      %v214 = vld [vmem:[%s188 + $0x58] sm:$0xff]
      %v215 = vld [vmem:[%s188 + $0x60] sm:$0xff]
      %v216 = vld [vmem:[%s188 + $0x68] sm:$0xff]
      %v217 = vld [vmem:[%s188 + $0x70] sm:$0xff]
      %v218 = vld [vmem:[%s188 + $0x78] sm:$0xff]
      %v219 = vld [vmem:[%s188 + $0x80] sm:$0xff]
      %v220 = vld [vmem:[%s188 + $0x88] sm:$0xff]
      %v221 = vld [vmem:[%s188 + $0x90] sm:$0xff]
      %v222 = vld [vmem:[%s188 + $0x98] sm:$0xff]
      %v223 = vld [vmem:[%s188 + $0xa0] sm:$0xff]
      %v224 = vld [vmem:[%s188 + $0xa8] sm:$0xff]
      %v225 = vld [vmem:[%s188 + $0xb0] sm:$0xff]
      %v226 = vld [vmem:[%s188 + $0xb8] sm:$0xff]
      %v227 = vld [vmem:[%s188 + $0xc0] sm:$0xff]
      %v228 = vld [vmem:[%s188 + $0xc8] sm:$0xff]
      %v229 = vld [vmem:[%s188 + $0xd0] sm:$0xff]
      %v230 = vld [vmem:[%s188 + $0xd8] sm:$0xff]
      %v231 = vld [vmem:[%s188 + $0xe0] sm:$0xff]
      %v232 = vld [vmem:[%s188 + $0xe8] sm:$0xff]
      %v233 = vld [vmem:[%s188 + $0xf0] sm:$0xff]
      %v234 = vld [vmem:[%s188 + $0xf8] sm:$0xff]
      %v235 = vld [vmem:[%s1] sm:$0xff]
      %v236 = vld [vmem:[%s1 + $0x8] sm:$0xff]
      %v237 = vld [vmem:[%s1 + $0x10] sm:$0xff]
      %v238 = vld [vmem:[%s1 + $0x18] sm:$0xff]
      %v239 = vld [vmem:[%s1 + $0x20] sm:$0xff]
      %v240 = vld [vmem:[%s1 + $0x28] sm:$0xff]
      %v241 = vld [vmem:[%s1 + $0x30] sm:$0xff]
      %v242 = vld [vmem:[%s1 + $0x38] sm:$0xff]
      %v243 = vld [vmem:[%s1 + $0x40] sm:$0xff]
      %vm244 = vcmask 588800
      %v246 = vsel %vm244, %v203, 0
      %v249 = vsel %vm244, %v204, 0
      %v252 = vsel %vm244, %v205, 0
      %v255 = vsel %vm244, %v206, 0
      %v258 = vsel %vm244, %v207, 0
      %v261 = vsel %vm244, %v208, 0
      %v264 = vsel %vm244, %v209, 0
      %v267 = vsel %vm244, %v210, 0
      %v270 = vsel %vm244, %v211, 0
      %v273 = vsel %vm244, %v212, 0
      %v276 = vsel %vm244, %v213, 0
      %v279 = vsel %vm244, %v214, 0
      %v282 = vsel %vm244, %v215, 0
      %v285 = vsel %vm244, %v216, 0
      %v288 = vsel %vm244, %v217, 0
      %v291 = vsel %vm244, %v218, 0
      %v294 = vsel %vm244, %v219, 0
      %v297 = vsel %vm244, %v220, 0
      %v300 = vsel %vm244, %v221, 0
      %v303 = vsel %vm244, %v222, 0
      %v306 = vsel %vm244, %v223, 0
      %v309 = vsel %vm244, %v224, 0
      %v312 = vsel %vm244, %v225, 0
      %v315 = vsel %vm244, %v226, 0
      %v318 = vsel %vm244, %v227, 0
      %v321 = vsel %vm244, %v228, 0
      %v324 = vsel %vm244, %v229, 0
      %v327 = vsel %vm244, %v230, 0
      %v330 = vsel %vm244, %v231, 0
      %v333 = vsel %vm244, %v232, 0
      %v336 = vsel %vm244, %v233, 0
      %v339 = vsel %vm244, %v234, 0
      %341 = vmatprep.subr.mxu0 0.0
      %342 = vmatpush1.msra.mxu0 %v235
      %343 = vmatprep.subr.mxu0 0.0
      %344 = vmatpush1.msra.mxu0 %v236
      %345 = vmatprep.subr.mxu0 0.0
      %346 = vmatpush1.msra.mxu0 %v237
      %347 = vmatprep.subr.mxu0 0.0
      %348 = vmatpush1.msra.mxu0 %v238
      %349 = vmatprep.subr.mxu0 0.0
      %350 = vmatpush1.msra.mxu0 %v239
      %351 = vmatprep.subr.mxu0 0.0
      %352 = vmatpush1.msra.mxu0 %v240
      %353 = vmatprep.subr.mxu0 0.0
      %354 = vmatpush1.msra.mxu0 %v241
      %355 = vmatprep.subr.mxu0 0.0
      %356 = vmatpush1.msra.mxu0 %v242
      %357 = vmatprep.subr.mxu0 0.0
      %358 = vmatpush1.msra.mxu0 %v243
      %359 = vmatprep.subr.mxu0 0.0
      %360 = vmatpush1.msra.mxu0 0.0
      %361 = vmatprep.subr.mxu0 0.0
      %362 = vmatpush1.msra.mxu0 0.0
      %363 = vmatprep.subr.mxu0 0.0
      %364 = vmatpush1.msra.mxu0 0.0
      %365 = vmatprep.subr.mxu0 0.0
      %366 = vmatpush1.msra.mxu0 0.0
      %367 = vmatprep.subr.mxu0 0.0
      %368 = vmatpush1.msra.mxu0 0.0
      %369 = vmatprep.subr.mxu0 0.0
      %370 = vmatpush1.msra.mxu0 0.0
      %371 = vmatprep.subr.mxu0 0.0
      %372 = vmatpush1.msra.mxu0 0.0
      %373 = vmatprep.subr.mxu0 0.0
      %374 = vmatpush1.msra.mxu0 0.0
      %375 = vmatprep.subr.mxu0 0.0
      %376 = vmatpush1.msra.mxu0 0.0
      %377 = vmatprep.subr.mxu0 0.0
      %378 = vmatpush1.msra.mxu0 0.0
      %379 = vmatprep.subr.mxu0 0.0
      %380 = vmatpush1.msra.mxu0 0.0
      %381 = vmatprep.subr.mxu0 0.0
      %382 = vmatpush1.msra.mxu0 0.0
      %383 = vmatprep.subr.mxu0 0.0
      %384 = vmatpush1.msra.mxu0 0.0
      %385 = vmatprep.subr.mxu0 0.0
      %386 = vmatpush1.msra.mxu0 0.0
      %387 = vmatprep.subr.mxu0 0.0
      %388 = vmatpush1.msra.mxu0 0.0
      %389 = vmatprep.subr.mxu0 0.0
      %390 = vmatpush1.msra.mxu0 0.0
      %391 = vmatprep.subr.mxu0 0.0
      %392 = vmatpush1.msra.mxu0 0.0
      %393 = vmatprep.subr.mxu0 0.0
      %394 = vmatpush1.msra.mxu0 0.0
      %395 = vmatprep.subr.mxu0 0.0
      %396 = vmatpush1.msra.mxu0 0.0
      %397 = vmatprep.subr.mxu0 0.0
      %398 = vmatpush1.msra.mxu0 0.0
      %399 = vmatprep.subr.mxu0 0.0
      %400 = vmatpush1.msra.mxu0 0.0
      %401 = vmatprep.subr.mxu0 0.0
      %402 = vmatpush1.msra.mxu0 0.0
      %403 = vmatprep.subr.mxu0 0.0
      %404 = vmatpush1.msra.mxu0 0.0
      %405 = vmatprep.mubr.f32.mxu0 0.0
      %406 = vmatmul.mubr.f32.gmra.mrb[0].mxu0 %v246
      %v407 = vpop.f32.mrb[0].mxu0
      %v408 = vadd.f32 0.0, %v407
      %v409 = vpop.f32.mrb[0].mxu0
      %410 = vmatprep.mubr.f32.mxu0 0.0
      %411 = vmatmul.mubr.f32.gmra.mrb[0].mxu0 %v249
      %v412 = vpop.f32.mrb[0].mxu0
      %v413 = vadd.f32 0.0, %v412
      %v414 = vpop.f32.mrb[0].mxu0
      %415 = vmatprep.mubr.f32.mxu0 0.0
      %416 = vmatmul.mubr.f32.gmra.mrb[0].mxu0 %v252
      %v417 = vpop.f32.mrb[0].mxu0
      %v418 = vadd.f32 0.0, %v417
      %v419 = vpop.f32.mrb[0].mxu0
      %420 = vmatprep.mubr.f32.mxu0 0.0
      %421 = vmatmul.mubr.f32.gmra.mrb[0].mxu0 %v255
      %v422 = vpop.f32.mrb[0].mxu0
      %v423 = vadd.f32 0.0, %v422
      %v424 = vpop.f32.mrb[0].mxu0
      %425 = vmatprep.mubr.f32.mxu0 0.0
      %426 = vmatmul.mubr.f32.gmra.mrb[0].mxu0 %v258
      %v427 = vpop.f32.mrb[0].mxu0
      %v428 = vadd.f32 0.0, %v427
      %v429 = vpop.f32.mrb[0].mxu0
      %430 = vmatprep.mubr.f32.mxu0 0.0
      %431 = vmatmul.mubr.f32.gmra.mrb[0].mxu0 %v261
      %v432 = vpop.f32.mrb[0].mxu0
      %v433 = vadd.f32 0.0, %v432
      %v434 = vpop.f32.mrb[0].mxu0
      %435 = vmatprep.mubr.f32.mxu0 0.0
      %436 = vmatmul.mubr.f32.gmra.mrb[0].mxu0 %v264
      %v437 = vpop.f32.mrb[0].mxu0
      %v438 = vadd.f32 0.0, %v437
      %v439 = vpop.f32.mrb[0].mxu0
      %440 = vmatprep.mubr.f32.mxu0 0.0
      %441 = vmatmul.mubr.f32.gmra.mrb[0].mxu0 %v267
      %v442 = vpop.f32.mrb[0].mxu0
      %v443 = vadd.f32 0.0, %v442
      %v444 = vpop.f32.mrb[0].mxu0
      %445 = vmatprep.mubr.f32.mxu0 0.0
      %446 = vmatmul.mubr.f32.gmra.mrb[0].mxu0 %v270
      %v447 = vpop.f32.mrb[0].mxu0
      %v448 = vadd.f32 0.0, %v447
      %v449 = vpop.f32.mrb[0].mxu0
      %450 = vmatprep.mubr.f32.mxu0 0.0
      %451 = vmatmul.mubr.f32.gmra.mrb[0].mxu0 %v273
      %v452 = vpop.f32.mrb[0].mxu0
      %v453 = vadd.f32 0.0, %v452
      %v454 = vpop.f32.mrb[0].mxu0
      %455 = vmatprep.mubr.f32.mxu0 0.0
      %456 = vmatmul.mubr.f32.gmra.mrb[0].mxu0 %v276
      %v457 = vpop.f32.mrb[0].mxu0
      %v458 = vadd.f32 0.0, %v457
      %v459 = vpop.f32.mrb[0].mxu0
      %460 = vmatprep.mubr.f32.mxu0 0.0
      %461 = vmatmul.mubr.f32.gmra.mrb[0].mxu0 %v279
      %v462 = vpop.f32.mrb[0].mxu0
      %v463 = vadd.f32 0.0, %v462
      %v464 = vpop.f32.mrb[0].mxu0
      %465 = vmatprep.mubr.f32.mxu0 0.0
      %466 = vmatmul.mubr.f32.gmra.mrb[0].mxu0 %v282
      %v467 = vpop.f32.mrb[0].mxu0
      %v468 = vadd.f32 0.0, %v467
      %v469 = vpop.f32.mrb[0].mxu0
      %470 = vmatprep.mubr.f32.mxu0 0.0
      %471 = vmatmul.mubr.f32.gmra.mrb[0].mxu0 %v285
      %v472 = vpop.f32.mrb[0].mxu0
      %v473 = vadd.f32 0.0, %v472
      %v474 = vpop.f32.mrb[0].mxu0
      %475 = vmatprep.mubr.f32.mxu0 0.0
      %476 = vmatmul.mubr.f32.gmra.mrb[0].mxu0 %v288
      %v477 = vpop.f32.mrb[0].mxu0
      %v478 = vadd.f32 0.0, %v477
      %v479 = vpop.f32.mrb[0].mxu0
      %480 = vmatprep.mubr.f32.mxu0 0.0
      %481 = vmatmul.mubr.f32.gmra.mrb[0].mxu0 %v291
      %v482 = vpop.f32.mrb[0].mxu0
      %v483 = vadd.f32 0.0, %v482
      %v484 = vpop.f32.mrb[0].mxu0
      %485 = vmatprep.mubr.f32.mxu0 0.0
      %486 = vmatmul.mubr.f32.gmra.mrb[0].mxu0 %v294
      %v487 = vpop.f32.mrb[0].mxu0
      %v488 = vadd.f32 0.0, %v487
      %v489 = vpop.f32.mrb[0].mxu0
      %490 = vmatprep.mubr.f32.mxu0 0.0
      %491 = vmatmul.mubr.f32.gmra.mrb[0].mxu0 %v297
      %v492 = vpop.f32.mrb[0].mxu0
      %v493 = vadd.f32 0.0, %v492
      %v494 = vpop.f32.mrb[0].mxu0
      %495 = vmatprep.mubr.f32.mxu0 0.0
      %496 = vmatmul.mubr.f32.gmra.mrb[0].mxu0 %v300
      %v497 = vpop.f32.mrb[0].mxu0
      %v498 = vadd.f32 0.0, %v497
      %v499 = vpop.f32.mrb[0].mxu0
      %500 = vmatprep.mubr.f32.mxu0 0.0
      %501 = vmatmul.mubr.f32.gmra.mrb[0].mxu0 %v303
      %v502 = vpop.f32.mrb[0].mxu0
      %v503 = vadd.f32 0.0, %v502
      %v504 = vpop.f32.mrb[0].mxu0
      %505 = vmatprep.mubr.f32.mxu0 0.0
      %506 = vmatmul.mubr.f32.gmra.mrb[0].mxu0 %v306
      %v507 = vpop.f32.mrb[0].mxu0
      %v508 = vadd.f32 0.0, %v507
      %v509 = vpop.f32.mrb[0].mxu0
      %510 = vmatprep.mubr.f32.mxu0 0.0
      %511 = vmatmul.mubr.f32.gmra.mrb[0].mxu0 %v309
      %v512 = vpop.f32.mrb[0].mxu0
      %v513 = vadd.f32 0.0, %v512
      %v514 = vpop.f32.mrb[0].mxu0
      %515 = vmatprep.mubr.f32.mxu0 0.0
      %516 = vmatmul.mubr.f32.gmra.mrb[0].mxu0 %v312
      %v517 = vpop.f32.mrb[0].mxu0
      %v518 = vadd.f32 0.0, %v517
      %v519 = vpop.f32.mrb[0].mxu0
      %520 = vmatprep.mubr.f32.mxu0 0.0
      %521 = vmatmul.mubr.f32.gmra.mrb[0].mxu0 %v315
      %v522 = vpop.f32.mrb[0].mxu0
      %v523 = vadd.f32 0.0, %v522
      %v524 = vpop.f32.mrb[0].mxu0
      %525 = vmatprep.mubr.f32.mxu0 0.0
      %526 = vmatmul.mubr.f32.gmra.mrb[0].mxu0 %v318
      %v527 = vpop.f32.mrb[0].mxu0
      %v528 = vadd.f32 0.0, %v527
      %v529 = vpop.f32.mrb[0].mxu0
      %530 = vmatprep.mubr.f32.mxu0 0.0
      %531 = vmatmul.mubr.f32.gmra.mrb[0].mxu0 %v321
      %v532 = vpop.f32.mrb[0].mxu0
      %v533 = vadd.f32 0.0, %v532
      %v534 = vpop.f32.mrb[0].mxu0
      %535 = vmatprep.mubr.f32.mxu0 0.0
      %536 = vmatmul.mubr.f32.gmra.mrb[0].mxu0 %v324
      %v537 = vpop.f32.mrb[0].mxu0
      %v538 = vadd.f32 0.0, %v537
      %v539 = vpop.f32.mrb[0].mxu0
      %540 = vmatprep.mubr.f32.mxu0 0.0
      %541 = vmatmul.mubr.f32.gmra.mrb[0].mxu0 %v327
      %v542 = vpop.f32.mrb[0].mxu0
      %v543 = vadd.f32 0.0, %v542
      %v544 = vpop.f32.mrb[0].mxu0
      %545 = vmatprep.mubr.f32.mxu0 0.0
      %546 = vmatmul.mubr.f32.gmra.mrb[0].mxu0 %v330
      %v547 = vpop.f32.mrb[0].mxu0
      %v548 = vadd.f32 0.0, %v547
      %v549 = vpop.f32.mrb[0].mxu0
      %550 = vmatprep.mubr.f32.mxu0 0.0
      %551 = vmatmul.mubr.f32.gmra.mrb[0].mxu0 %v333
      %v552 = vpop.f32.mrb[0].mxu0
      %v553 = vadd.f32 0.0, %v552
      %v554 = vpop.f32.mrb[0].mxu0
      %555 = vmatprep.mubr.f32.mxu0 0.0
      %556 = vmatmul.mubr.f32.gmra.mrb[0].mxu0 %v336
      %v557 = vpop.f32.mrb[0].mxu0
      %v558 = vadd.f32 0.0, %v557
      %v559 = vpop.f32.mrb[0].mxu0
      %560 = vmatprep.mubr.f32.mxu0 0.0
      %561 = vmatmul.mubr.f32.gmra.mrb[0].mxu0 %v339
      %v562 = vpop.f32.mrb[0].mxu0
      %v563 = vadd.f32 0.0, %v562
      %v564 = vpop.f32.mrb[0].mxu0
      %565 = vdwg.mxu0
      %vm566 = vcmask 64512
      %567 = vst.msk [vmem:[%s194] sm:$0xff] %vm566, %v408
      %568 = vst.msk [vmem:[%s194 + $0x8] sm:$0xff] %vm566, %v413
      %569 = vst.msk [vmem:[%s194 + $0x10] sm:$0xff] %vm566, %v418
      %570 = vst.msk [vmem:[%s194 + $0x18] sm:$0xff] %vm566, %v423
      %571 = vst.msk [vmem:[%s194 + $0x20] sm:$0xff] %vm566, %v428
      %572 = vst.msk [vmem:[%s194 + $0x28] sm:$0xff] %vm566, %v433
      %573 = vst.msk [vmem:[%s194 + $0x30] sm:$0xff] %vm566, %v438
      %574 = vst.msk [vmem:[%s194 + $0x38] sm:$0xff] %vm566, %v443
      %575 = vst.msk [vmem:[%s194 + $0x40] sm:$0xff] %vm566, %v448
      %576 = vst.msk [vmem:[%s194 + $0x48] sm:$0xff] %vm566, %v453
      %577 = vst.msk [vmem:[%s194 + $0x50] sm:$0xff] %vm566, %v458
      %578 = vst.msk [vmem:[%s194 + $0x58] sm:$0xff] %vm566, %v463
      %579 = vst.msk [vmem:[%s194 + $0x60] sm:$0xff] %vm566, %v468
      %580 = vst.msk [vmem:[%s194 + $0x68] sm:$0xff] %vm566, %v473
      %581 = vst.msk [vmem:[%s194 + $0x70] sm:$0xff] %vm566, %v478
      %582 = vst.msk [vmem:[%s194 + $0x78] sm:$0xff] %vm566, %v483
      %583 = vst.msk [vmem:[%s194 + $0x80] sm:$0xff] %vm566, %v488
      %584 = vst.msk [vmem:[%s194 + $0x88] sm:$0xff] %vm566, %v493
      %585 = vst.msk [vmem:[%s194 + $0x90] sm:$0xff] %vm566, %v498
      %586 = vst.msk [vmem:[%s194 + $0x98] sm:$0xff] %vm566, %v503
      %587 = vst.msk [vmem:[%s194 + $0xa0] sm:$0xff] %vm566, %v508
      %588 = vst.msk [vmem:[%s194 + $0xa8] sm:$0xff] %vm566, %v513
      %589 = vst.msk [vmem:[%s194 + $0xb0] sm:$0xff] %vm566, %v518
      %590 = vst.msk [vmem:[%s194 + $0xb8] sm:$0xff] %vm566, %v523
      %591 = vst.msk [vmem:[%s194 + $0xc0] sm:$0xff] %vm566, %v528
      %592 = vst.msk [vmem:[%s194 + $0xc8] sm:$0xff] %vm566, %v533
      %593 = vst.msk [vmem:[%s194 + $0xd0] sm:$0xff] %vm566, %v538
      %594 = vst.msk [vmem:[%s194 + $0xd8] sm:$0xff] %vm566, %v543
      %595 = vst.msk [vmem:[%s194 + $0xe0] sm:$0xff] %vm566, %v548
      %596 = vst.msk [vmem:[%s194 + $0xe8] sm:$0xff] %vm566, %v553
      %597 = vst.msk [vmem:[%s194 + $0xf0] sm:$0xff] %vm566, %v558
      %598 = vst.msk [vmem:[%s194 + $0xf8] sm:$0xff] %vm566, %v563
      %v599 = vld [vmem:[%s3] sm:$0x1]
      %v600 = vsel %vm566, %v408, 0.0
      %v601 = vsel %vm566, %v413, 0.0
      %v602 = vadd.f32 %v600, %v601
      %v603 = vsel %vm566, %v418, 0.0
      %v604 = vadd.f32 %v602, %v603
      %v605 = vsel %vm566, %v423, 0.0
      %v606 = vadd.f32 %v604, %v605
      %v607 = vsel %vm566, %v428, 0.0
      %v608 = vadd.f32 %v606, %v607
      %v609 = vsel %vm566, %v433, 0.0
      %v610 = vadd.f32 %v608, %v609
      %v611 = vsel %vm566, %v438, 0.0
      %v612 = vadd.f32 %v610, %v611
      %v613 = vsel %vm566, %v443, 0.0
      %v614 = vadd.f32 %v612, %v613
      %v615 = vsel %vm566, %v448, 0.0
      %v616 = vadd.f32 %v614, %v615
      %v617 = vsel %vm566, %v453, 0.0
      %v618 = vadd.f32 %v616, %v617
      %v619 = vsel %vm566, %v458, 0.0
      %v620 = vadd.f32 %v618, %v619
      %v621 = vsel %vm566, %v463, 0.0
      %v622 = vadd.f32 %v620, %v621
      %v623 = vsel %vm566, %v468, 0.0
      %v624 = vadd.f32 %v622, %v623
      %v625 = vsel %vm566, %v473, 0.0
      %v626 = vadd.f32 %v624, %v625
      %v627 = vsel %vm566, %v478, 0.0
      %v628 = vadd.f32 %v626, %v627
      %v629 = vsel %vm566, %v483, 0.0
      %v630 = vadd.f32 %v628, %v629
      %v631 = vsel %vm566, %v488, 0.0
      %v632 = vadd.f32 %v630, %v631
      %v633 = vsel %vm566, %v493, 0.0
      %v634 = vadd.f32 %v632, %v633
      %v635 = vsel %vm566, %v498, 0.0
      %v636 = vadd.f32 %v634, %v635
      %v637 = vsel %vm566, %v503, 0.0
      %v638 = vadd.f32 %v636, %v637
      %v639 = vsel %vm566, %v508, 0.0
      %v640 = vadd.f32 %v638, %v639
      %v641 = vsel %vm566, %v513, 0.0
      %v642 = vadd.f32 %v640, %v641
      %v643 = vsel %vm566, %v518, 0.0
      %v644 = vadd.f32 %v642, %v643
      %v645 = vsel %vm566, %v523, 0.0
      %v646 = vadd.f32 %v644, %v645
      %v647 = vsel %vm566, %v528, 0.0
      %v648 = vadd.f32 %v646, %v647
      %v649 = vsel %vm566, %v533, 0.0
      %v650 = vadd.f32 %v648, %v649
      %v651 = vsel %vm566, %v538, 0.0
      %v652 = vadd.f32 %v650, %v651
      %v653 = vsel %vm566, %v543, 0.0
      %v654 = vadd.f32 %v652, %v653
      %v655 = vsel %vm566, %v548, 0.0
      %v656 = vadd.f32 %v654, %v655
      %v657 = vsel %vm566, %v553, 0.0
      %v658 = vadd.f32 %v656, %v657
      %v659 = vsel %vm566, %v558, 0.0
      %v660 = vadd.f32 %v658, %v659
      %v661 = vsel %vm566, %v563, 0.0
      %v662 = vadd.f32 %v660, %v661
      %v663 = vrot.slane %v662, 4
      %v664 = vadd.f32 %v662, %v663
      %v665 = vrot.slane %v664, 2
      %v666 = vadd.f32 %v664, %v665
      %v667 = vrot.slane %v666, 1
      %v668 = vadd.f32 %v666, %v667
      %v669 = vadd.f32 %v599, %v668
      %vm670 = vcmask 57344
      %671 = vst.msk [vmem:[%s3] sm:$0x1] %vm670, %v669
      %v672 = vld [vmem:[%s4] sm:$0x1]
      %v673 = vmul.f32 %v408, %v408
      %v674 = vmul.f32 %v413, %v413
      %v675 = vmul.f32 %v418, %v418
      %v676 = vmul.f32 %v423, %v423
      %v677 = vmul.f32 %v428, %v428
      %v678 = vmul.f32 %v433, %v433
      %v679 = vmul.f32 %v438, %v438
      %v680 = vmul.f32 %v443, %v443
      %v681 = vmul.f32 %v448, %v448
      %v682 = vmul.f32 %v453, %v453
      %v683 = vmul.f32 %v458, %v458
      %v684 = vmul.f32 %v463, %v463
      %v685 = vmul.f32 %v468, %v468
      %v686 = vmul.f32 %v473, %v473
      %v687 = vmul.f32 %v478, %v478
      %v688 = vmul.f32 %v483, %v483
      %v689 = vmul.f32 %v488, %v488
      %v690 = vmul.f32 %v493, %v493
      %v691 = vmul.f32 %v498, %v498
      %v692 = vmul.f32 %v503, %v503
      %v693 = vmul.f32 %v508, %v508
      %v694 = vmul.f32 %v513, %v513
      %v695 = vmul.f32 %v518, %v518
      %v696 = vmul.f32 %v523, %v523
      %v697 = vmul.f32 %v528, %v528
      %v698 = vmul.f32 %v533, %v533
      %v699 = vmul.f32 %v538, %v538
      %v700 = vmul.f32 %v543, %v543
      %v701 = vmul.f32 %v548, %v548
      %v702 = vmul.f32 %v553, %v553
      %v703 = vmul.f32 %v558, %v558
      %v704 = vmul.f32 %v563, %v563
      %v705 = vsel %vm566, %v673, 0.0
      %v706 = vsel %vm566, %v674, 0.0
      %v707 = vadd.f32 %v705, %v706
      %v708 = vsel %vm566, %v675, 0.0
      %v709 = vadd.f32 %v707, %v708
      %v710 = vsel %vm566, %v676, 0.0
      %v711 = vadd.f32 %v709, %v710
      %v712 = vsel %vm566, %v677, 0.0
      %v713 = vadd.f32 %v711, %v712
      %v714 = vsel %vm566, %v678, 0.0
      %v715 = vadd.f32 %v713, %v714
      %v716 = vsel %vm566, %v679, 0.0
      %v717 = vadd.f32 %v715, %v716
      %v718 = vsel %vm566, %v680, 0.0
      %v719 = vadd.f32 %v717, %v718
      %v720 = vsel %vm566, %v681, 0.0
      %v721 = vadd.f32 %v719, %v720
      %v722 = vsel %vm566, %v682, 0.0
      %v723 = vadd.f32 %v721, %v722
      %v724 = vsel %vm566, %v683, 0.0
      %v725 = vadd.f32 %v723, %v724
      %v726 = vsel %vm566, %v684, 0.0
      %v727 = vadd.f32 %v725, %v726
      %v728 = vsel %vm566, %v685, 0.0
      %v729 = vadd.f32 %v727, %v728
      %v730 = vsel %vm566, %v686, 0.0
      %v731 = vadd.f32 %v729, %v730
      %v732 = vsel %vm566, %v687, 0.0
      %v733 = vadd.f32 %v731, %v732
      %v734 = vsel %vm566, %v688, 0.0
      %v735 = vadd.f32 %v733, %v734
      %v736 = vsel %vm566, %v689, 0.0
      %v737 = vadd.f32 %v735, %v736
      %v738 = vsel %vm566, %v690, 0.0
      %v739 = vadd.f32 %v737, %v738
      %v740 = vsel %vm566, %v691, 0.0
      %v741 = vadd.f32 %v739, %v740
      %v742 = vsel %vm566, %v692, 0.0
      %v743 = vadd.f32 %v741, %v742
      %v744 = vsel %vm566, %v693, 0.0
      %v745 = vadd.f32 %v743, %v744
      %v746 = vsel %vm566, %v694, 0.0
      %v747 = vadd.f32 %v745, %v746
      %v748 = vsel %vm566, %v695, 0.0
      %v749 = vadd.f32 %v747, %v748
      %v750 = vsel %vm566, %v696, 0.0
      %v751 = vadd.f32 %v749, %v750
      %v752 = vsel %vm566, %v697, 0.0
      %v753 = vadd.f32 %v751, %v752
      %v754 = vsel %vm566, %v698, 0.0
      %v755 = vadd.f32 %v753, %v754
      %v756 = vsel %vm566, %v699, 0.0
      %v757 = vadd.f32 %v755, %v756
      %v758 = vsel %vm566, %v700, 0.0
      %v759 = vadd.f32 %v757, %v758
      %v760 = vsel %vm566, %v701, 0.0
      %v761 = vadd.f32 %v759, %v760
      %v762 = vsel %vm566, %v702, 0.0
      %v763 = vadd.f32 %v761, %v762
      %v764 = vsel %vm566, %v703, 0.0
      %v765 = vadd.f32 %v763, %v764
      %v766 = vsel %vm566, %v704, 0.0
      %v767 = vadd.f32 %v765, %v766
      %v768 = vrot.slane %v767, 4
      %v769 = vadd.f32 %v767, %v768
      %v770 = vrot.slane %v769, 2
      %v771 = vadd.f32 %v769, %v770
      %v772 = vrot.slane %v771, 1
      %v773 = vadd.f32 %v771, %v772
      %v774 = vadd.f32 %v672, %v773
      %775 = vst.msk [vmem:[%s4] sm:$0x1] %vm670, %v774
      %s776 = smul.u32 32, %s16
      %p777 = scmp.lt.s32.totalorder %s776, 63
      %s778 = scalar_select %p777, %s776, 63
      %s779 = smul.addr %s778, 8
      %s780 = scalar_lea.vmem %s2, %s779
      // Predicated region
      $region33: #{conv_2nV1_forward.12} parent=27 // pred_check
        %p781 = pneg %p81
      $region34: #{conv_2nV1_forward.12} parent=27 // pred_check_branch
        %783 = sbr.rel (%p781) target = $region36
      $region35: #{conv_2nV1_forward.12} parent=27 // pred_region
        %s784 = smul.u32 32, %s16
      $region36: #{conv_2nV1_forward.12} parent=27 // pred_fallthru
        _
      // Predicated region
      $region37: #{conv_2nV1_forward.12} parent=27 // pred_check
        %p785 = pneg %p102
      $region38: #{conv_2nV1_forward.12} parent=27 // pred_check_branch
        %787 = sbr.rel (%p785) target = $region40
      $region39: #{conv_2nV1_forward.12} parent=27 // pred_region
        _
      $region40: #{conv_2nV1_forward.12} parent=27 // pred_fallthru
        _
      // Predicated region
      $region41: #{conv_2nV1_forward.12} parent=27 // pred_check
        %p788 = pneg %p123
      $region42: #{conv_2nV1_forward.12} parent=27 // pred_check_branch
        %790 = sbr.rel (%p788) target = $region44
      $region43: #{conv_2nV1_forward.12} parent=27 // pred_region
        _
      $region44: #{conv_2nV1_forward.12} parent=27 // pred_fallthru
        _
      // Predicated region
      $region45: #{conv_2nV1_forward.12} parent=27 // pred_check
        %p791 = pneg %p102
      $region46: #{conv_2nV1_forward.12} parent=27 // pred_check_branch
        %793 = sbr.rel (%p791) target = $region48
      $region47: #{conv_2nV1_forward.12} parent=27 // pred_region
        _
      $region48: #{conv_2nV1_forward.12} parent=27 // pred_fallthru
        _
      // Predicated region
      $region49: #{conv_2nV1_forward.12} parent=27 // pred_check
        %p794 = pneg %p123
      $region50: #{conv_2nV1_forward.12} parent=27 // pred_check_branch
        %796 = sbr.rel (%p794) target = $region52
      $region51: #{conv_2nV1_forward.12} parent=27 // pred_region
        _
      $region52: #{conv_2nV1_forward.12} parent=27 // pred_fallthru
        _
    $region28: #{conv_2nV1_forward.12} parent=5 // pred_fallthru
      _
    %p797 = scmp.le.s32.totalorder 2, %s11
    // Predicated region
    $region53: #{conv_2nV1_forward.12} parent=5 // pred_check
      %p798 = pneg %p797
    $region54: #{conv_2nV1_forward.12} parent=5 // pred_check_branch
      %800 = sbr.rel (%p798) target = $region56
    $region55: #{conv_2nV1_forward.12} parent=5 // pred_region
      %s801 = ssub.s32 %s11, 2
      // Predicated region
      $region57: #{conv_2nV1_forward.12} parent=55 // pred_check
        %p802 = pneg %p87
      $region58: #{conv_2nV1_forward.12} parent=55 // pred_check_branch
        %804 = sbr.rel (%p802) target = $region60
      $region59: #{conv_2nV1_forward.12} parent=55 // pred_region
        %s805 = smul.u32 32, %s17
        %p806 = scmp.lt.s32.totalorder %s805, 63
        %s807 = scalar_select %p806, %s805, 63
        %s808 = smul.addr %s807, 8
        %s809 = scalar_lea.vmem %s2, %s808
      $region60: #{conv_2nV1_forward.12} parent=55 // pred_fallthru
        _
    $region56: #{conv_2nV1_forward.12} parent=5 // pred_fallthru
      _
  $region6: #{conv_2nV1_forward.12} parent=0 // loop_footer
    %s15 = sadd.s32 1, %s11
  $region7: #{conv_2nV1_forward.12} parent=0 // loop_footer_branch
    %10 = sbr.rel target = $region3
  $region8: #{conv_2nV1_forward.12} parent=0 // loop_exit
    _

// kernel: conv_2nV1_forward.13
$region0: #{conv_2nV1_forward.13}
  #allocation0 [shape = 'u32[]', space=smem, size = 0x4, offset = 0x4, fixed_abs, tag = 'smem constant byte address 0x4 - core index']
  #allocation1 [shape = 'u32[144,128]{1,0:T(1,128)}', space=vmem, size = 0x12000, scoped, tag = 'internal scratch']
  %s0 = inlined_call_operand.vmem [shape: f32[32,128], index: 0, kind: input, shape index: {}]
  %s1 = inlined_call_operand.vmem [shape: f32[1,128], index: 1, kind: input, shape index: {}]
  %s2 = inlined_call_operand.vmem [shape: f32[1,128], index: 2, kind: input, shape index: {}]
  %s3 = inlined_call_operand.vmem [shape: f32[32,128], index: 3, kind: output, shape index: {}]
  %s4 = sld [smem:[#allocation0]]
  $region22: #{conv_2nV1_forward.13} parent=0
    _
  %s6 = ssub.s32 1, %s4
  %s7 = scalar_select 0, %s6, %s4
  // Predicated region
  $region2: #{conv_2nV1_forward.13} parent=0 // pred_check
    _
  $region3: #{conv_2nV1_forward.13} parent=0 // pred_check_branch
    %9 = sbr.rel (0) target = $region5
  $region4: #{conv_2nV1_forward.13} parent=0 // pred_region
    _
  $region5: #{conv_2nV1_forward.13} parent=0 // pred_fallthru
    _
  // Predicated region
  $region6: #{conv_2nV1_forward.13} parent=0 // pred_check
    _
  $region7: #{conv_2nV1_forward.13} parent=0 // pred_check_branch
    %11 = sbr.rel (0) target = $region9
  $region8: #{conv_2nV1_forward.13} parent=0 // pred_region
    _
  $region9: #{conv_2nV1_forward.13} parent=0 // pred_fallthru
    _
  // Predicated region
  $region10: #{conv_2nV1_forward.13} parent=0 // pred_check
    _
  $region11: #{conv_2nV1_forward.13} parent=0 // pred_check_branch
    %13 = sbr.rel (0) target = $region13
  $region12: #{conv_2nV1_forward.13} parent=0 // pred_region
    _
  $region13: #{conv_2nV1_forward.13} parent=0 // pred_fallthru
    _
  %v14 = vld [vmem:[%s0] sm:$0xff]
  %v15 = vld [vmem:[%s0 + $0x8] sm:$0xff]
  %v16 = vld [vmem:[%s0 + $0x10] sm:$0xff]
  %v17 = vld [vmem:[%s0 + $0x18] sm:$0xff]
  %v18 = vld [vmem:[%s1] sm:$0x1]
  %v20 = vlaneseq
  %v21 = vshrl.u32 %v20, 7
  %v22 = vsub.s32 0, %v21
  %v23 = vrot.slane %v18, %v22
  %v25 = vmul.f32 %v14, %v23
  %v26 = vmul.f32 %v15, %v23
  %v27 = vmul.f32 %v16, %v23
  %v28 = vmul.f32 %v17, %v23
  %v29 = vld [vmem:[%s2] sm:$0x1]
  %v31 = vlaneseq
  %v32 = vshrl.u32 %v31, 7
  %v33 = vsub.s32 0, %v32
  %v34 = vrot.slane %v29, %v33
  %v36 = vadd.f32 %v25, %v34
  %v37 = vadd.f32 %v26, %v34
  %v38 = vadd.f32 %v27, %v34
  %v39 = vadd.f32 %v28, %v34
  %v40 = vmax.f32 %v36, 0.0
  %v41 = vmax.f32 %v37, 0.0
  %v42 = vmax.f32 %v38, 0.0
  %v43 = vmax.f32 %v39, 0.0
  %44 = vst [vmem:[%s3] sm:$0xff] %v40
  %45 = vst [vmem:[%s3 + $0x8] sm:$0xff] %v41
  %46 = vst [vmem:[%s3 + $0x10] sm:$0xff] %v42
  %47 = vst [vmem:[%s3 + $0x18] sm:$0xff] %v43
  // Predicated region
  $region14: #{conv_2nV1_forward.13} parent=0 // pred_check
    _
  $region15: #{conv_2nV1_forward.13} parent=0 // pred_check_branch
    %49 = sbr.rel (0) target = $region17
  $region16: #{conv_2nV1_forward.13} parent=0 // pred_region
    _
  $region17: #{conv_2nV1_forward.13} parent=0 // pred_fallthru
    _
  // Predicated region
  $region18: #{conv_2nV1_forward.13} parent=0 // pred_check
    _
  $region19: #{conv_2nV1_forward.13} parent=0 // pred_check_branch
    %51 = sbr.rel (0) target = $region21
  $region20: #{conv_2nV1_forward.13} parent=0 // pred_region
    _
  $region21: #{conv_2nV1_forward.13} parent=0 // pred_fallthru
    _

// kernel: conv_2nV1_forward.14
$region0: #{conv_2nV1_forward.14}
  #allocation0 [shape = 'u32[]', space=smem, size = 0x4, offset = 0x4, fixed_abs, tag = 'smem constant byte address 0x4 - core index']
  #allocation1 [shape = 'u32[144,128]{1,0:T(1,128)}', space=vmem, size = 0x12000, scoped, tag = 'internal scratch']
  %s0 = inlined_call_operand.vmem [shape: f32[128,144], index: 0, kind: input, shape index: {}]
  %s1 = inlined_call_operand.vmem [shape: f32[144,8], index: 1, kind: input, shape index: {}]
  %s2 = inlined_call_operand.vmem [shape: f32[128,8], index: 2, kind: output, shape index: {0}]
  %s3 = inlined_call_operand.vmem [shape: f32[1,8], index: 3, kind: output, shape index: {1}]
  %s4 = inlined_call_operand.vmem [shape: f32[1,8], index: 4, kind: output, shape index: {2}]
  %5 = xla_tuple %s2, %s3, %s4
  %s6 = sld [smem:[#allocation0]]
  $region38: #{conv_2nV1_forward.14} parent=0
    _
  %s8 = ssub.s32 1, %s6
  %s9 = scalar_select 0, %s8, %s6
  // Predicated region
  $region2: #{conv_2nV1_forward.14} parent=0 // pred_check
    _
  $region3: #{conv_2nV1_forward.14} parent=0 // pred_check_branch
    %11 = sbr.rel (0) target = $region5
  $region4: #{conv_2nV1_forward.14} parent=0 // pred_region
    _
  $region5: #{conv_2nV1_forward.14} parent=0 // pred_fallthru
    _
  // Predicated region
  $region6: #{conv_2nV1_forward.14} parent=0 // pred_check
    _
  $region7: #{conv_2nV1_forward.14} parent=0 // pred_check_branch
    %13 = sbr.rel (0) target = $region9
  $region8: #{conv_2nV1_forward.14} parent=0 // pred_region
    _
  $region9: #{conv_2nV1_forward.14} parent=0 // pred_fallthru
    _
  %p14 = scmp.eq.s32.totalorder 0, 0
  // Predicated region
  $region10: #{conv_2nV1_forward.14} parent=0 // pred_check
    %p15 = pneg %p14
  $region11: #{conv_2nV1_forward.14} parent=0 // pred_check_branch
    %17 = sbr.rel (%p15) target = $region13
  $region12: #{conv_2nV1_forward.14} parent=0 // pred_region
    %vm18 = vcmask 57344
    %19 = vst.msk [vmem:[%s3] sm:$0x1] %vm18, 0.0
    %20 = vst.msk [vmem:[%s4] sm:$0x1] %vm18, 0.0
  $region13: #{conv_2nV1_forward.14} parent=0 // pred_fallthru
    _
  %v21 = vld [vmem:[%s0] sm:$0xff]
  %v22 = vld [vmem:[%s0 + $0x8] sm:$0xff]
  %v23 = vld [vmem:[%s0 + $0x10] sm:$0xff]
  %v24 = vld [vmem:[%s0 + $0x18] sm:$0xff]
  %v25 = vld [vmem:[%s0 + $0x20] sm:$0xff]
  %v26 = vld [vmem:[%s0 + $0x28] sm:$0xff]
  %v27 = vld [vmem:[%s0 + $0x30] sm:$0xff]
  %v28 = vld [vmem:[%s0 + $0x38] sm:$0xff]
  %v29 = vld [vmem:[%s0 + $0x40] sm:$0xff]
  %v30 = vld [vmem:[%s0 + $0x48] sm:$0xff]
  %v31 = vld [vmem:[%s0 + $0x50] sm:$0xff]
  %v32 = vld [vmem:[%s0 + $0x58] sm:$0xff]
  %v33 = vld [vmem:[%s0 + $0x60] sm:$0xff]
  %v34 = vld [vmem:[%s0 + $0x68] sm:$0xff]
  %v35 = vld [vmem:[%s0 + $0x70] sm:$0xff]
  %v36 = vld [vmem:[%s0 + $0x78] sm:$0xff]
  %v37 = vld [vmem:[%s0 + $0x80] sm:$0xff]
  %v38 = vld [vmem:[%s0 + $0x88] sm:$0xff]
  %v39 = vld [vmem:[%s0 + $0x90] sm:$0xff]
  %v40 = vld [vmem:[%s0 + $0x98] sm:$0xff]
  %v41 = vld [vmem:[%s0 + $0xa0] sm:$0xff]
  %v42 = vld [vmem:[%s0 + $0xa8] sm:$0xff]
  %v43 = vld [vmem:[%s0 + $0xb0] sm:$0xff]
  %v44 = vld [vmem:[%s0 + $0xb8] sm:$0xff]
  %v45 = vld [vmem:[%s0 + $0xc0] sm:$0xff]
  %v46 = vld [vmem:[%s0 + $0xc8] sm:$0xff]
  %v47 = vld [vmem:[%s0 + $0xd0] sm:$0xff]
  %v48 = vld [vmem:[%s0 + $0xd8] sm:$0xff]
  %v49 = vld [vmem:[%s0 + $0xe0] sm:$0xff]
  %v50 = vld [vmem:[%s0 + $0xe8] sm:$0xff]
  %v51 = vld [vmem:[%s0 + $0xf0] sm:$0xff]
  %v52 = vld [vmem:[%s0 + $0xf8] sm:$0xff]
  %v53 = vld [vmem:[%s1] sm:$0xff]
  %v54 = vld [vmem:[%s1 + $0x8] sm:$0xff]
  %v55 = vld [vmem:[%s1 + $0x10] sm:$0xff]
  %v56 = vld [vmem:[%s1 + $0x18] sm:$0xff]
  %v57 = vld [vmem:[%s1 + $0x20] sm:$0xff]
  %v58 = vld [vmem:[%s1 + $0x28] sm:$0xff]
  %v59 = vld [vmem:[%s1 + $0x30] sm:$0xff]
  %v60 = vld [vmem:[%s1 + $0x38] sm:$0xff]
  %v61 = vld [vmem:[%s1 + $0x40] sm:$0xff]
  %v62 = vld [vmem:[%s1 + $0x48] sm:$0xff]
  %v63 = vld [vmem:[%s1 + $0x50] sm:$0xff]
  %v64 = vld [vmem:[%s1 + $0x58] sm:$0xff]
  %v65 = vld [vmem:[%s1 + $0x60] sm:$0xff]
  %v66 = vld [vmem:[%s1 + $0x68] sm:$0xff]
  %v67 = vld [vmem:[%s1 + $0x70] sm:$0xff]
  %v68 = vld [vmem:[%s1 + $0x78] sm:$0xff]
  %v69 = vld [vmem:[%s1 + $0x80] sm:$0xff]
  %v70 = vld [vmem:[%s1 + $0x88] sm:$0xff]
  %vm71 = vcmask 130048
  %v73 = vsel %vm71, %v22, 0
  %v76 = vsel %vm71, %v24, 0
  %v79 = vsel %vm71, %v26, 0
  %v82 = vsel %vm71, %v28, 0
  %v85 = vsel %vm71, %v30, 0
  %v88 = vsel %vm71, %v32, 0
  %v91 = vsel %vm71, %v34, 0
  %v94 = vsel %vm71, %v36, 0
  %v97 = vsel %vm71, %v38, 0
  %v100 = vsel %vm71, %v40, 0
  %v103 = vsel %vm71, %v42, 0
  %v106 = vsel %vm71, %v44, 0
  %v109 = vsel %vm71, %v46, 0
  %v112 = vsel %vm71, %v48, 0
  %v115 = vsel %vm71, %v50, 0
  %v118 = vsel %vm71, %v52, 0
  %120 = vmatprep.subr.mxu0 0.0
  %121 = vmatpush1.msra.mxu0 %v53
  %122 = vmatprep.subr.mxu0 0.0
  %123 = vmatpush1.msra.mxu0 %v54
  %124 = vmatprep.subr.mxu0 0.0
  %125 = vmatpush1.msra.mxu0 %v55
  %126 = vmatprep.subr.mxu0 0.0
  %127 = vmatpush1.msra.mxu0 %v56
  %128 = vmatprep.subr.mxu0 0.0
  %129 = vmatpush1.msra.mxu0 %v57
  %130 = vmatprep.subr.mxu0 0.0
  %131 = vmatpush1.msra.mxu0 %v58
  %132 = vmatprep.subr.mxu0 0.0
  %133 = vmatpush1.msra.mxu0 %v59
  %134 = vmatprep.subr.mxu0 0.0
  %135 = vmatpush1.msra.mxu0 %v60
  %136 = vmatprep.subr.mxu0 0.0
  %137 = vmatpush1.msra.mxu0 %v61
  %138 = vmatprep.subr.mxu0 0.0
  %139 = vmatpush1.msra.mxu0 %v62
  %140 = vmatprep.subr.mxu0 0.0
  %141 = vmatpush1.msra.mxu0 %v63
  %142 = vmatprep.subr.mxu0 0.0
  %143 = vmatpush1.msra.mxu0 %v64
  %144 = vmatprep.subr.mxu0 0.0
  %145 = vmatpush1.msra.mxu0 %v65
  %146 = vmatprep.subr.mxu0 0.0
  %147 = vmatpush1.msra.mxu0 %v66
  %148 = vmatprep.subr.mxu0 0.0
  %149 = vmatpush1.msra.mxu0 %v67
  %150 = vmatprep.subr.mxu0 0.0
  %151 = vmatpush1.msra.mxu0 %v68
  %152 = vmatprep.subr.mxu0 0.0
  %153 = vmatpush1.msra.mxu0 %v69
  %154 = vmatprep.subr.mxu0 0.0
  %155 = vmatpush1.msra.mxu0 %v70
  %156 = vmatprep.subr.mxu0 0.0
  %157 = vmatpush1.msra.mxu0 0.0
  %158 = vmatprep.subr.mxu0 0.0
  %159 = vmatpush1.msra.mxu0 0.0
  %160 = vmatprep.subr.mxu0 0.0
  %161 = vmatpush1.msra.mxu0 0.0
  %162 = vmatprep.subr.mxu0 0.0
  %163 = vmatpush1.msra.mxu0 0.0
  %164 = vmatprep.subr.mxu0 0.0
  %165 = vmatpush1.msra.mxu0 0.0
  %166 = vmatprep.subr.mxu0 0.0
  %167 = vmatpush1.msra.mxu0 0.0
  %168 = vmatprep.subr.mxu0 0.0
  %169 = vmatpush1.msra.mxu0 0.0
  %170 = vmatprep.subr.mxu0 0.0
  %171 = vmatpush1.msra.mxu0 0.0
  %172 = vmatprep.subr.mxu0 0.0
  %173 = vmatpush1.msra.mxu0 0.0
  %174 = vmatprep.subr.mxu0 0.0
  %175 = vmatpush1.msra.mxu0 0.0
  %176 = vmatprep.subr.mxu0 0.0
  %177 = vmatpush1.msra.mxu0 0.0
  %178 = vmatprep.subr.mxu0 0.0
  %179 = vmatpush1.msra.mxu0 0.0
  %180 = vmatprep.subr.mxu0 0.0
  %181 = vmatpush1.msra.mxu0 0.0
  %182 = vmatprep.subr.mxu0 0.0
  %183 = vmatpush1.msra.mxu0 0.0
  %184 = vmatprep.mubr.f32.mxu0 %v73
  %185 = vmatmul.mubr.f32.gmra.mrb[0].mxu0 %v21
  %v186 = vpop.f32.mrb[0].mxu0
  %v187 = vadd.f32 0.0, %v186
  %v188 = vpop.f32.mrb[0].mxu0
  %189 = vmatprep.mubr.f32.mxu0 %v76
  %190 = vmatmul.mubr.f32.gmra.mrb[0].mxu0 %v23
  %v191 = vpop.f32.mrb[0].mxu0
  %v192 = vadd.f32 0.0, %v191
  %v193 = vpop.f32.mrb[0].mxu0
  %194 = vmatprep.mubr.f32.mxu0 %v79
  %195 = vmatmul.mubr.f32.gmra.mrb[0].mxu0 %v25
  %v196 = vpop.f32.mrb[0].mxu0
  %v197 = vadd.f32 0.0, %v196
  %v198 = vpop.f32.mrb[0].mxu0
  %199 = vmatprep.mubr.f32.mxu0 %v82
  %200 = vmatmul.mubr.f32.gmra.mrb[0].mxu0 %v27
  %v201 = vpop.f32.mrb[0].mxu0
  %v202 = vadd.f32 0.0, %v201
  %v203 = vpop.f32.mrb[0].mxu0
  %204 = vmatprep.mubr.f32.mxu0 %v85
  %205 = vmatmul.mubr.f32.gmra.mrb[0].mxu0 %v29
  %v206 = vpop.f32.mrb[0].mxu0
  %v207 = vadd.f32 0.0, %v206
  %v208 = vpop.f32.mrb[0].mxu0
  %209 = vmatprep.mubr.f32.mxu0 %v88
  %210 = vmatmul.mubr.f32.gmra.mrb[0].mxu0 %v31
  %v211 = vpop.f32.mrb[0].mxu0
  %v212 = vadd.f32 0.0, %v211
  %v213 = vpop.f32.mrb[0].mxu0
  %214 = vmatprep.mubr.f32.mxu0 %v91
  %215 = vmatmul.mubr.f32.gmra.mrb[0].mxu0 %v33
  %v216 = vpop.f32.mrb[0].mxu0
  %v217 = vadd.f32 0.0, %v216
  %v218 = vpop.f32.mrb[0].mxu0
  %219 = vmatprep.mubr.f32.mxu0 %v94
  %220 = vmatmul.mubr.f32.gmra.mrb[0].mxu0 %v35
  %v221 = vpop.f32.mrb[0].mxu0
  %v222 = vadd.f32 0.0, %v221
  %v223 = vpop.f32.mrb[0].mxu0
  %224 = vmatprep.mubr.f32.mxu0 %v97
  %225 = vmatmul.mubr.f32.gmra.mrb[0].mxu0 %v37
  %v226 = vpop.f32.mrb[0].mxu0
  %v227 = vadd.f32 0.0, %v226
  %v228 = vpop.f32.mrb[0].mxu0
  %229 = vmatprep.mubr.f32.mxu0 %v100
  %230 = vmatmul.mubr.f32.gmra.mrb[0].mxu0 %v39
  %v231 = vpop.f32.mrb[0].mxu0
  %v232 = vadd.f32 0.0, %v231
  %v233 = vpop.f32.mrb[0].mxu0
  %234 = vmatprep.mubr.f32.mxu0 %v103
  %235 = vmatmul.mubr.f32.gmra.mrb[0].mxu0 %v41
  %v236 = vpop.f32.mrb[0].mxu0
  %v237 = vadd.f32 0.0, %v236
  %v238 = vpop.f32.mrb[0].mxu0
  %239 = vmatprep.mubr.f32.mxu0 %v106
  %240 = vmatmul.mubr.f32.gmra.mrb[0].mxu0 %v43
  %v241 = vpop.f32.mrb[0].mxu0
  %v242 = vadd.f32 0.0, %v241
  %v243 = vpop.f32.mrb[0].mxu0
  %244 = vmatprep.mubr.f32.mxu0 %v109
  %245 = vmatmul.mubr.f32.gmra.mrb[0].mxu0 %v45
  %v246 = vpop.f32.mrb[0].mxu0
  %v247 = vadd.f32 0.0, %v246
  %v248 = vpop.f32.mrb[0].mxu0
  %249 = vmatprep.mubr.f32.mxu0 %v112
  %250 = vmatmul.mubr.f32.gmra.mrb[0].mxu0 %v47
  %v251 = vpop.f32.mrb[0].mxu0
  %v252 = vadd.f32 0.0, %v251
  %v253 = vpop.f32.mrb[0].mxu0
  %254 = vmatprep.mubr.f32.mxu0 %v115
  %255 = vmatmul.mubr.f32.gmra.mrb[0].mxu0 %v49
  %v256 = vpop.f32.mrb[0].mxu0
  %v257 = vadd.f32 0.0, %v256
  %v258 = vpop.f32.mrb[0].mxu0
  %259 = vmatprep.mubr.f32.mxu0 %v118
  %260 = vmatmul.mubr.f32.gmra.mrb[0].mxu0 %v51
  %v261 = vpop.f32.mrb[0].mxu0
  %v262 = vadd.f32 0.0, %v261
  %v263 = vpop.f32.mrb[0].mxu0
  %264 = vdwg.mxu0
  %vm265 = vcmask 64512
  %266 = vst.msk [vmem:[%s2] sm:$0xff] %vm265, %v187
  %267 = vst.msk [vmem:[%s2 + $0x8] sm:$0xff] %vm265, %v192
  %268 = vst.msk [vmem:[%s2 + $0x10] sm:$0xff] %vm265, %v197
  %269 = vst.msk [vmem:[%s2 + $0x18] sm:$0xff] %vm265, %v202
  %270 = vst.msk [vmem:[%s2 + $0x20] sm:$0xff] %vm265, %v207
  %271 = vst.msk [vmem:[%s2 + $0x28] sm:$0xff] %vm265, %v212
  %272 = vst.msk [vmem:[%s2 + $0x30] sm:$0xff] %vm265, %v217
  %273 = vst.msk [vmem:[%s2 + $0x38] sm:$0xff] %vm265, %v222
  %274 = vst.msk [vmem:[%s2 + $0x40] sm:$0xff] %vm265, %v227
  %275 = vst.msk [vmem:[%s2 + $0x48] sm:$0xff] %vm265, %v232
  %276 = vst.msk [vmem:[%s2 + $0x50] sm:$0xff] %vm265, %v237
  %277 = vst.msk [vmem:[%s2 + $0x58] sm:$0xff] %vm265, %v242
  %278 = vst.msk [vmem:[%s2 + $0x60] sm:$0xff] %vm265, %v247
  %279 = vst.msk [vmem:[%s2 + $0x68] sm:$0xff] %vm265, %v252
  %280 = vst.msk [vmem:[%s2 + $0x70] sm:$0xff] %vm265, %v257
  %281 = vst.msk [vmem:[%s2 + $0x78] sm:$0xff] %vm265, %v262
  %v282 = vld [vmem:[%s3] sm:$0x1]
  %v283 = vsel %vm265, %v187, 0.0
  %v284 = vsel %vm265, %v192, 0.0
  %v285 = vadd.f32 %v283, %v284
  %v286 = vsel %vm265, %v197, 0.0
  %v287 = vadd.f32 %v285, %v286
  %v288 = vsel %vm265, %v202, 0.0
  %v289 = vadd.f32 %v287, %v288
  %v290 = vsel %vm265, %v207, 0.0
  %v291 = vadd.f32 %v289, %v290
  %v292 = vsel %vm265, %v212, 0.0
  %v293 = vadd.f32 %v291, %v292
  %v294 = vsel %vm265, %v217, 0.0
  %v295 = vadd.f32 %v293, %v294
  %v296 = vsel %vm265, %v222, 0.0
  %v297 = vadd.f32 %v295, %v296
  %v298 = vsel %vm265, %v227, 0.0
  %v299 = vadd.f32 %v297, %v298
  %v300 = vsel %vm265, %v232, 0.0
  %v301 = vadd.f32 %v299, %v300
  %v302 = vsel %vm265, %v237, 0.0
  %v303 = vadd.f32 %v301, %v302
  %v304 = vsel %vm265, %v242, 0.0
  %v305 = vadd.f32 %v303, %v304
  %v306 = vsel %vm265, %v247, 0.0
  %v307 = vadd.f32 %v305, %v306
  %v308 = vsel %vm265, %v252, 0.0
  %v309 = vadd.f32 %v307, %v308
  %v310 = vsel %vm265, %v257, 0.0
  %v311 = vadd.f32 %v309, %v310
  %v312 = vsel %vm265, %v262, 0.0
  %v313 = vadd.f32 %v311, %v312
  %v314 = vrot.slane %v313, 4
  %v315 = vadd.f32 %v313, %v314
  %v316 = vrot.slane %v315, 2
  %v317 = vadd.f32 %v315, %v316
  %v318 = vrot.slane %v317, 1
  %v319 = vadd.f32 %v317, %v318
  %v320 = vadd.f32 %v282, %v319
  %vm321 = vcmask 57344
  %322 = vst.msk [vmem:[%s3] sm:$0x1] %vm321, %v320
  %v323 = vld [vmem:[%s4] sm:$0x1]
  %v324 = vmul.f32 %v187, %v187
  %v325 = vmul.f32 %v192, %v192
  %v326 = vmul.f32 %v197, %v197
  %v327 = vmul.f32 %v202, %v202
  %v328 = vmul.f32 %v207, %v207
  %v329 = vmul.f32 %v212, %v212
  %v330 = vmul.f32 %v217, %v217
  %v331 = vmul.f32 %v222, %v222
  %v332 = vmul.f32 %v227, %v227
  %v333 = vmul.f32 %v232, %v232
  %v334 = vmul.f32 %v237, %v237
  %v335 = vmul.f32 %v242, %v242
  %v336 = vmul.f32 %v247, %v247
  %v337 = vmul.f32 %v252, %v252
  %v338 = vmul.f32 %v257, %v257
  %v339 = vmul.f32 %v262, %v262
  %v340 = vsel %vm265, %v324, 0.0
  %v341 = vsel %vm265, %v325, 0.0
  %v342 = vadd.f32 %v340, %v341
  %v343 = vsel %vm265, %v326, 0.0
  %v344 = vadd.f32 %v342, %v343
  %v345 = vsel %vm265, %v327, 0.0
  %v346 = vadd.f32 %v344, %v345
  %v347 = vsel %vm265, %v328, 0.0
  %v348 = vadd.f32 %v346, %v347
  %v349 = vsel %vm265, %v329, 0.0
  %v350 = vadd.f32 %v348, %v349
  %v351 = vsel %vm265, %v330, 0.0
  %v352 = vadd.f32 %v350, %v351
  %v353 = vsel %vm265, %v331, 0.0
  %v354 = vadd.f32 %v352, %v353
  %v355 = vsel %vm265, %v332, 0.0
  %v356 = vadd.f32 %v354, %v355
  %v357 = vsel %vm265, %v333, 0.0
  %v358 = vadd.f32 %v356, %v357
  %v359 = vsel %vm265, %v334, 0.0
  %v360 = vadd.f32 %v358, %v359
  %v361 = vsel %vm265, %v335, 0.0
  %v362 = vadd.f32 %v360, %v361
  %v363 = vsel %vm265, %v336, 0.0
  %v364 = vadd.f32 %v362, %v363
  %v365 = vsel %vm265, %v337, 0.0
  %v366 = vadd.f32 %v364, %v365
  %v367 = vsel %vm265, %v338, 0.0
  %v368 = vadd.f32 %v366, %v367
  %v369 = vsel %vm265, %v339, 0.0
  %v370 = vadd.f32 %v368, %v369
  %v371 = vrot.slane %v370, 4
  %v372 = vadd.f32 %v370, %v371
  %v373 = vrot.slane %v372, 2
  %v374 = vadd.f32 %v372, %v373
  %v375 = vrot.slane %v374, 1
  %v376 = vadd.f32 %v374, %v375
  %v377 = vadd.f32 %v323, %v376
  %378 = vst.msk [vmem:[%s4] sm:$0x1] %vm321, %v377
  // Predicated region
  $region14: #{conv_2nV1_forward.14} parent=0 // pred_check
    _
  $region15: #{conv_2nV1_forward.14} parent=0 // pred_check_branch
    %380 = sbr.rel (0) target = $region17
  $region16: #{conv_2nV1_forward.14} parent=0 // pred_region
    _
  $region17: #{conv_2nV1_forward.14} parent=0 // pred_fallthru
    _
  // Predicated region
  $region18: #{conv_2nV1_forward.14} parent=0 // pred_check
    _
  $region19: #{conv_2nV1_forward.14} parent=0 // pred_check_branch
    %382 = sbr.rel (0) target = $region21
  $region20: #{conv_2nV1_forward.14} parent=0 // pred_region
    _
  $region21: #{conv_2nV1_forward.14} parent=0 // pred_fallthru
    _
  // Predicated region
  $region22: #{conv_2nV1_forward.14} parent=0 // pred_check
    _
  $region23: #{conv_2nV1_forward.14} parent=0 // pred_check_branch
    %384 = sbr.rel (0) target = $region25
  $region24: #{conv_2nV1_forward.14} parent=0 // pred_region
    _
  $region25: #{conv_2nV1_forward.14} parent=0 // pred_fallthru
    _
  // Predicated region
  $region26: #{conv_2nV1_forward.14} parent=0 // pred_check
    _
  $region27: #{conv_2nV1_forward.14} parent=0 // pred_check_branch
    %386 = sbr.rel (0) target = $region29
  $region28: #{conv_2nV1_forward.14} parent=0 // pred_region
    _
  $region29: #{conv_2nV1_forward.14} parent=0 // pred_fallthru
    _
  // Predicated region
  $region30: #{conv_2nV1_forward.14} parent=0 // pred_check
    _
  $region31: #{conv_2nV1_forward.14} parent=0 // pred_check_branch
    %388 = sbr.rel (0) target = $region33
  $region32: #{conv_2nV1_forward.14} parent=0 // pred_region
    _
  $region33: #{conv_2nV1_forward.14} parent=0 // pred_fallthru
    _
  // Predicated region
  $region34: #{conv_2nV1_forward.14} parent=0 // pred_check
    _
  $region35: #{conv_2nV1_forward.14} parent=0 // pred_check_branch
    %390 = sbr.rel (0) target = $region37
  $region36: #{conv_2nV1_forward.14} parent=0 // pred_region
    _
  $region37: #{conv_2nV1_forward.14} parent=0 // pred_fallthru
    _

// kernel: conv_2nV1_forward.15
$region0: #{conv_2nV1_forward.15}
  #allocation0 [shape = 'u32[]', space=smem, size = 0x4, offset = 0x4, fixed_abs, tag = 'smem constant byte address 0x4 - core index']
  #allocation1 [shape = 'u32[144,128]{1,0:T(1,128)}', space=vmem, size = 0x12000, scoped, tag = 'internal scratch']
  %s0 = inlined_call_operand.vmem [shape: f32[8,128], index: 0, kind: input, shape index: {}]
  %s1 = inlined_call_operand.vmem [shape: f32[1,128], index: 1, kind: input, shape index: {}]
  %s2 = inlined_call_operand.vmem [shape: f32[1,128], index: 2, kind: input, shape index: {}]
  %s3 = inlined_call_operand.vmem [shape: f32[8,128], index: 3, kind: output, shape index: {}]
  %s4 = sld [smem:[#allocation0]]
  $region22: #{conv_2nV1_forward.15} parent=0
    _
  %s6 = ssub.s32 1, %s4
  %s7 = scalar_select 0, %s6, %s4
  // Predicated region
  $region2: #{conv_2nV1_forward.15} parent=0 // pred_check
    _
  $region3: #{conv_2nV1_forward.15} parent=0 // pred_check_branch
    %9 = sbr.rel (0) target = $region5
  $region4: #{conv_2nV1_forward.15} parent=0 // pred_region
    _
  $region5: #{conv_2nV1_forward.15} parent=0 // pred_fallthru
    _
  // Predicated region
  $region6: #{conv_2nV1_forward.15} parent=0 // pred_check
    _
  $region7: #{conv_2nV1_forward.15} parent=0 // pred_check_branch
    %11 = sbr.rel (0) target = $region9
  $region8: #{conv_2nV1_forward.15} parent=0 // pred_region
    _
  $region9: #{conv_2nV1_forward.15} parent=0 // pred_fallthru
    _
  // Predicated region
  $region10: #{conv_2nV1_forward.15} parent=0 // pred_check
    _
  $region11: #{conv_2nV1_forward.15} parent=0 // pred_check_branch
    %13 = sbr.rel (0) target = $region13
  $region12: #{conv_2nV1_forward.15} parent=0 // pred_region
    _
  $region13: #{conv_2nV1_forward.15} parent=0 // pred_fallthru
    _
  %v14 = vld [vmem:[%s0] sm:$0xff]
  %v15 = vld [vmem:[%s1] sm:$0x1]
  %v17 = vlaneseq
  %v18 = vshrl.u32 %v17, 7
  %v19 = vsub.s32 0, %v18
  %v20 = vrot.slane %v15, %v19
  %v22 = vmul.f32 %v14, %v20
  %v23 = vld [vmem:[%s2] sm:$0x1]
  %v25 = vlaneseq
  %v26 = vshrl.u32 %v25, 7
  %v27 = vsub.s32 0, %v26
  %v28 = vrot.slane %v23, %v27
  %v30 = vadd.f32 %v22, %v28
  %v31 = vmax.f32 %v30, 0.0
  %32 = vst [vmem:[%s3] sm:$0xff] %v31
  // Predicated region
  $region14: #{conv_2nV1_forward.15} parent=0 // pred_check
    _
  $region15: #{conv_2nV1_forward.15} parent=0 // pred_check_branch
    %34 = sbr.rel (0) target = $region17
  $region16: #{conv_2nV1_forward.15} parent=0 // pred_region
    _
  $region17: #{conv_2nV1_forward.15} parent=0 // pred_fallthru
    _
  // Predicated region
  $region18: #{conv_2nV1_forward.15} parent=0 // pred_check
    _
  $region19: #{conv_2nV1_forward.15} parent=0 // pred_check_branch
    %36 = sbr.rel (0) target = $region21
  $region20: #{conv_2nV1_forward.15} parent=0 // pred_region
    _
  $region21: #{conv_2nV1_forward.15} parent=0 // pred_fallthru
    _

// kernel: conv_2nV1_forward.16
$region0: #{conv_2nV1_forward.16}
  #allocation0 [shape = 'u32[]', space=smem, size = 0x4, offset = 0x4, fixed_abs, tag = 'smem constant byte address 0x4 - core index']
  #allocation1 [shape = 'u32[144,128]{1,0:T(1,128)}', space=vmem, size = 0x12000, scoped, tag = 'internal scratch']
  %s0 = inlined_call_operand.vmem [shape: f32[512,72], index: 0, kind: input, shape index: {}]
  %s1 = inlined_call_operand.vmem [shape: f32[72,8], index: 1, kind: input, shape index: {}]
  %s2 = inlined_call_operand.vmem [shape: f32[512,72], index: 2, kind: input, shape index: {}]
  %s3 = inlined_call_operand.vmem [shape: f32[72,8], index: 3, kind: input, shape index: {}]
  %s4 = inlined_call_operand.vmem [shape: f32[512,8], index: 4, kind: output, shape index: {0}]
  %s5 = inlined_call_operand.vmem [shape: f32[1,8], index: 5, kind: output, shape index: {1}]
  %s6 = inlined_call_operand.vmem [shape: f32[1,8], index: 6, kind: output, shape index: {2}]
  %7 = xla_tuple %s4, %s5, %s6
  %s8 = sld [smem:[#allocation0]]
  $region69: #{conv_2nV1_forward.16} parent=0
    _
  %s10 = ssub.s32 1, %s8
  %s11 = scalar_select 0, %s10, %s8
  loop: start=0, step=1, limit=4
  $region2: #{conv_2nV1_forward.16} parent=0 // loop_pre_header
    _
  $region3: #{conv_2nV1_forward.16} parent=0 // loop_header
    %s13 = sphi 0, %s17
    %p14 = scmp.ge.s32.totalorder %s13, 4
    %s23 = sphi 0, %s25
    %s26 = sphi 0, %s23
    %s27 = sphi 0, %s26
    %s43 = sphi 0, %s27
    %s47 = sphi 0, %s47
    %s49 = sphi 0, %s47
    %s50 = sphi 0, %s49
    %s64 = sphi 0, %s50
    %s70 = sphi 0, %s72
    %s73 = sphi 0, %s70
    %s74 = sphi 0, %s73
    %s90 = sphi 0, %s74
    %s94 = sphi 0, %s94
    %s96 = sphi 0, %s94
    %s97 = sphi 0, %s96
    %s111 = sphi 0, %s97
    %s117 = sphi 0, %s119
    %s120 = sphi 0, %s117
    %s121 = sphi 0, %s120
    %s137 = sphi 0, %s121
    %s141 = sphi 0, %s141
    %s143 = sphi 0, %s141
    %s144 = sphi 0, %s143
    %s158 = sphi 0, %s144
    %s162 = sphi 0, %s162
    %s164 = sphi 0, %s162
    %s165 = sphi 0, %s164
    %s179 = sphi 0, %s165
  $region4: #{conv_2nV1_forward.16} parent=0 // loop_header_branch
    %16 = sbr.rel (%p14) target = $region8
  $region5: #{conv_2nV1_forward.16} parent=0 // loop_body
    %s18 = ssub.s32 %s13, 1
    %s19 = ssub.s32 %s13, 2
    %s20 = sadd.s32 %s13, 1
    %s21 = ssub.s32 %s13, %s20
    %p22 = scmp.eq.s32.totalorder %s21, 0
    %s24 = sadd.s32 %s23, 1
    %s25 = scalar_select %p22, %s23, %s24
    %p28 = pneg %p22
    %p29 = scmp.eq.s32.totalorder %s13, 1
    %p30 = por %p28, %p29
    %p31 = scmp.ne.s32.totalorder %s23, %s26
    %p32 = scmp.eq.s32.totalorder %s13, 0
    %p33 = por %p31, %p32
    %p34 = scmp.ne.s32.totalorder %s23, %s26
    %p35 = scmp.eq.s32.totalorder %s18, 1
    %p36 = por %p34, %p35
    %p37 = scmp.ne.s32.totalorder %s26, %s27
    %p38 = scmp.eq.s32.totalorder %s18, 0
    %p39 = por %p37, %p38
    %p40 = scmp.ne.s32.totalorder %s26, %s27
    %p41 = scmp.eq.s32.totalorder %s19, 1
    %p42 = por %p40, %p41
    %p44 = scmp.ne.s32.totalorder %s27, %s43
    %p45 = scmp.eq.s32.totalorder %s19, 0
    %p46 = por %p44, %p45
    %s48 = sadd.s32 %s47, 1
    %p51 = scmp.eq.s32.totalorder %s13, 1
    %p52 = scmp.ne.s32.totalorder %s47, %s49
    %p53 = scmp.eq.s32.totalorder %s13, 0
    %p54 = por %p52, %p53
    %p55 = scmp.ne.s32.totalorder %s47, %s49
    %p56 = scmp.eq.s32.totalorder %s18, 1
    %p57 = por %p55, %p56
    %p58 = scmp.ne.s32.totalorder %s49, %s50
    %p59 = scmp.eq.s32.totalorder %s18, 0
    %p60 = por %p58, %p59
    %p61 = scmp.ne.s32.totalorder %s49, %s50
    %p62 = scmp.eq.s32.totalorder %s19, 1
    %p63 = por %p61, %p62
    %p65 = scmp.ne.s32.totalorder %s50, %s64
    %p66 = scmp.eq.s32.totalorder %s19, 0
    %p67 = por %p65, %p66
    %s68 = ssub.s32 %s13, %s20
    %p69 = scmp.eq.s32.totalorder %s68, 0
    %s71 = sadd.s32 %s70, 1
    %s72 = scalar_select %p69, %s70, %s71
    %p75 = pneg %p69
    %p76 = scmp.eq.s32.totalorder %s13, 1
    %p77 = por %p75, %p76
    %p78 = scmp.ne.s32.totalorder %s70, %s73
    %p79 = scmp.eq.s32.totalorder %s13, 0
    %p80 = por %p78, %p79
    %p81 = scmp.ne.s32.totalorder %s70, %s73
    %p82 = scmp.eq.s32.totalorder %s18, 1
    %p83 = por %p81, %p82
    %p84 = scmp.ne.s32.totalorder %s73, %s74
    %p85 = scmp.eq.s32.totalorder %s18, 0
    %p86 = por %p84, %p85
    %p87 = scmp.ne.s32.totalorder %s73, %s74
    %p88 = scmp.eq.s32.totalorder %s19, 1
    %p89 = por %p87, %p88
    %p91 = scmp.ne.s32.totalorder %s74, %s90
    %p92 = scmp.eq.s32.totalorder %s19, 0
    %p93 = por %p91, %p92
    %s95 = sadd.s32 %s94, 1
    %p98 = scmp.eq.s32.totalorder %s13, 1
    %p99 = scmp.ne.s32.totalorder %s94, %s96
    %p100 = scmp.eq.s32.totalorder %s13, 0
    %p101 = por %p99, %p100
    %p102 = scmp.ne.s32.totalorder %s94, %s96
    %p103 = scmp.eq.s32.totalorder %s18, 1
    %p104 = por %p102, %p103
    %p105 = scmp.ne.s32.totalorder %s96, %s97
    %p106 = scmp.eq.s32.totalorder %s18, 0
    %p107 = por %p105, %p106
    %p108 = scmp.ne.s32.totalorder %s96, %s97
    %p109 = scmp.eq.s32.totalorder %s19, 1
    %p110 = por %p108, %p109
    %p112 = scmp.ne.s32.totalorder %s97, %s111
    %p113 = scmp.eq.s32.totalorder %s19, 0
    %p114 = por %p112, %p113
    %s115 = ssub.s32 %s13, %s20
    %p116 = scmp.eq.s32.totalorder %s115, 0
    %s118 = sadd.s32 %s117, 1
    %s119 = scalar_select %p116, %s117, %s118
    %p122 = pneg %p116
    %p123 = scmp.eq.s32.totalorder %s13, 1
    %p124 = por %p122, %p123
    %p125 = scmp.ne.s32.totalorder %s117, %s120
    %p126 = scmp.eq.s32.totalorder %s13, 0
    %p127 = por %p125, %p126
    %p128 = scmp.ne.s32.totalorder %s117, %s120
    %p129 = scmp.eq.s32.totalorder %s18, 1
    %p130 = por %p128, %p129
    %p131 = scmp.ne.s32.totalorder %s120, %s121
    %p132 = scmp.eq.s32.totalorder %s18, 0
    %p133 = por %p131, %p132
    %p134 = scmp.ne.s32.totalorder %s120, %s121
    %p135 = scmp.eq.s32.totalorder %s19, 1
    %p136 = por %p134, %p135
    %p138 = scmp.ne.s32.totalorder %s121, %s137
    %p139 = scmp.eq.s32.totalorder %s19, 0
    %p140 = por %p138, %p139
    %s142 = sadd.s32 %s141, 1
    %p145 = scmp.eq.s32.totalorder %s13, 1
    %p146 = scmp.ne.s32.totalorder %s141, %s143
    %p147 = scmp.eq.s32.totalorder %s13, 0
    %p148 = por %p146, %p147
    %p149 = scmp.ne.s32.totalorder %s141, %s143
    %p150 = scmp.eq.s32.totalorder %s18, 1
    %p151 = por %p149, %p150
    %p152 = scmp.ne.s32.totalorder %s143, %s144
    %p153 = scmp.eq.s32.totalorder %s18, 0
    %p154 = por %p152, %p153
    %p155 = scmp.ne.s32.totalorder %s143, %s144
    %p156 = scmp.eq.s32.totalorder %s19, 1
    %p157 = por %p155, %p156
    %p159 = scmp.ne.s32.totalorder %s144, %s158
    %p160 = scmp.eq.s32.totalorder %s19, 0
    %p161 = por %p159, %p160
    %s163 = sadd.s32 %s162, 1
    %p166 = scmp.eq.s32.totalorder %s13, 1
    %p167 = scmp.ne.s32.totalorder %s162, %s164
    %p168 = scmp.eq.s32.totalorder %s13, 0
    %p169 = por %p167, %p168
    %p170 = scmp.ne.s32.totalorder %s162, %s164
    %p171 = scmp.eq.s32.totalorder %s18, 1
    %p172 = por %p170, %p171
    %p173 = scmp.ne.s32.totalorder %s164, %s165
    %p174 = scmp.eq.s32.totalorder %s18, 0
    %p175 = por %p173, %p174
    %p176 = scmp.ne.s32.totalorder %s164, %s165
    %p177 = scmp.eq.s32.totalorder %s19, 1
    %p178 = por %p176, %p177
    %p180 = scmp.ne.s32.totalorder %s165, %s179
    %p181 = scmp.eq.s32.totalorder %s19, 0
    %p182 = por %p180, %p181
    %p183 = scmp.le.s32.totalorder 1, %s13
    %p184 = scmp.lt.s32.totalorder %s13, 3
    %p185 = pnand %p183, %p184
    %p186 = pneg %p185
    // Predicated region
    $region9: #{conv_2nV1_forward.16} parent=5 // pred_check
      _
    $region10: #{conv_2nV1_forward.16} parent=5 // pred_check_branch
      %188 = sbr.rel (%p185) target = $region12
    $region11: #{conv_2nV1_forward.16} parent=5 // pred_region
      %s189 = ssub.s32 %s13, 1
      // Predicated region
      $region13: #{conv_2nV1_forward.16} parent=11 // pred_check
        %p190 = pneg %p60
      $region14: #{conv_2nV1_forward.16} parent=11 // pred_check_branch
        %192 = sbr.rel (%p190) target = $region16
      $region15: #{conv_2nV1_forward.16} parent=11 // pred_region
        _
      $region16: #{conv_2nV1_forward.16} parent=11 // pred_fallthru
        _
      // Predicated region
      $region17: #{conv_2nV1_forward.16} parent=11 // pred_check
        %p193 = pneg %p107
      $region18: #{conv_2nV1_forward.16} parent=11 // pred_check_branch
        %195 = sbr.rel (%p193) target = $region20
      $region19: #{conv_2nV1_forward.16} parent=11 // pred_region
        _
      $region20: #{conv_2nV1_forward.16} parent=11 // pred_fallthru
        _
    $region12: #{conv_2nV1_forward.16} parent=5 // pred_fallthru
      _
    %p196 = scmp.lt.s32.totalorder %s13, 2
    // Predicated region
    $region21: #{conv_2nV1_forward.16} parent=5 // pred_check
      %p197 = pneg %p196
    $region22: #{conv_2nV1_forward.16} parent=5 // pred_check_branch
      %199 = sbr.rel (%p197) target = $region24
    $region23: #{conv_2nV1_forward.16} parent=5 // pred_region
      // Predicated region
      $region25: #{conv_2nV1_forward.16} parent=23 // pred_check
        %p200 = pneg %p33
      $region26: #{conv_2nV1_forward.16} parent=23 // pred_check_branch
        %202 = sbr.rel (%p200) target = $region28
      $region27: #{conv_2nV1_forward.16} parent=23 // pred_region
        %s203 = smul.u32 32, %s13
        %p204 = scmp.lt.s32.totalorder %s203, 63
        %s205 = scalar_select %p204, %s203, 63
        %s206 = smul.addr %s205, 8
        %s207 = scalar_lea.vmem %s0, %s206
        %s208 = smul.u32 32, %s13
      $region28: #{conv_2nV1_forward.16} parent=23 // pred_fallthru
        _
      // Predicated region
      $region29: #{conv_2nV1_forward.16} parent=23 // pred_check
        %p209 = pneg %p80
      $region30: #{conv_2nV1_forward.16} parent=23 // pred_check_branch
        %211 = sbr.rel (%p209) target = $region32
      $region31: #{conv_2nV1_forward.16} parent=23 // pred_region
        %s212 = smul.u32 32, %s13
        %p213 = scmp.lt.s32.totalorder %s212, 63
        %s214 = scalar_select %p213, %s212, 63
        %s215 = smul.addr %s214, 8
        %s216 = scalar_lea.vmem %s2, %s215
        %s217 = smul.u32 32, %s13
      $region32: #{conv_2nV1_forward.16} parent=23 // pred_fallthru
        _
    $region24: #{conv_2nV1_forward.16} parent=5 // pred_fallthru
      _
    %p218 = scmp.le.s32.totalorder 1, %s13
    %p219 = scmp.lt.s32.totalorder %s13, 3
    %p220 = pnand %p218, %p219
    %p221 = pneg %p220
    // Predicated region
    $region33: #{conv_2nV1_forward.16} parent=5 // pred_check
      _
    $region34: #{conv_2nV1_forward.16} parent=5 // pred_check_branch
      %223 = sbr.rel (%p220) target = $region36
    $region35: #{conv_2nV1_forward.16} parent=5 // pred_region
      %s224 = ssub.s32 %s13, 1
      %s225 = smul.u32 32, %s18
      %p226 = scmp.lt.s32.totalorder %s225, 63
      %s227 = scalar_select %p226, %s225, 63
      %s228 = smul.addr %s227, 8
      %s229 = scalar_lea.vmem %s0, %s228
      %p230 = pneg %p39
      %p231 = pneg %p36
      %p232 = pneg %p60
      %p233 = pneg %p57
      %s234 = smul.u32 32, %s18
      %p235 = scmp.lt.s32.totalorder %s234, 63
      %s236 = scalar_select %p235, %s234, 63
      %s237 = smul.addr %s236, 8
      %s238 = scalar_lea.vmem %s2, %s237
      %p239 = pneg %p86
      %p240 = pneg %p83
      %p241 = pneg %p107
      %p242 = pneg %p104
      %p243 = pneg %p133
      %p244 = pneg %p130
      %s245 = smul.u32 32, %s18
      %p246 = scmp.lt.s32.totalorder %s245, 63
      %s247 = scalar_select %p246, %s245, 63
      %s248 = smul.addr %s247, 8
      %s249 = scalar_lea.vmem %s4, %s248
      %p250 = pneg %p154
      %p251 = pneg %p151
      %p252 = pneg %p175
      %p253 = pneg %p172
      %s254 = smul.u32 32, %s18
      %p255 = scmp.lt.s32.totalorder %s254, 63
      %s256 = scalar_select %p255, %s254, 63
      %s257 = smul.addr %s256, 8
      %s258 = scalar_lea.vmem %s0, %s257
      %s259 = smul.u32 32, %s18
      %s260 = smul.u32 32, %s18
      %p261 = scmp.lt.s32.totalorder %s260, 63
      %s262 = scalar_select %p261, %s260, 63
      %s263 = smul.addr %s262, 8
      %s264 = scalar_lea.vmem %s2, %s263
      %s265 = smul.u32 32, %s18
      %s266 = smul.u32 32, %s18
      %p267 = scmp.lt.s32.totalorder %s266, 63
      %s268 = scalar_select %p267, %s266, 63
      %s269 = smul.addr %s268, 8
      %s270 = scalar_lea.vmem %s4, %s269
      %s271 = smul.u32 32, %s18
      %p272 = scmp.eq.s32.totalorder %s18, 0
      // Predicated region
      $region37: #{conv_2nV1_forward.16} parent=35 // pred_check
        %p273 = pneg %p272
      $region38: #{conv_2nV1_forward.16} parent=35 // pred_check_branch
        %275 = sbr.rel (%p273) target = $region40
      $region39: #{conv_2nV1_forward.16} parent=35 // pred_region
        %vm276 = vcmask 57344
        %277 = vst.msk [vmem:[%s5] sm:$0x1] %vm276, 0.0
        %278 = vst.msk [vmem:[%s6] sm:$0x1] %vm276, 0.0
      $region40: #{conv_2nV1_forward.16} parent=35 // pred_fallthru
        _
      %v279 = vld [vmem:[%s258] sm:$0xff]
      %v280 = vld [vmem:[%s258 + $0x8] sm:$0xff]
      %v281 = vld [vmem:[%s258 + $0x10] sm:$0xff]
      %v282 = vld [vmem:[%s258 + $0x18] sm:$0xff]
      %v283 = vld [vmem:[%s258 + $0x20] sm:$0xff]
      %v284 = vld [vmem:[%s258 + $0x28] sm:$0xff]
      %v285 = vld [vmem:[%s258 + $0x30] sm:$0xff]
      %v286 = vld [vmem:[%s258 + $0x38] sm:$0xff]
      %v287 = vld [vmem:[%s258 + $0x40] sm:$0xff]
      %v288 = vld [vmem:[%s258 + $0x48] sm:$0xff]
      %v289 = vld [vmem:[%s258 + $0x50] sm:$0xff]
      %v290 = vld [vmem:[%s258 + $0x58] sm:$0xff]
      %v291 = vld [vmem:[%s258 + $0x60] sm:$0xff]
      %v292 = vld [vmem:[%s258 + $0x68] sm:$0xff]
      %v293 = vld [vmem:[%s258 + $0x70] sm:$0xff]
      %v294 = vld [vmem:[%s258 + $0x78] sm:$0xff]
      %v295 = vld [vmem:[%s258 + $0x80] sm:$0xff]
      %v296 = vld [vmem:[%s258 + $0x88] sm:$0xff]
      %v297 = vld [vmem:[%s258 + $0x90] sm:$0xff]
      %v298 = vld [vmem:[%s258 + $0x98] sm:$0xff]
      %v299 = vld [vmem:[%s258 + $0xa0] sm:$0xff]
      %v300 = vld [vmem:[%s258 + $0xa8] sm:$0xff]
      %v301 = vld [vmem:[%s258 + $0xb0] sm:$0xff]
      %v302 = vld [vmem:[%s258 + $0xb8] sm:$0xff]
      %v303 = vld [vmem:[%s258 + $0xc0] sm:$0xff]
      %v304 = vld [vmem:[%s258 + $0xc8] sm:$0xff]
      %v305 = vld [vmem:[%s258 + $0xd0] sm:$0xff]
      %v306 = vld [vmem:[%s258 + $0xd8] sm:$0xff]
      %v307 = vld [vmem:[%s258 + $0xe0] sm:$0xff]
      %v308 = vld [vmem:[%s258 + $0xe8] sm:$0xff]
      %v309 = vld [vmem:[%s258 + $0xf0] sm:$0xff]
      %v310 = vld [vmem:[%s258 + $0xf8] sm:$0xff]
      %v311 = vld [vmem:[%s1] sm:$0xff]
      %v312 = vld [vmem:[%s1 + $0x8] sm:$0xff]
      %v313 = vld [vmem:[%s1 + $0x10] sm:$0xff]
      %v314 = vld [vmem:[%s1 + $0x18] sm:$0xff]
      %v315 = vld [vmem:[%s1 + $0x20] sm:$0xff]
      %v316 = vld [vmem:[%s1 + $0x28] sm:$0xff]
      %v317 = vld [vmem:[%s1 + $0x30] sm:$0xff]
      %v318 = vld [vmem:[%s1 + $0x38] sm:$0xff]
      %v319 = vld [vmem:[%s1 + $0x40] sm:$0xff]
      %v320 = vld [vmem:[%s264] sm:$0xff]
      %v321 = vld [vmem:[%s264 + $0x8] sm:$0xff]
      %v322 = vld [vmem:[%s264 + $0x10] sm:$0xff]
      %v323 = vld [vmem:[%s264 + $0x18] sm:$0xff]
      %v324 = vld [vmem:[%s264 + $0x20] sm:$0xff]
      %v325 = vld [vmem:[%s264 + $0x28] sm:$0xff]
      %v326 = vld [vmem:[%s264 + $0x30] sm:$0xff]
      %v327 = vld [vmem:[%s264 + $0x38] sm:$0xff]
      %v328 = vld [vmem:[%s264 + $0x40] sm:$0xff]
      %v329 = vld [vmem:[%s264 + $0x48] sm:$0xff]
      %v330 = vld [vmem:[%s264 + $0x50] sm:$0xff]
      %v331 = vld [vmem:[%s264 + $0x58] sm:$0xff]
      %v332 = vld [vmem:[%s264 + $0x60] sm:$0xff]
      %v333 = vld [vmem:[%s264 + $0x68] sm:$0xff]
      %v334 = vld [vmem:[%s264 + $0x70] sm:$0xff]
      %v335 = vld [vmem:[%s264 + $0x78] sm:$0xff]
      %v336 = vld [vmem:[%s264 + $0x80] sm:$0xff]
      %v337 = vld [vmem:[%s264 + $0x88] sm:$0xff]
      %v338 = vld [vmem:[%s264 + $0x90] sm:$0xff]
      %v339 = vld [vmem:[%s264 + $0x98] sm:$0xff]
      %v340 = vld [vmem:[%s264 + $0xa0] sm:$0xff]
      %v341 = vld [vmem:[%s264 + $0xa8] sm:$0xff]
      %v342 = vld [vmem:[%s264 + $0xb0] sm:$0xff]
      %v343 = vld [vmem:[%s264 + $0xb8] sm:$0xff]
      %v344 = vld [vmem:[%s264 + $0xc0] sm:$0xff]
      %v345 = vld [vmem:[%s264 + $0xc8] sm:$0xff]
      %v346 = vld [vmem:[%s264 + $0xd0] sm:$0xff]
      %v347 = vld [vmem:[%s264 + $0xd8] sm:$0xff]
      %v348 = vld [vmem:[%s264 + $0xe0] sm:$0xff]
      %v349 = vld [vmem:[%s264 + $0xe8] sm:$0xff]
      %v350 = vld [vmem:[%s264 + $0xf0] sm:$0xff]
      %v351 = vld [vmem:[%s264 + $0xf8] sm:$0xff]
      %v352 = vld [vmem:[%s3] sm:$0xff]
      %v353 = vld [vmem:[%s3 + $0x8] sm:$0xff]
      %v354 = vld [vmem:[%s3 + $0x10] sm:$0xff]
      %v355 = vld [vmem:[%s3 + $0x18] sm:$0xff]
      %v356 = vld [vmem:[%s3 + $0x20] sm:$0xff]
      %v357 = vld [vmem:[%s3 + $0x28] sm:$0xff]
      %v358 = vld [vmem:[%s3 + $0x30] sm:$0xff]
      %v359 = vld [vmem:[%s3 + $0x38] sm:$0xff]
      %v360 = vld [vmem:[%s3 + $0x40] sm:$0xff]
      %vm361 = vcmask 588800
      %v363 = vsel %vm361, %v320, 0
      %v366 = vsel %vm361, %v321, 0
      %v369 = vsel %vm361, %v322, 0
      %v372 = vsel %vm361, %v323, 0
      %v375 = vsel %vm361, %v324, 0
      %v378 = vsel %vm361, %v325, 0
      %v381 = vsel %vm361, %v326, 0
      %v384 = vsel %vm361, %v327, 0
      %v387 = vsel %vm361, %v328, 0
      %v390 = vsel %vm361, %v329, 0
      %v393 = vsel %vm361, %v330, 0
      %v396 = vsel %vm361, %v331, 0
      %v399 = vsel %vm361, %v332, 0
      %v402 = vsel %vm361, %v333, 0
      %v405 = vsel %vm361, %v334, 0
      %v408 = vsel %vm361, %v335, 0
      %v411 = vsel %vm361, %v336, 0
      %v414 = vsel %vm361, %v337, 0
      %v417 = vsel %vm361, %v338, 0
      %v420 = vsel %vm361, %v339, 0
      %v423 = vsel %vm361, %v340, 0
      %v426 = vsel %vm361, %v341, 0
      %v429 = vsel %vm361, %v342, 0
      %v432 = vsel %vm361, %v343, 0
      %v435 = vsel %vm361, %v344, 0
      %v438 = vsel %vm361, %v345, 0
      %v441 = vsel %vm361, %v346, 0
      %v444 = vsel %vm361, %v347, 0
      %v447 = vsel %vm361, %v348, 0
      %v450 = vsel %vm361, %v349, 0
      %v453 = vsel %vm361, %v350, 0
      %v456 = vsel %vm361, %v351, 0
      %458 = vmatprep.subr.mxu0 0.0
      %459 = vmatpush1.msra.mxu0 %v352
      %460 = vmatprep.subr.mxu0 0.0
      %461 = vmatpush1.msra.mxu0 %v353
      %462 = vmatprep.subr.mxu0 0.0
      %463 = vmatpush1.msra.mxu0 %v354
      %464 = vmatprep.subr.mxu0 0.0
      %465 = vmatpush1.msra.mxu0 %v355
      %466 = vmatprep.subr.mxu0 0.0
      %467 = vmatpush1.msra.mxu0 %v356
      %468 = vmatprep.subr.mxu0 0.0
      %469 = vmatpush1.msra.mxu0 %v357
      %470 = vmatprep.subr.mxu0 0.0
      %471 = vmatpush1.msra.mxu0 %v358
      %472 = vmatprep.subr.mxu0 0.0
      %473 = vmatpush1.msra.mxu0 %v359
      %474 = vmatprep.subr.mxu0 0.0
      %475 = vmatpush1.msra.mxu0 %v360
      %476 = vmatprep.subr.mxu0 0.0
      %477 = vmatpush1.msra.mxu0 0.0
      %478 = vmatprep.subr.mxu0 0.0
      %479 = vmatpush1.msra.mxu0 0.0
      %480 = vmatprep.subr.mxu0 0.0
      %481 = vmatpush1.msra.mxu0 0.0
      %482 = vmatprep.subr.mxu0 0.0
      %483 = vmatpush1.msra.mxu0 0.0
      %484 = vmatprep.subr.mxu0 0.0
      %485 = vmatpush1.msra.mxu0 0.0
      %486 = vmatprep.subr.mxu0 0.0
      %487 = vmatpush1.msra.mxu0 0.0
      %488 = vmatprep.subr.mxu0 0.0
      %489 = vmatpush1.msra.mxu0 0.0
      %490 = vmatprep.subr.mxu0 0.0
      %491 = vmatpush1.msra.mxu0 0.0
      %492 = vmatprep.subr.mxu0 0.0
      %493 = vmatpush1.msra.mxu0 0.0
      %494 = vmatprep.subr.mxu0 0.0
      %495 = vmatpush1.msra.mxu0 0.0
      %496 = vmatprep.subr.mxu0 0.0
      %497 = vmatpush1.msra.mxu0 0.0
      %498 = vmatprep.subr.mxu0 0.0
      %499 = vmatpush1.msra.mxu0 0.0
      %500 = vmatprep.subr.mxu0 0.0
      %501 = vmatpush1.msra.mxu0 0.0
      %502 = vmatprep.subr.mxu0 0.0
      %503 = vmatpush1.msra.mxu0 0.0
      %504 = vmatprep.subr.mxu0 0.0
      %505 = vmatpush1.msra.mxu0 0.0
      %506 = vmatprep.subr.mxu0 0.0
      %507 = vmatpush1.msra.mxu0 0.0
      %508 = vmatprep.subr.mxu0 0.0
      %509 = vmatpush1.msra.mxu0 0.0
      %510 = vmatprep.subr.mxu0 0.0
      %511 = vmatpush1.msra.mxu0 0.0
      %512 = vmatprep.subr.mxu0 0.0
      %513 = vmatpush1.msra.mxu0 0.0
      %514 = vmatprep.subr.mxu0 0.0
      %515 = vmatpush1.msra.mxu0 0.0
      %516 = vmatprep.subr.mxu0 0.0
      %517 = vmatpush1.msra.mxu0 0.0
      %518 = vmatprep.subr.mxu0 0.0
      %519 = vmatpush1.msra.mxu0 0.0
      %520 = vmatprep.subr.mxu0 0.0
      %521 = vmatpush1.msra.mxu0 0.0
      %522 = vmatprep.mubr.f32.mxu0 0.0
      %523 = vmatmul.mubr.f32.gmra.mrb[0].mxu0 %v363
      %v524 = vpop.f32.mrb[0].mxu0
      %v525 = vadd.f32 0.0, %v524
      %v526 = vpop.f32.mrb[0].mxu0
      %527 = vmatprep.mubr.f32.mxu0 0.0
      %528 = vmatmul.mubr.f32.gmra.mrb[0].mxu0 %v366
      %v529 = vpop.f32.mrb[0].mxu0
      %v530 = vadd.f32 0.0, %v529
      %v531 = vpop.f32.mrb[0].mxu0
      %532 = vmatprep.mubr.f32.mxu0 0.0
      %533 = vmatmul.mubr.f32.gmra.mrb[0].mxu0 %v369
      %v534 = vpop.f32.mrb[0].mxu0
      %v535 = vadd.f32 0.0, %v534
      %v536 = vpop.f32.mrb[0].mxu0
      %537 = vmatprep.mubr.f32.mxu0 0.0
      %538 = vmatmul.mubr.f32.gmra.mrb[0].mxu0 %v372
      %v539 = vpop.f32.mrb[0].mxu0
      %v540 = vadd.f32 0.0, %v539
      %v541 = vpop.f32.mrb[0].mxu0
      %542 = vmatprep.mubr.f32.mxu0 0.0
      %543 = vmatmul.mubr.f32.gmra.mrb[0].mxu0 %v375
      %v544 = vpop.f32.mrb[0].mxu0
      %v545 = vadd.f32 0.0, %v544
      %v546 = vpop.f32.mrb[0].mxu0
      %547 = vmatprep.mubr.f32.mxu0 0.0
      %548 = vmatmul.mubr.f32.gmra.mrb[0].mxu0 %v378
      %v549 = vpop.f32.mrb[0].mxu0
      %v550 = vadd.f32 0.0, %v549
      %v551 = vpop.f32.mrb[0].mxu0
      %552 = vmatprep.mubr.f32.mxu0 0.0
      %553 = vmatmul.mubr.f32.gmra.mrb[0].mxu0 %v381
      %v554 = vpop.f32.mrb[0].mxu0
      %v555 = vadd.f32 0.0, %v554
      %v556 = vpop.f32.mrb[0].mxu0
      %557 = vmatprep.mubr.f32.mxu0 0.0
      %558 = vmatmul.mubr.f32.gmra.mrb[0].mxu0 %v384
      %v559 = vpop.f32.mrb[0].mxu0
      %v560 = vadd.f32 0.0, %v559
      %v561 = vpop.f32.mrb[0].mxu0
      %562 = vmatprep.mubr.f32.mxu0 0.0
      %563 = vmatmul.mubr.f32.gmra.mrb[0].mxu0 %v387
      %v564 = vpop.f32.mrb[0].mxu0
      %v565 = vadd.f32 0.0, %v564
      %v566 = vpop.f32.mrb[0].mxu0
      %567 = vmatprep.mubr.f32.mxu0 0.0
      %568 = vmatmul.mubr.f32.gmra.mrb[0].mxu0 %v390
      %v569 = vpop.f32.mrb[0].mxu0
      %v570 = vadd.f32 0.0, %v569
      %v571 = vpop.f32.mrb[0].mxu0
      %572 = vmatprep.mubr.f32.mxu0 0.0
      %573 = vmatmul.mubr.f32.gmra.mrb[0].mxu0 %v393
      %v574 = vpop.f32.mrb[0].mxu0
      %v575 = vadd.f32 0.0, %v574
      %v576 = vpop.f32.mrb[0].mxu0
      %577 = vmatprep.mubr.f32.mxu0 0.0
      %578 = vmatmul.mubr.f32.gmra.mrb[0].mxu0 %v396
      %v579 = vpop.f32.mrb[0].mxu0
      %v580 = vadd.f32 0.0, %v579
      %v581 = vpop.f32.mrb[0].mxu0
      %582 = vmatprep.mubr.f32.mxu0 0.0
      %583 = vmatmul.mubr.f32.gmra.mrb[0].mxu0 %v399
      %v584 = vpop.f32.mrb[0].mxu0
      %v585 = vadd.f32 0.0, %v584
      %v586 = vpop.f32.mrb[0].mxu0
      %587 = vmatprep.mubr.f32.mxu0 0.0
      %588 = vmatmul.mubr.f32.gmra.mrb[0].mxu0 %v402
      %v589 = vpop.f32.mrb[0].mxu0
      %v590 = vadd.f32 0.0, %v589
      %v591 = vpop.f32.mrb[0].mxu0
      %592 = vmatprep.mubr.f32.mxu0 0.0
      %593 = vmatmul.mubr.f32.gmra.mrb[0].mxu0 %v405
      %v594 = vpop.f32.mrb[0].mxu0
      %v595 = vadd.f32 0.0, %v594
      %v596 = vpop.f32.mrb[0].mxu0
      %597 = vmatprep.mubr.f32.mxu0 0.0
      %598 = vmatmul.mubr.f32.gmra.mrb[0].mxu0 %v408
      %v599 = vpop.f32.mrb[0].mxu0
      %v600 = vadd.f32 0.0, %v599
      %v601 = vpop.f32.mrb[0].mxu0
      %602 = vmatprep.mubr.f32.mxu0 0.0
      %603 = vmatmul.mubr.f32.gmra.mrb[0].mxu0 %v411
      %v604 = vpop.f32.mrb[0].mxu0
      %v605 = vadd.f32 0.0, %v604
      %v606 = vpop.f32.mrb[0].mxu0
      %607 = vmatprep.mubr.f32.mxu0 0.0
      %608 = vmatmul.mubr.f32.gmra.mrb[0].mxu0 %v414
      %v609 = vpop.f32.mrb[0].mxu0
      %v610 = vadd.f32 0.0, %v609
      %v611 = vpop.f32.mrb[0].mxu0
      %612 = vmatprep.mubr.f32.mxu0 0.0
      %613 = vmatmul.mubr.f32.gmra.mrb[0].mxu0 %v417
      %v614 = vpop.f32.mrb[0].mxu0
      %v615 = vadd.f32 0.0, %v614
      %v616 = vpop.f32.mrb[0].mxu0
      %617 = vmatprep.mubr.f32.mxu0 0.0
      %618 = vmatmul.mubr.f32.gmra.mrb[0].mxu0 %v420
      %v619 = vpop.f32.mrb[0].mxu0
      %v620 = vadd.f32 0.0, %v619
      %v621 = vpop.f32.mrb[0].mxu0
      %622 = vmatprep.mubr.f32.mxu0 0.0
      %623 = vmatmul.mubr.f32.gmra.mrb[0].mxu0 %v423
      %v624 = vpop.f32.mrb[0].mxu0
      %v625 = vadd.f32 0.0, %v624
      %v626 = vpop.f32.mrb[0].mxu0
      %627 = vmatprep.mubr.f32.mxu0 0.0
      %628 = vmatmul.mubr.f32.gmra.mrb[0].mxu0 %v426
      %v629 = vpop.f32.mrb[0].mxu0
      %v630 = vadd.f32 0.0, %v629
      %v631 = vpop.f32.mrb[0].mxu0
      %632 = vmatprep.mubr.f32.mxu0 0.0
      %633 = vmatmul.mubr.f32.gmra.mrb[0].mxu0 %v429
      %v634 = vpop.f32.mrb[0].mxu0
      %v635 = vadd.f32 0.0, %v634
      %v636 = vpop.f32.mrb[0].mxu0
      %637 = vmatprep.mubr.f32.mxu0 0.0
      %638 = vmatmul.mubr.f32.gmra.mrb[0].mxu0 %v432
      %v639 = vpop.f32.mrb[0].mxu0
      %v640 = vadd.f32 0.0, %v639
      %v641 = vpop.f32.mrb[0].mxu0
      %642 = vmatprep.mubr.f32.mxu0 0.0
      %643 = vmatmul.mubr.f32.gmra.mrb[0].mxu0 %v435
      %v644 = vpop.f32.mrb[0].mxu0
      %v645 = vadd.f32 0.0, %v644
      %v646 = vpop.f32.mrb[0].mxu0
      %647 = vmatprep.mubr.f32.mxu0 0.0
      %648 = vmatmul.mubr.f32.gmra.mrb[0].mxu0 %v438
      %v649 = vpop.f32.mrb[0].mxu0
      %v650 = vadd.f32 0.0, %v649
      %v651 = vpop.f32.mrb[0].mxu0
      %652 = vmatprep.mubr.f32.mxu0 0.0
      %653 = vmatmul.mubr.f32.gmra.mrb[0].mxu0 %v441
      %v654 = vpop.f32.mrb[0].mxu0
      %v655 = vadd.f32 0.0, %v654
      %v656 = vpop.f32.mrb[0].mxu0
      %657 = vmatprep.mubr.f32.mxu0 0.0
      %658 = vmatmul.mubr.f32.gmra.mrb[0].mxu0 %v444
      %v659 = vpop.f32.mrb[0].mxu0
      %v660 = vadd.f32 0.0, %v659
      %v661 = vpop.f32.mrb[0].mxu0
      %662 = vmatprep.mubr.f32.mxu0 0.0
      %663 = vmatmul.mubr.f32.gmra.mrb[0].mxu0 %v447
      %v664 = vpop.f32.mrb[0].mxu0
      %v665 = vadd.f32 0.0, %v664
      %v666 = vpop.f32.mrb[0].mxu0
      %667 = vmatprep.mubr.f32.mxu0 0.0
      %668 = vmatmul.mubr.f32.gmra.mrb[0].mxu0 %v450
      %v669 = vpop.f32.mrb[0].mxu0
      %v670 = vadd.f32 0.0, %v669
      %v671 = vpop.f32.mrb[0].mxu0
      %672 = vmatprep.mubr.f32.mxu0 0.0
      %673 = vmatmul.mubr.f32.gmra.mrb[0].mxu0 %v453
      %v674 = vpop.f32.mrb[0].mxu0
      %v675 = vadd.f32 0.0, %v674
      %v676 = vpop.f32.mrb[0].mxu0
      %677 = vmatprep.mubr.f32.mxu0 0.0
      %678 = vmatmul.mubr.f32.gmra.mrb[0].mxu0 %v456
      %v679 = vpop.f32.mrb[0].mxu0
      %v680 = vadd.f32 0.0, %v679
      %v681 = vpop.f32.mrb[0].mxu0
      %682 = vdwg.mxu0
      %v684 = vsel %vm361, %v279, 0
      %v687 = vsel %vm361, %v280, 0
      %v690 = vsel %vm361, %v281, 0
      %v693 = vsel %vm361, %v282, 0
      %v696 = vsel %vm361, %v283, 0
      %v699 = vsel %vm361, %v284, 0
      %v702 = vsel %vm361, %v285, 0
      %v705 = vsel %vm361, %v286, 0
      %v708 = vsel %vm361, %v287, 0
      %v711 = vsel %vm361, %v288, 0
      %v714 = vsel %vm361, %v289, 0
      %v717 = vsel %vm361, %v290, 0
      %v720 = vsel %vm361, %v291, 0
      %v723 = vsel %vm361, %v292, 0
      %v726 = vsel %vm361, %v293, 0
      %v729 = vsel %vm361, %v294, 0
      %v732 = vsel %vm361, %v295, 0
      %v735 = vsel %vm361, %v296, 0
      %v738 = vsel %vm361, %v297, 0
      %v741 = vsel %vm361, %v298, 0
      %v744 = vsel %vm361, %v299, 0
      %v747 = vsel %vm361, %v300, 0
      %v750 = vsel %vm361, %v301, 0
      %v753 = vsel %vm361, %v302, 0
      %v756 = vsel %vm361, %v303, 0
      %v759 = vsel %vm361, %v304, 0
      %v762 = vsel %vm361, %v305, 0
      %v765 = vsel %vm361, %v306, 0
      %v768 = vsel %vm361, %v307, 0
      %v771 = vsel %vm361, %v308, 0
      %v774 = vsel %vm361, %v309, 0
      %v777 = vsel %vm361, %v310, 0
      %779 = vmatprep.subr.mxu0 0.0
      %780 = vmatpush1.msra.mxu0 %v311
      %781 = vmatprep.subr.mxu0 0.0
      %782 = vmatpush1.msra.mxu0 %v312
      %783 = vmatprep.subr.mxu0 0.0
      %784 = vmatpush1.msra.mxu0 %v313
      %785 = vmatprep.subr.mxu0 0.0
      %786 = vmatpush1.msra.mxu0 %v314
      %787 = vmatprep.subr.mxu0 0.0
      %788 = vmatpush1.msra.mxu0 %v315
      %789 = vmatprep.subr.mxu0 0.0
      %790 = vmatpush1.msra.mxu0 %v316
      %791 = vmatprep.subr.mxu0 0.0
      %792 = vmatpush1.msra.mxu0 %v317
      %793 = vmatprep.subr.mxu0 0.0
      %794 = vmatpush1.msra.mxu0 %v318
      %795 = vmatprep.subr.mxu0 0.0
      %796 = vmatpush1.msra.mxu0 %v319
      %797 = vmatprep.subr.mxu0 0.0
      %798 = vmatpush1.msra.mxu0 0.0
      %799 = vmatprep.subr.mxu0 0.0
      %800 = vmatpush1.msra.mxu0 0.0
      %801 = vmatprep.subr.mxu0 0.0
      %802 = vmatpush1.msra.mxu0 0.0
      %803 = vmatprep.subr.mxu0 0.0
      %804 = vmatpush1.msra.mxu0 0.0
      %805 = vmatprep.subr.mxu0 0.0
      %806 = vmatpush1.msra.mxu0 0.0
      %807 = vmatprep.subr.mxu0 0.0
      %808 = vmatpush1.msra.mxu0 0.0
      %809 = vmatprep.subr.mxu0 0.0
      %810 = vmatpush1.msra.mxu0 0.0
      %811 = vmatprep.subr.mxu0 0.0
      %812 = vmatpush1.msra.mxu0 0.0
      %813 = vmatprep.subr.mxu0 0.0
      %814 = vmatpush1.msra.mxu0 0.0
      %815 = vmatprep.subr.mxu0 0.0
      %816 = vmatpush1.msra.mxu0 0.0
      %817 = vmatprep.subr.mxu0 0.0
      %818 = vmatpush1.msra.mxu0 0.0
      %819 = vmatprep.subr.mxu0 0.0
      %820 = vmatpush1.msra.mxu0 0.0
      %821 = vmatprep.subr.mxu0 0.0
      %822 = vmatpush1.msra.mxu0 0.0
      %823 = vmatprep.subr.mxu0 0.0
      %824 = vmatpush1.msra.mxu0 0.0
      %825 = vmatprep.subr.mxu0 0.0
      %826 = vmatpush1.msra.mxu0 0.0
      %827 = vmatprep.subr.mxu0 0.0
      %828 = vmatpush1.msra.mxu0 0.0
      %829 = vmatprep.subr.mxu0 0.0
      %830 = vmatpush1.msra.mxu0 0.0
      %831 = vmatprep.subr.mxu0 0.0
      %832 = vmatpush1.msra.mxu0 0.0
      %833 = vmatprep.subr.mxu0 0.0
      %834 = vmatpush1.msra.mxu0 0.0
      %835 = vmatprep.subr.mxu0 0.0
      %836 = vmatpush1.msra.mxu0 0.0
      %837 = vmatprep.subr.mxu0 0.0
      %838 = vmatpush1.msra.mxu0 0.0
      %839 = vmatprep.subr.mxu0 0.0
      %840 = vmatpush1.msra.mxu0 0.0
      %841 = vmatprep.subr.mxu0 0.0
      %842 = vmatpush1.msra.mxu0 0.0
      %843 = vmatprep.mubr.f32.mxu0 0.0
      %844 = vmatmul.mubr.f32.gmra.mrb[0].mxu0 %v684
      %v845 = vpop.f32.mrb[0].mxu0
      %v846 = vadd.f32 %v525, %v845
      %v847 = vpop.f32.mrb[0].mxu0
      %848 = vmatprep.mubr.f32.mxu0 0.0
      %849 = vmatmul.mubr.f32.gmra.mrb[0].mxu0 %v687
      %v850 = vpop.f32.mrb[0].mxu0
      %v851 = vadd.f32 %v530, %v850
      %v852 = vpop.f32.mrb[0].mxu0
      %853 = vmatprep.mubr.f32.mxu0 0.0
      %854 = vmatmul.mubr.f32.gmra.mrb[0].mxu0 %v690
      %v855 = vpop.f32.mrb[0].mxu0
      %v856 = vadd.f32 %v535, %v855
      %v857 = vpop.f32.mrb[0].mxu0
      %858 = vmatprep.mubr.f32.mxu0 0.0
      %859 = vmatmul.mubr.f32.gmra.mrb[0].mxu0 %v693
      %v860 = vpop.f32.mrb[0].mxu0
      %v861 = vadd.f32 %v540, %v860
      %v862 = vpop.f32.mrb[0].mxu0
      %863 = vmatprep.mubr.f32.mxu0 0.0
      %864 = vmatmul.mubr.f32.gmra.mrb[0].mxu0 %v696
      %v865 = vpop.f32.mrb[0].mxu0
      %v866 = vadd.f32 %v545, %v865
      %v867 = vpop.f32.mrb[0].mxu0
      %868 = vmatprep.mubr.f32.mxu0 0.0
      %869 = vmatmul.mubr.f32.gmra.mrb[0].mxu0 %v699
      %v870 = vpop.f32.mrb[0].mxu0
      %v871 = vadd.f32 %v550, %v870
      %v872 = vpop.f32.mrb[0].mxu0
      %873 = vmatprep.mubr.f32.mxu0 0.0
      %874 = vmatmul.mubr.f32.gmra.mrb[0].mxu0 %v702
      %v875 = vpop.f32.mrb[0].mxu0
      %v876 = vadd.f32 %v555, %v875
      %v877 = vpop.f32.mrb[0].mxu0
      %878 = vmatprep.mubr.f32.mxu0 0.0
      %879 = vmatmul.mubr.f32.gmra.mrb[0].mxu0 %v705
      %v880 = vpop.f32.mrb[0].mxu0
      %v881 = vadd.f32 %v560, %v880
      %v882 = vpop.f32.mrb[0].mxu0
      %883 = vmatprep.mubr.f32.mxu0 0.0
      %884 = vmatmul.mubr.f32.gmra.mrb[0].mxu0 %v708
      %v885 = vpop.f32.mrb[0].mxu0
      %v886 = vadd.f32 %v565, %v885
      %v887 = vpop.f32.mrb[0].mxu0
      %888 = vmatprep.mubr.f32.mxu0 0.0
      %889 = vmatmul.mubr.f32.gmra.mrb[0].mxu0 %v711
      %v890 = vpop.f32.mrb[0].mxu0
      %v891 = vadd.f32 %v570, %v890
      %v892 = vpop.f32.mrb[0].mxu0
      %893 = vmatprep.mubr.f32.mxu0 0.0
      %894 = vmatmul.mubr.f32.gmra.mrb[0].mxu0 %v714
      %v895 = vpop.f32.mrb[0].mxu0
      %v896 = vadd.f32 %v575, %v895
      %v897 = vpop.f32.mrb[0].mxu0
      %898 = vmatprep.mubr.f32.mxu0 0.0
      %899 = vmatmul.mubr.f32.gmra.mrb[0].mxu0 %v717
      %v900 = vpop.f32.mrb[0].mxu0
      %v901 = vadd.f32 %v580, %v900
      %v902 = vpop.f32.mrb[0].mxu0
      %903 = vmatprep.mubr.f32.mxu0 0.0
      %904 = vmatmul.mubr.f32.gmra.mrb[0].mxu0 %v720
      %v905 = vpop.f32.mrb[0].mxu0
      %v906 = vadd.f32 %v585, %v905
      %v907 = vpop.f32.mrb[0].mxu0
      %908 = vmatprep.mubr.f32.mxu0 0.0
      %909 = vmatmul.mubr.f32.gmra.mrb[0].mxu0 %v723
      %v910 = vpop.f32.mrb[0].mxu0
      %v911 = vadd.f32 %v590, %v910
      %v912 = vpop.f32.mrb[0].mxu0
      %913 = vmatprep.mubr.f32.mxu0 0.0
      %914 = vmatmul.mubr.f32.gmra.mrb[0].mxu0 %v726
      %v915 = vpop.f32.mrb[0].mxu0
      %v916 = vadd.f32 %v595, %v915
      %v917 = vpop.f32.mrb[0].mxu0
      %918 = vmatprep.mubr.f32.mxu0 0.0
      %919 = vmatmul.mubr.f32.gmra.mrb[0].mxu0 %v729
      %v920 = vpop.f32.mrb[0].mxu0
      %v921 = vadd.f32 %v600, %v920
      %v922 = vpop.f32.mrb[0].mxu0
      %923 = vmatprep.mubr.f32.mxu0 0.0
      %924 = vmatmul.mubr.f32.gmra.mrb[0].mxu0 %v732
      %v925 = vpop.f32.mrb[0].mxu0
      %v926 = vadd.f32 %v605, %v925
      %v927 = vpop.f32.mrb[0].mxu0
      %928 = vmatprep.mubr.f32.mxu0 0.0
      %929 = vmatmul.mubr.f32.gmra.mrb[0].mxu0 %v735
      %v930 = vpop.f32.mrb[0].mxu0
      %v931 = vadd.f32 %v610, %v930
      %v932 = vpop.f32.mrb[0].mxu0
      %933 = vmatprep.mubr.f32.mxu0 0.0
      %934 = vmatmul.mubr.f32.gmra.mrb[0].mxu0 %v738
      %v935 = vpop.f32.mrb[0].mxu0
      %v936 = vadd.f32 %v615, %v935
      %v937 = vpop.f32.mrb[0].mxu0
      %938 = vmatprep.mubr.f32.mxu0 0.0
      %939 = vmatmul.mubr.f32.gmra.mrb[0].mxu0 %v741
      %v940 = vpop.f32.mrb[0].mxu0
      %v941 = vadd.f32 %v620, %v940
      %v942 = vpop.f32.mrb[0].mxu0
      %943 = vmatprep.mubr.f32.mxu0 0.0
      %944 = vmatmul.mubr.f32.gmra.mrb[0].mxu0 %v744
      %v945 = vpop.f32.mrb[0].mxu0
      %v946 = vadd.f32 %v625, %v945
      %v947 = vpop.f32.mrb[0].mxu0
      %948 = vmatprep.mubr.f32.mxu0 0.0
      %949 = vmatmul.mubr.f32.gmra.mrb[0].mxu0 %v747
      %v950 = vpop.f32.mrb[0].mxu0
      %v951 = vadd.f32 %v630, %v950
      %v952 = vpop.f32.mrb[0].mxu0
      %953 = vmatprep.mubr.f32.mxu0 0.0
      %954 = vmatmul.mubr.f32.gmra.mrb[0].mxu0 %v750
      %v955 = vpop.f32.mrb[0].mxu0
      %v956 = vadd.f32 %v635, %v955
      %v957 = vpop.f32.mrb[0].mxu0
      %958 = vmatprep.mubr.f32.mxu0 0.0
      %959 = vmatmul.mubr.f32.gmra.mrb[0].mxu0 %v753
      %v960 = vpop.f32.mrb[0].mxu0
      %v961 = vadd.f32 %v640, %v960
      %v962 = vpop.f32.mrb[0].mxu0
      %963 = vmatprep.mubr.f32.mxu0 0.0
      %964 = vmatmul.mubr.f32.gmra.mrb[0].mxu0 %v756
      %v965 = vpop.f32.mrb[0].mxu0
      %v966 = vadd.f32 %v645, %v965
      %v967 = vpop.f32.mrb[0].mxu0
      %968 = vmatprep.mubr.f32.mxu0 0.0
      %969 = vmatmul.mubr.f32.gmra.mrb[0].mxu0 %v759
      %v970 = vpop.f32.mrb[0].mxu0
      %v971 = vadd.f32 %v650, %v970
      %v972 = vpop.f32.mrb[0].mxu0
      %973 = vmatprep.mubr.f32.mxu0 0.0
      %974 = vmatmul.mubr.f32.gmra.mrb[0].mxu0 %v762
      %v975 = vpop.f32.mrb[0].mxu0
      %v976 = vadd.f32 %v655, %v975
      %v977 = vpop.f32.mrb[0].mxu0
      %978 = vmatprep.mubr.f32.mxu0 0.0
      %979 = vmatmul.mubr.f32.gmra.mrb[0].mxu0 %v765
      %v980 = vpop.f32.mrb[0].mxu0
      %v981 = vadd.f32 %v660, %v980
      %v982 = vpop.f32.mrb[0].mxu0
      %983 = vmatprep.mubr.f32.mxu0 0.0
      %984 = vmatmul.mubr.f32.gmra.mrb[0].mxu0 %v768
      %v985 = vpop.f32.mrb[0].mxu0
      %v986 = vadd.f32 %v665, %v985
      %v987 = vpop.f32.mrb[0].mxu0
      %988 = vmatprep.mubr.f32.mxu0 0.0
      %989 = vmatmul.mubr.f32.gmra.mrb[0].mxu0 %v771
      %v990 = vpop.f32.mrb[0].mxu0
      %v991 = vadd.f32 %v670, %v990
      %v992 = vpop.f32.mrb[0].mxu0
      %993 = vmatprep.mubr.f32.mxu0 0.0
      %994 = vmatmul.mubr.f32.gmra.mrb[0].mxu0 %v774
      %v995 = vpop.f32.mrb[0].mxu0
      %v996 = vadd.f32 %v675, %v995
      %v997 = vpop.f32.mrb[0].mxu0
      %998 = vmatprep.mubr.f32.mxu0 0.0
      %999 = vmatmul.mubr.f32.gmra.mrb[0].mxu0 %v777
      %v1000 = vpop.f32.mrb[0].mxu0
      %v1001 = vadd.f32 %v680, %v1000
      %v1002 = vpop.f32.mrb[0].mxu0
      %1003 = vdwg.mxu0
      %vm1004 = vcmask 64512
      %1005 = vst.msk [vmem:[%s270] sm:$0xff] %vm1004, %v846
      %1006 = vst.msk [vmem:[%s270 + $0x8] sm:$0xff] %vm1004, %v851
      %1007 = vst.msk [vmem:[%s270 + $0x10] sm:$0xff] %vm1004, %v856
      %1008 = vst.msk [vmem:[%s270 + $0x18] sm:$0xff] %vm1004, %v861
      %1009 = vst.msk [vmem:[%s270 + $0x20] sm:$0xff] %vm1004, %v866
      %1010 = vst.msk [vmem:[%s270 + $0x28] sm:$0xff] %vm1004, %v871
      %1011 = vst.msk [vmem:[%s270 + $0x30] sm:$0xff] %vm1004, %v876
      %1012 = vst.msk [vmem:[%s270 + $0x38] sm:$0xff] %vm1004, %v881
      %1013 = vst.msk [vmem:[%s270 + $0x40] sm:$0xff] %vm1004, %v886
      %1014 = vst.msk [vmem:[%s270 + $0x48] sm:$0xff] %vm1004, %v891
      %1015 = vst.msk [vmem:[%s270 + $0x50] sm:$0xff] %vm1004, %v896
      %1016 = vst.msk [vmem:[%s270 + $0x58] sm:$0xff] %vm1004, %v901
      %1017 = vst.msk [vmem:[%s270 + $0x60] sm:$0xff] %vm1004, %v906
      %1018 = vst.msk [vmem:[%s270 + $0x68] sm:$0xff] %vm1004, %v911
      %1019 = vst.msk [vmem:[%s270 + $0x70] sm:$0xff] %vm1004, %v916
      %1020 = vst.msk [vmem:[%s270 + $0x78] sm:$0xff] %vm1004, %v921
      %1021 = vst.msk [vmem:[%s270 + $0x80] sm:$0xff] %vm1004, %v926
      %1022 = vst.msk [vmem:[%s270 + $0x88] sm:$0xff] %vm1004, %v931
      %1023 = vst.msk [vmem:[%s270 + $0x90] sm:$0xff] %vm1004, %v936
      %1024 = vst.msk [vmem:[%s270 + $0x98] sm:$0xff] %vm1004, %v941
      %1025 = vst.msk [vmem:[%s270 + $0xa0] sm:$0xff] %vm1004, %v946
      %1026 = vst.msk [vmem:[%s270 + $0xa8] sm:$0xff] %vm1004, %v951
      %1027 = vst.msk [vmem:[%s270 + $0xb0] sm:$0xff] %vm1004, %v956
      %1028 = vst.msk [vmem:[%s270 + $0xb8] sm:$0xff] %vm1004, %v961
      %1029 = vst.msk [vmem:[%s270 + $0xc0] sm:$0xff] %vm1004, %v966
      %1030 = vst.msk [vmem:[%s270 + $0xc8] sm:$0xff] %vm1004, %v971
      %1031 = vst.msk [vmem:[%s270 + $0xd0] sm:$0xff] %vm1004, %v976
      %1032 = vst.msk [vmem:[%s270 + $0xd8] sm:$0xff] %vm1004, %v981
      %1033 = vst.msk [vmem:[%s270 + $0xe0] sm:$0xff] %vm1004, %v986
      %1034 = vst.msk [vmem:[%s270 + $0xe8] sm:$0xff] %vm1004, %v991
      %1035 = vst.msk [vmem:[%s270 + $0xf0] sm:$0xff] %vm1004, %v996
      %1036 = vst.msk [vmem:[%s270 + $0xf8] sm:$0xff] %vm1004, %v1001
      %v1037 = vld [vmem:[%s5] sm:$0x1]
      %v1038 = vsel %vm1004, %v846, 0.0
      %v1039 = vsel %vm1004, %v851, 0.0
      %v1040 = vadd.f32 %v1038, %v1039
      %v1041 = vsel %vm1004, %v856, 0.0
      %v1042 = vadd.f32 %v1040, %v1041
      %v1043 = vsel %vm1004, %v861, 0.0
      %v1044 = vadd.f32 %v1042, %v1043
      %v1045 = vsel %vm1004, %v866, 0.0
      %v1046 = vadd.f32 %v1044, %v1045
      %v1047 = vsel %vm1004, %v871, 0.0
      %v1048 = vadd.f32 %v1046, %v1047
      %v1049 = vsel %vm1004, %v876, 0.0
      %v1050 = vadd.f32 %v1048, %v1049
      %v1051 = vsel %vm1004, %v881, 0.0
      %v1052 = vadd.f32 %v1050, %v1051
      %v1053 = vsel %vm1004, %v886, 0.0
      %v1054 = vadd.f32 %v1052, %v1053
      %v1055 = vsel %vm1004, %v891, 0.0
      %v1056 = vadd.f32 %v1054, %v1055
      %v1057 = vsel %vm1004, %v896, 0.0
      %v1058 = vadd.f32 %v1056, %v1057
      %v1059 = vsel %vm1004, %v901, 0.0
      %v1060 = vadd.f32 %v1058, %v1059
      %v1061 = vsel %vm1004, %v906, 0.0
      %v1062 = vadd.f32 %v1060, %v1061
      %v1063 = vsel %vm1004, %v911, 0.0
      %v1064 = vadd.f32 %v1062, %v1063
      %v1065 = vsel %vm1004, %v916, 0.0
      %v1066 = vadd.f32 %v1064, %v1065
      %v1067 = vsel %vm1004, %v921, 0.0
      %v1068 = vadd.f32 %v1066, %v1067
      %v1069 = vsel %vm1004, %v926, 0.0
      %v1070 = vadd.f32 %v1068, %v1069
      %v1071 = vsel %vm1004, %v931, 0.0
      %v1072 = vadd.f32 %v1070, %v1071
      %v1073 = vsel %vm1004, %v936, 0.0
      %v1074 = vadd.f32 %v1072, %v1073
      %v1075 = vsel %vm1004, %v941, 0.0
      %v1076 = vadd.f32 %v1074, %v1075
      %v1077 = vsel %vm1004, %v946, 0.0
      %v1078 = vadd.f32 %v1076, %v1077
      %v1079 = vsel %vm1004, %v951, 0.0
      %v1080 = vadd.f32 %v1078, %v1079
      %v1081 = vsel %vm1004, %v956, 0.0
      %v1082 = vadd.f32 %v1080, %v1081
      %v1083 = vsel %vm1004, %v961, 0.0
      %v1084 = vadd.f32 %v1082, %v1083
      %v1085 = vsel %vm1004, %v966, 0.0
      %v1086 = vadd.f32 %v1084, %v1085
      %v1087 = vsel %vm1004, %v971, 0.0
      %v1088 = vadd.f32 %v1086, %v1087
      %v1089 = vsel %vm1004, %v976, 0.0
      %v1090 = vadd.f32 %v1088, %v1089
      %v1091 = vsel %vm1004, %v981, 0.0
      %v1092 = vadd.f32 %v1090, %v1091
      %v1093 = vsel %vm1004, %v986, 0.0
      %v1094 = vadd.f32 %v1092, %v1093
      %v1095 = vsel %vm1004, %v991, 0.0
      %v1096 = vadd.f32 %v1094, %v1095
      %v1097 = vsel %vm1004, %v996, 0.0
      %v1098 = vadd.f32 %v1096, %v1097
      %v1099 = vsel %vm1004, %v1001, 0.0
      %v1100 = vadd.f32 %v1098, %v1099
      %v1101 = vrot.slane %v1100, 4
      %v1102 = vadd.f32 %v1100, %v1101
      %v1103 = vrot.slane %v1102, 2
      %v1104 = vadd.f32 %v1102, %v1103
      %v1105 = vrot.slane %v1104, 1
      %v1106 = vadd.f32 %v1104, %v1105
      %v1107 = vadd.f32 %v1037, %v1106
      %vm1108 = vcmask 57344
      %1109 = vst.msk [vmem:[%s5] sm:$0x1] %vm1108, %v1107
      %v1110 = vld [vmem:[%s6] sm:$0x1]
      %v1111 = vmul.f32 %v846, %v846
      %v1112 = vmul.f32 %v851, %v851
      %v1113 = vmul.f32 %v856, %v856
      %v1114 = vmul.f32 %v861, %v861
      %v1115 = vmul.f32 %v866, %v866
      %v1116 = vmul.f32 %v871, %v871
      %v1117 = vmul.f32 %v876, %v876
      %v1118 = vmul.f32 %v881, %v881
      %v1119 = vmul.f32 %v886, %v886
      %v1120 = vmul.f32 %v891, %v891
      %v1121 = vmul.f32 %v896, %v896
      %v1122 = vmul.f32 %v901, %v901
      %v1123 = vmul.f32 %v906, %v906
      %v1124 = vmul.f32 %v911, %v911
      %v1125 = vmul.f32 %v916, %v916
      %v1126 = vmul.f32 %v921, %v921
      %v1127 = vmul.f32 %v926, %v926
      %v1128 = vmul.f32 %v931, %v931
      %v1129 = vmul.f32 %v936, %v936
      %v1130 = vmul.f32 %v941, %v941
      %v1131 = vmul.f32 %v946, %v946
      %v1132 = vmul.f32 %v951, %v951
      %v1133 = vmul.f32 %v956, %v956
      %v1134 = vmul.f32 %v961, %v961
      %v1135 = vmul.f32 %v966, %v966
      %v1136 = vmul.f32 %v971, %v971
      %v1137 = vmul.f32 %v976, %v976
      %v1138 = vmul.f32 %v981, %v981
      %v1139 = vmul.f32 %v986, %v986
      %v1140 = vmul.f32 %v991, %v991
      %v1141 = vmul.f32 %v996, %v996
      %v1142 = vmul.f32 %v1001, %v1001
      %v1143 = vsel %vm1004, %v1111, 0.0
      %v1144 = vsel %vm1004, %v1112, 0.0
      %v1145 = vadd.f32 %v1143, %v1144
      %v1146 = vsel %vm1004, %v1113, 0.0
      %v1147 = vadd.f32 %v1145, %v1146
      %v1148 = vsel %vm1004, %v1114, 0.0
      %v1149 = vadd.f32 %v1147, %v1148
      %v1150 = vsel %vm1004, %v1115, 0.0
      %v1151 = vadd.f32 %v1149, %v1150
      %v1152 = vsel %vm1004, %v1116, 0.0
      %v1153 = vadd.f32 %v1151, %v1152
      %v1154 = vsel %vm1004, %v1117, 0.0
      %v1155 = vadd.f32 %v1153, %v1154
      %v1156 = vsel %vm1004, %v1118, 0.0
      %v1157 = vadd.f32 %v1155, %v1156
      %v1158 = vsel %vm1004, %v1119, 0.0
      %v1159 = vadd.f32 %v1157, %v1158
      %v1160 = vsel %vm1004, %v1120, 0.0
      %v1161 = vadd.f32 %v1159, %v1160
      %v1162 = vsel %vm1004, %v1121, 0.0
      %v1163 = vadd.f32 %v1161, %v1162
      %v1164 = vsel %vm1004, %v1122, 0.0
      %v1165 = vadd.f32 %v1163, %v1164
      %v1166 = vsel %vm1004, %v1123, 0.0
      %v1167 = vadd.f32 %v1165, %v1166
      %v1168 = vsel %vm1004, %v1124, 0.0
      %v1169 = vadd.f32 %v1167, %v1168
      %v1170 = vsel %vm1004, %v1125, 0.0
      %v1171 = vadd.f32 %v1169, %v1170
      %v1172 = vsel %vm1004, %v1126, 0.0
      %v1173 = vadd.f32 %v1171, %v1172
      %v1174 = vsel %vm1004, %v1127, 0.0
      %v1175 = vadd.f32 %v1173, %v1174
      %v1176 = vsel %vm1004, %v1128, 0.0
      %v1177 = vadd.f32 %v1175, %v1176
      %v1178 = vsel %vm1004, %v1129, 0.0
      %v1179 = vadd.f32 %v1177, %v1178
      %v1180 = vsel %vm1004, %v1130, 0.0
      %v1181 = vadd.f32 %v1179, %v1180
      %v1182 = vsel %vm1004, %v1131, 0.0
      %v1183 = vadd.f32 %v1181, %v1182
      %v1184 = vsel %vm1004, %v1132, 0.0
      %v1185 = vadd.f32 %v1183, %v1184
      %v1186 = vsel %vm1004, %v1133, 0.0
      %v1187 = vadd.f32 %v1185, %v1186
      %v1188 = vsel %vm1004, %v1134, 0.0
      %v1189 = vadd.f32 %v1187, %v1188
      %v1190 = vsel %vm1004, %v1135, 0.0
      %v1191 = vadd.f32 %v1189, %v1190
      %v1192 = vsel %vm1004, %v1136, 0.0
      %v1193 = vadd.f32 %v1191, %v1192
      %v1194 = vsel %vm1004, %v1137, 0.0
      %v1195 = vadd.f32 %v1193, %v1194
      %v1196 = vsel %vm1004, %v1138, 0.0
      %v1197 = vadd.f32 %v1195, %v1196
      %v1198 = vsel %vm1004, %v1139, 0.0
      %v1199 = vadd.f32 %v1197, %v1198
      %v1200 = vsel %vm1004, %v1140, 0.0
      %v1201 = vadd.f32 %v1199, %v1200
      %v1202 = vsel %vm1004, %v1141, 0.0
      %v1203 = vadd.f32 %v1201, %v1202
      %v1204 = vsel %vm1004, %v1142, 0.0
      %v1205 = vadd.f32 %v1203, %v1204
      %v1206 = vrot.slane %v1205, 4
      %v1207 = vadd.f32 %v1205, %v1206
      %v1208 = vrot.slane %v1207, 2
      %v1209 = vadd.f32 %v1207, %v1208
      %v1210 = vrot.slane %v1209, 1
      %v1211 = vadd.f32 %v1209, %v1210
      %v1212 = vadd.f32 %v1110, %v1211
      %1213 = vst.msk [vmem:[%s6] sm:$0x1] %vm1108, %v1212
      %s1214 = smul.u32 32, %s18
      %p1215 = scmp.lt.s32.totalorder %s1214, 63
      %s1216 = scalar_select %p1215, %s1214, 63
      %s1217 = smul.addr %s1216, 8
      %s1218 = scalar_lea.vmem %s4, %s1217
      // Predicated region
      $region41: #{conv_2nV1_forward.16} parent=35 // pred_check
        %p1219 = pneg %p130
      $region42: #{conv_2nV1_forward.16} parent=35 // pred_check_branch
        %1221 = sbr.rel (%p1219) target = $region44
      $region43: #{conv_2nV1_forward.16} parent=35 // pred_region
        %s1222 = smul.u32 32, %s18
      $region44: #{conv_2nV1_forward.16} parent=35 // pred_fallthru
        _
      // Predicated region
      $region45: #{conv_2nV1_forward.16} parent=35 // pred_check
        %p1223 = pneg %p151
      $region46: #{conv_2nV1_forward.16} parent=35 // pred_check_branch
        %1225 = sbr.rel (%p1223) target = $region48
      $region47: #{conv_2nV1_forward.16} parent=35 // pred_region
        _
      $region48: #{conv_2nV1_forward.16} parent=35 // pred_fallthru
        _
      // Predicated region
      $region49: #{conv_2nV1_forward.16} parent=35 // pred_check
        %p1226 = pneg %p172
      $region50: #{conv_2nV1_forward.16} parent=35 // pred_check_branch
        %1228 = sbr.rel (%p1226) target = $region52
      $region51: #{conv_2nV1_forward.16} parent=35 // pred_region
        _
      $region52: #{conv_2nV1_forward.16} parent=35 // pred_fallthru
        _
      // Predicated region
      $region53: #{conv_2nV1_forward.16} parent=35 // pred_check
        %p1229 = pneg %p151
      $region54: #{conv_2nV1_forward.16} parent=35 // pred_check_branch
        %1231 = sbr.rel (%p1229) target = $region56
      $region55: #{conv_2nV1_forward.16} parent=35 // pred_region
        _
      $region56: #{conv_2nV1_forward.16} parent=35 // pred_fallthru
        _
      // Predicated region
      $region57: #{conv_2nV1_forward.16} parent=35 // pred_check
        %p1232 = pneg %p172
      $region58: #{conv_2nV1_forward.16} parent=35 // pred_check_branch
        %1234 = sbr.rel (%p1232) target = $region60
      $region59: #{conv_2nV1_forward.16} parent=35 // pred_region
        _
      $region60: #{conv_2nV1_forward.16} parent=35 // pred_fallthru
        _
    $region36: #{conv_2nV1_forward.16} parent=5 // pred_fallthru
      _
    %p1235 = scmp.le.s32.totalorder 2, %s13
    // Predicated region
    $region61: #{conv_2nV1_forward.16} parent=5 // pred_check
      %p1236 = pneg %p1235
    $region62: #{conv_2nV1_forward.16} parent=5 // pred_check_branch
      %1238 = sbr.rel (%p1236) target = $region64
    $region63: #{conv_2nV1_forward.16} parent=5 // pred_region
      %s1239 = ssub.s32 %s13, 2
      // Predicated region
      $region65: #{conv_2nV1_forward.16} parent=63 // pred_check
        %p1240 = pneg %p136
      $region66: #{conv_2nV1_forward.16} parent=63 // pred_check_branch
        %1242 = sbr.rel (%p1240) target = $region68
      $region67: #{conv_2nV1_forward.16} parent=63 // pred_region
        %s1243 = smul.u32 32, %s19
        %p1244 = scmp.lt.s32.totalorder %s1243, 63
        %s1245 = scalar_select %p1244, %s1243, 63
        %s1246 = smul.addr %s1245, 8
        %s1247 = scalar_lea.vmem %s4, %s1246
      $region68: #{conv_2nV1_forward.16} parent=63 // pred_fallthru
        _
    $region64: #{conv_2nV1_forward.16} parent=5 // pred_fallthru
      _
  $region6: #{conv_2nV1_forward.16} parent=0 // loop_footer
    %s17 = sadd.s32 1, %s13
  $region7: #{conv_2nV1_forward.16} parent=0 // loop_footer_branch
    %12 = sbr.rel target = $region3
  $region8: #{conv_2nV1_forward.16} parent=0 // loop_exit
    _

// kernel: conv_2nV1_forward.18
$region0: #{conv_2nV1_forward.18}
  #allocation0 [shape = 'u32[]', space=smem, size = 0x4, offset = 0x4, fixed_abs, tag = 'smem constant byte address 0x4 - core index']
  #allocation1 [shape = 'u32[144,128]{1,0:T(1,128)}', space=vmem, size = 0x12000, scoped, tag = 'internal scratch']
  %s0 = inlined_call_operand.vmem [shape: f32[128,72], index: 0, kind: input, shape index: {}]
  %s1 = inlined_call_operand.vmem [shape: f32[72,8], index: 1, kind: input, shape index: {}]
  %s2 = inlined_call_operand.vmem [shape: f32[128,72], index: 2, kind: input, shape index: {}]
  %s3 = inlined_call_operand.vmem [shape: f32[72,8], index: 3, kind: input, shape index: {}]
  %s4 = inlined_call_operand.vmem [shape: f32[128,8], index: 4, kind: output, shape index: {0}]
  %s5 = inlined_call_operand.vmem [shape: f32[1,8], index: 5, kind: output, shape index: {1}]
  %s6 = inlined_call_operand.vmem [shape: f32[1,8], index: 6, kind: output, shape index: {2}]
  %7 = xla_tuple %s4, %s5, %s6
  %s8 = sld [smem:[#allocation0]]
  $region46: #{conv_2nV1_forward.18} parent=0
    _
  %s10 = ssub.s32 1, %s8
  %s11 = scalar_select 0, %s10, %s8
  // Predicated region
  $region2: #{conv_2nV1_forward.18} parent=0 // pred_check
    _
  $region3: #{conv_2nV1_forward.18} parent=0 // pred_check_branch
    %13 = sbr.rel (0) target = $region5
  $region4: #{conv_2nV1_forward.18} parent=0 // pred_region
    _
  $region5: #{conv_2nV1_forward.18} parent=0 // pred_fallthru
    _
  // Predicated region
  $region6: #{conv_2nV1_forward.18} parent=0 // pred_check
    _
  $region7: #{conv_2nV1_forward.18} parent=0 // pred_check_branch
    %15 = sbr.rel (0) target = $region9
  $region8: #{conv_2nV1_forward.18} parent=0 // pred_region
    _
  $region9: #{conv_2nV1_forward.18} parent=0 // pred_fallthru
    _
  // Predicated region
  $region10: #{conv_2nV1_forward.18} parent=0 // pred_check
    _
  $region11: #{conv_2nV1_forward.18} parent=0 // pred_check_branch
    %17 = sbr.rel (0) target = $region13
  $region12: #{conv_2nV1_forward.18} parent=0 // pred_region
    _
  $region13: #{conv_2nV1_forward.18} parent=0 // pred_fallthru
    _
  // Predicated region
  $region14: #{conv_2nV1_forward.18} parent=0 // pred_check
    _
  $region15: #{conv_2nV1_forward.18} parent=0 // pred_check_branch
    %19 = sbr.rel (0) target = $region17
  $region16: #{conv_2nV1_forward.18} parent=0 // pred_region
    _
  $region17: #{conv_2nV1_forward.18} parent=0 // pred_fallthru
    _
  %p20 = scmp.eq.s32.totalorder 0, 0
  // Predicated region
  $region18: #{conv_2nV1_forward.18} parent=0 // pred_check
    %p21 = pneg %p20
  $region19: #{conv_2nV1_forward.18} parent=0 // pred_check_branch
    %23 = sbr.rel (%p21) target = $region21
  $region20: #{conv_2nV1_forward.18} parent=0 // pred_region
    %vm24 = vcmask 57344
    %25 = vst.msk [vmem:[%s5] sm:$0x1] %vm24, 0.0
    %26 = vst.msk [vmem:[%s6] sm:$0x1] %vm24, 0.0
  $region21: #{conv_2nV1_forward.18} parent=0 // pred_fallthru
    _
  %v27 = vld [vmem:[%s0] sm:$0xff]
  %v28 = vld [vmem:[%s0 + $0x8] sm:$0xff]
  %v29 = vld [vmem:[%s0 + $0x10] sm:$0xff]
  %v30 = vld [vmem:[%s0 + $0x18] sm:$0xff]
  %v31 = vld [vmem:[%s0 + $0x20] sm:$0xff]
  %v32 = vld [vmem:[%s0 + $0x28] sm:$0xff]
  %v33 = vld [vmem:[%s0 + $0x30] sm:$0xff]
  %v34 = vld [vmem:[%s0 + $0x38] sm:$0xff]
  %v35 = vld [vmem:[%s0 + $0x40] sm:$0xff]
  %v36 = vld [vmem:[%s0 + $0x48] sm:$0xff]
  %v37 = vld [vmem:[%s0 + $0x50] sm:$0xff]
  %v38 = vld [vmem:[%s0 + $0x58] sm:$0xff]
  %v39 = vld [vmem:[%s0 + $0x60] sm:$0xff]
  %v40 = vld [vmem:[%s0 + $0x68] sm:$0xff]
  %v41 = vld [vmem:[%s0 + $0x70] sm:$0xff]
  %v42 = vld [vmem:[%s0 + $0x78] sm:$0xff]
  %v43 = vld [vmem:[%s1] sm:$0xff]
  %v44 = vld [vmem:[%s1 + $0x8] sm:$0xff]
  %v45 = vld [vmem:[%s1 + $0x10] sm:$0xff]
  %v46 = vld [vmem:[%s1 + $0x18] sm:$0xff]
  %v47 = vld [vmem:[%s1 + $0x20] sm:$0xff]
  %v48 = vld [vmem:[%s1 + $0x28] sm:$0xff]
  %v49 = vld [vmem:[%s1 + $0x30] sm:$0xff]
  %v50 = vld [vmem:[%s1 + $0x38] sm:$0xff]
  %v51 = vld [vmem:[%s1 + $0x40] sm:$0xff]
  %v52 = vld [vmem:[%s2] sm:$0xff]
  %v53 = vld [vmem:[%s2 + $0x8] sm:$0xff]
  %v54 = vld [vmem:[%s2 + $0x10] sm:$0xff]
  %v55 = vld [vmem:[%s2 + $0x18] sm:$0xff]
  %v56 = vld [vmem:[%s2 + $0x20] sm:$0xff]
  %v57 = vld [vmem:[%s2 + $0x28] sm:$0xff]
  %v58 = vld [vmem:[%s2 + $0x30] sm:$0xff]
  %v59 = vld [vmem:[%s2 + $0x38] sm:$0xff]
  %v60 = vld [vmem:[%s2 + $0x40] sm:$0xff]
  %v61 = vld [vmem:[%s2 + $0x48] sm:$0xff]
  %v62 = vld [vmem:[%s2 + $0x50] sm:$0xff]
  %v63 = vld [vmem:[%s2 + $0x58] sm:$0xff]
  %v64 = vld [vmem:[%s2 + $0x60] sm:$0xff]
  %v65 = vld [vmem:[%s2 + $0x68] sm:$0xff]
  %v66 = vld [vmem:[%s2 + $0x70] sm:$0xff]
  %v67 = vld [vmem:[%s2 + $0x78] sm:$0xff]
  %v68 = vld [vmem:[%s3] sm:$0xff]
  %v69 = vld [vmem:[%s3 + $0x8] sm:$0xff]
  %v70 = vld [vmem:[%s3 + $0x10] sm:$0xff]
  %v71 = vld [vmem:[%s3 + $0x18] sm:$0xff]
  %v72 = vld [vmem:[%s3 + $0x20] sm:$0xff]
  %v73 = vld [vmem:[%s3 + $0x28] sm:$0xff]
  %v74 = vld [vmem:[%s3 + $0x30] sm:$0xff]
  %v75 = vld [vmem:[%s3 + $0x38] sm:$0xff]
  %v76 = vld [vmem:[%s3 + $0x40] sm:$0xff]
  %vm77 = vcmask 588800
  %v79 = vsel %vm77, %v52, 0
  %v82 = vsel %vm77, %v53, 0
  %v85 = vsel %vm77, %v54, 0
  %v88 = vsel %vm77, %v55, 0
  %v91 = vsel %vm77, %v56, 0
  %v94 = vsel %vm77, %v57, 0
  %v97 = vsel %vm77, %v58, 0
  %v100 = vsel %vm77, %v59, 0
  %v103 = vsel %vm77, %v60, 0
  %v106 = vsel %vm77, %v61, 0
  %v109 = vsel %vm77, %v62, 0
  %v112 = vsel %vm77, %v63, 0
  %v115 = vsel %vm77, %v64, 0
  %v118 = vsel %vm77, %v65, 0
  %v121 = vsel %vm77, %v66, 0
  %v124 = vsel %vm77, %v67, 0
  %126 = vmatprep.subr.mxu0 0.0
  %127 = vmatpush1.msra.mxu0 %v68
  %128 = vmatprep.subr.mxu0 0.0
  %129 = vmatpush1.msra.mxu0 %v69
  %130 = vmatprep.subr.mxu0 0.0
  %131 = vmatpush1.msra.mxu0 %v70
  %132 = vmatprep.subr.mxu0 0.0
  %133 = vmatpush1.msra.mxu0 %v71
  %134 = vmatprep.subr.mxu0 0.0
  %135 = vmatpush1.msra.mxu0 %v72
  %136 = vmatprep.subr.mxu0 0.0
  %137 = vmatpush1.msra.mxu0 %v73
  %138 = vmatprep.subr.mxu0 0.0
  %139 = vmatpush1.msra.mxu0 %v74
  %140 = vmatprep.subr.mxu0 0.0
  %141 = vmatpush1.msra.mxu0 %v75
  %142 = vmatprep.subr.mxu0 0.0
  %143 = vmatpush1.msra.mxu0 %v76
  %144 = vmatprep.subr.mxu0 0.0
  %145 = vmatpush1.msra.mxu0 0.0
  %146 = vmatprep.subr.mxu0 0.0
  %147 = vmatpush1.msra.mxu0 0.0
  %148 = vmatprep.subr.mxu0 0.0
  %149 = vmatpush1.msra.mxu0 0.0
  %150 = vmatprep.subr.mxu0 0.0
  %151 = vmatpush1.msra.mxu0 0.0
  %152 = vmatprep.subr.mxu0 0.0
  %153 = vmatpush1.msra.mxu0 0.0
  %154 = vmatprep.subr.mxu0 0.0
  %155 = vmatpush1.msra.mxu0 0.0
  %156 = vmatprep.subr.mxu0 0.0
  %157 = vmatpush1.msra.mxu0 0.0
  %158 = vmatprep.subr.mxu0 0.0
  %159 = vmatpush1.msra.mxu0 0.0
  %160 = vmatprep.subr.mxu0 0.0
  %161 = vmatpush1.msra.mxu0 0.0
  %162 = vmatprep.subr.mxu0 0.0
  %163 = vmatpush1.msra.mxu0 0.0
  %164 = vmatprep.subr.mxu0 0.0
  %165 = vmatpush1.msra.mxu0 0.0
  %166 = vmatprep.subr.mxu0 0.0
  %167 = vmatpush1.msra.mxu0 0.0
  %168 = vmatprep.subr.mxu0 0.0
  %169 = vmatpush1.msra.mxu0 0.0
  %170 = vmatprep.subr.mxu0 0.0
  %171 = vmatpush1.msra.mxu0 0.0
  %172 = vmatprep.subr.mxu0 0.0
  %173 = vmatpush1.msra.mxu0 0.0
  %174 = vmatprep.subr.mxu0 0.0
  %175 = vmatpush1.msra.mxu0 0.0
  %176 = vmatprep.subr.mxu0 0.0
  %177 = vmatpush1.msra.mxu0 0.0
  %178 = vmatprep.subr.mxu0 0.0
  %179 = vmatpush1.msra.mxu0 0.0
  %180 = vmatprep.subr.mxu0 0.0
  %181 = vmatpush1.msra.mxu0 0.0
  %182 = vmatprep.subr.mxu0 0.0
  %183 = vmatpush1.msra.mxu0 0.0
  %184 = vmatprep.subr.mxu0 0.0
  %185 = vmatpush1.msra.mxu0 0.0
  %186 = vmatprep.subr.mxu0 0.0
  %187 = vmatpush1.msra.mxu0 0.0
  %188 = vmatprep.subr.mxu0 0.0
  %189 = vmatpush1.msra.mxu0 0.0
  %190 = vmatprep.mubr.f32.mxu0 0.0
  %191 = vmatmul.mubr.f32.gmra.mrb[0].mxu0 %v79
  %v192 = vpop.f32.mrb[0].mxu0
  %v193 = vadd.f32 0.0, %v192
  %v194 = vpop.f32.mrb[0].mxu0
  %195 = vmatprep.mubr.f32.mxu0 0.0
  %196 = vmatmul.mubr.f32.gmra.mrb[0].mxu0 %v82
  %v197 = vpop.f32.mrb[0].mxu0
  %v198 = vadd.f32 0.0, %v197
  %v199 = vpop.f32.mrb[0].mxu0
  %200 = vmatprep.mubr.f32.mxu0 0.0
  %201 = vmatmul.mubr.f32.gmra.mrb[0].mxu0 %v85
  %v202 = vpop.f32.mrb[0].mxu0
  %v203 = vadd.f32 0.0, %v202
  %v204 = vpop.f32.mrb[0].mxu0
  %205 = vmatprep.mubr.f32.mxu0 0.0
  %206 = vmatmul.mubr.f32.gmra.mrb[0].mxu0 %v88
  %v207 = vpop.f32.mrb[0].mxu0
  %v208 = vadd.f32 0.0, %v207
  %v209 = vpop.f32.mrb[0].mxu0
  %210 = vmatprep.mubr.f32.mxu0 0.0
  %211 = vmatmul.mubr.f32.gmra.mrb[0].mxu0 %v91
  %v212 = vpop.f32.mrb[0].mxu0
  %v213 = vadd.f32 0.0, %v212
  %v214 = vpop.f32.mrb[0].mxu0
  %215 = vmatprep.mubr.f32.mxu0 0.0
  %216 = vmatmul.mubr.f32.gmra.mrb[0].mxu0 %v94
  %v217 = vpop.f32.mrb[0].mxu0
  %v218 = vadd.f32 0.0, %v217
  %v219 = vpop.f32.mrb[0].mxu0
  %220 = vmatprep.mubr.f32.mxu0 0.0
  %221 = vmatmul.mubr.f32.gmra.mrb[0].mxu0 %v97
  %v222 = vpop.f32.mrb[0].mxu0
  %v223 = vadd.f32 0.0, %v222
  %v224 = vpop.f32.mrb[0].mxu0
  %225 = vmatprep.mubr.f32.mxu0 0.0
  %226 = vmatmul.mubr.f32.gmra.mrb[0].mxu0 %v100
  %v227 = vpop.f32.mrb[0].mxu0
  %v228 = vadd.f32 0.0, %v227
  %v229 = vpop.f32.mrb[0].mxu0
  %230 = vmatprep.mubr.f32.mxu0 0.0
  %231 = vmatmul.mubr.f32.gmra.mrb[0].mxu0 %v103
  %v232 = vpop.f32.mrb[0].mxu0
  %v233 = vadd.f32 0.0, %v232
  %v234 = vpop.f32.mrb[0].mxu0
  %235 = vmatprep.mubr.f32.mxu0 0.0
  %236 = vmatmul.mubr.f32.gmra.mrb[0].mxu0 %v106
  %v237 = vpop.f32.mrb[0].mxu0
  %v238 = vadd.f32 0.0, %v237
  %v239 = vpop.f32.mrb[0].mxu0
  %240 = vmatprep.mubr.f32.mxu0 0.0
  %241 = vmatmul.mubr.f32.gmra.mrb[0].mxu0 %v109
  %v242 = vpop.f32.mrb[0].mxu0
  %v243 = vadd.f32 0.0, %v242
  %v244 = vpop.f32.mrb[0].mxu0
  %245 = vmatprep.mubr.f32.mxu0 0.0
  %246 = vmatmul.mubr.f32.gmra.mrb[0].mxu0 %v112
  %v247 = vpop.f32.mrb[0].mxu0
  %v248 = vadd.f32 0.0, %v247
  %v249 = vpop.f32.mrb[0].mxu0
  %250 = vmatprep.mubr.f32.mxu0 0.0
  %251 = vmatmul.mubr.f32.gmra.mrb[0].mxu0 %v115
  %v252 = vpop.f32.mrb[0].mxu0
  %v253 = vadd.f32 0.0, %v252
  %v254 = vpop.f32.mrb[0].mxu0
  %255 = vmatprep.mubr.f32.mxu0 0.0
  %256 = vmatmul.mubr.f32.gmra.mrb[0].mxu0 %v118
  %v257 = vpop.f32.mrb[0].mxu0
  %v258 = vadd.f32 0.0, %v257
  %v259 = vpop.f32.mrb[0].mxu0
  %260 = vmatprep.mubr.f32.mxu0 0.0
  %261 = vmatmul.mubr.f32.gmra.mrb[0].mxu0 %v121
  %v262 = vpop.f32.mrb[0].mxu0
  %v263 = vadd.f32 0.0, %v262
  %v264 = vpop.f32.mrb[0].mxu0
  %265 = vmatprep.mubr.f32.mxu0 0.0
  %266 = vmatmul.mubr.f32.gmra.mrb[0].mxu0 %v124
  %v267 = vpop.f32.mrb[0].mxu0
  %v268 = vadd.f32 0.0, %v267
  %v269 = vpop.f32.mrb[0].mxu0
  %270 = vdwg.mxu0
  %v272 = vsel %vm77, %v27, 0
  %v275 = vsel %vm77, %v28, 0
  %v278 = vsel %vm77, %v29, 0
  %v281 = vsel %vm77, %v30, 0
  %v284 = vsel %vm77, %v31, 0
  %v287 = vsel %vm77, %v32, 0
  %v290 = vsel %vm77, %v33, 0
  %v293 = vsel %vm77, %v34, 0
  %v296 = vsel %vm77, %v35, 0
  %v299 = vsel %vm77, %v36, 0
  %v302 = vsel %vm77, %v37, 0
  %v305 = vsel %vm77, %v38, 0
  %v308 = vsel %vm77, %v39, 0
  %v311 = vsel %vm77, %v40, 0
  %v314 = vsel %vm77, %v41, 0
  %v317 = vsel %vm77, %v42, 0
  %319 = vmatprep.subr.mxu0 0.0
  %320 = vmatpush1.msra.mxu0 %v43
  %321 = vmatprep.subr.mxu0 0.0
  %322 = vmatpush1.msra.mxu0 %v44
  %323 = vmatprep.subr.mxu0 0.0
  %324 = vmatpush1.msra.mxu0 %v45
  %325 = vmatprep.subr.mxu0 0.0
  %326 = vmatpush1.msra.mxu0 %v46
  %327 = vmatprep.subr.mxu0 0.0
  %328 = vmatpush1.msra.mxu0 %v47
  %329 = vmatprep.subr.mxu0 0.0
  %330 = vmatpush1.msra.mxu0 %v48
  %331 = vmatprep.subr.mxu0 0.0
  %332 = vmatpush1.msra.mxu0 %v49
  %333 = vmatprep.subr.mxu0 0.0
  %334 = vmatpush1.msra.mxu0 %v50
  %335 = vmatprep.subr.mxu0 0.0
  %336 = vmatpush1.msra.mxu0 %v51
  %337 = vmatprep.subr.mxu0 0.0
  %338 = vmatpush1.msra.mxu0 0.0
  %339 = vmatprep.subr.mxu0 0.0
  %340 = vmatpush1.msra.mxu0 0.0
  %341 = vmatprep.subr.mxu0 0.0
  %342 = vmatpush1.msra.mxu0 0.0
  %343 = vmatprep.subr.mxu0 0.0
  %344 = vmatpush1.msra.mxu0 0.0
  %345 = vmatprep.subr.mxu0 0.0
  %346 = vmatpush1.msra.mxu0 0.0
  %347 = vmatprep.subr.mxu0 0.0
  %348 = vmatpush1.msra.mxu0 0.0
  %349 = vmatprep.subr.mxu0 0.0
  %350 = vmatpush1.msra.mxu0 0.0
  %351 = vmatprep.subr.mxu0 0.0
  %352 = vmatpush1.msra.mxu0 0.0
  %353 = vmatprep.subr.mxu0 0.0
  %354 = vmatpush1.msra.mxu0 0.0
  %355 = vmatprep.subr.mxu0 0.0
  %356 = vmatpush1.msra.mxu0 0.0
  %357 = vmatprep.subr.mxu0 0.0
  %358 = vmatpush1.msra.mxu0 0.0
  %359 = vmatprep.subr.mxu0 0.0
  %360 = vmatpush1.msra.mxu0 0.0
  %361 = vmatprep.subr.mxu0 0.0
  %362 = vmatpush1.msra.mxu0 0.0
  %363 = vmatprep.subr.mxu0 0.0
  %364 = vmatpush1.msra.mxu0 0.0
  %365 = vmatprep.subr.mxu0 0.0
  %366 = vmatpush1.msra.mxu0 0.0
  %367 = vmatprep.subr.mxu0 0.0
  %368 = vmatpush1.msra.mxu0 0.0
  %369 = vmatprep.subr.mxu0 0.0
  %370 = vmatpush1.msra.mxu0 0.0
  %371 = vmatprep.subr.mxu0 0.0
  %372 = vmatpush1.msra.mxu0 0.0
  %373 = vmatprep.subr.mxu0 0.0
  %374 = vmatpush1.msra.mxu0 0.0
  %375 = vmatprep.subr.mxu0 0.0
  %376 = vmatpush1.msra.mxu0 0.0
  %377 = vmatprep.subr.mxu0 0.0
  %378 = vmatpush1.msra.mxu0 0.0
  %379 = vmatprep.subr.mxu0 0.0
  %380 = vmatpush1.msra.mxu0 0.0
  %381 = vmatprep.subr.mxu0 0.0
  %382 = vmatpush1.msra.mxu0 0.0
  %383 = vmatprep.mubr.f32.mxu0 0.0
  %384 = vmatmul.mubr.f32.gmra.mrb[0].mxu0 %v272
  %v385 = vpop.f32.mrb[0].mxu0
  %v386 = vadd.f32 %v193, %v385
  %v387 = vpop.f32.mrb[0].mxu0
  %388 = vmatprep.mubr.f32.mxu0 0.0
  %389 = vmatmul.mubr.f32.gmra.mrb[0].mxu0 %v275
  %v390 = vpop.f32.mrb[0].mxu0
  %v391 = vadd.f32 %v198, %v390
  %v392 = vpop.f32.mrb[0].mxu0
  %393 = vmatprep.mubr.f32.mxu0 0.0
  %394 = vmatmul.mubr.f32.gmra.mrb[0].mxu0 %v278
  %v395 = vpop.f32.mrb[0].mxu0
  %v396 = vadd.f32 %v203, %v395
  %v397 = vpop.f32.mrb[0].mxu0
  %398 = vmatprep.mubr.f32.mxu0 0.0
  %399 = vmatmul.mubr.f32.gmra.mrb[0].mxu0 %v281
  %v400 = vpop.f32.mrb[0].mxu0
  %v401 = vadd.f32 %v208, %v400
  %v402 = vpop.f32.mrb[0].mxu0
  %403 = vmatprep.mubr.f32.mxu0 0.0
  %404 = vmatmul.mubr.f32.gmra.mrb[0].mxu0 %v284
  %v405 = vpop.f32.mrb[0].mxu0
  %v406 = vadd.f32 %v213, %v405
  %v407 = vpop.f32.mrb[0].mxu0
  %408 = vmatprep.mubr.f32.mxu0 0.0
  %409 = vmatmul.mubr.f32.gmra.mrb[0].mxu0 %v287
  %v410 = vpop.f32.mrb[0].mxu0
  %v411 = vadd.f32 %v218, %v410
  %v412 = vpop.f32.mrb[0].mxu0
  %413 = vmatprep.mubr.f32.mxu0 0.0
  %414 = vmatmul.mubr.f32.gmra.mrb[0].mxu0 %v290
  %v415 = vpop.f32.mrb[0].mxu0
  %v416 = vadd.f32 %v223, %v415
  %v417 = vpop.f32.mrb[0].mxu0
  %418 = vmatprep.mubr.f32.mxu0 0.0
  %419 = vmatmul.mubr.f32.gmra.mrb[0].mxu0 %v293
  %v420 = vpop.f32.mrb[0].mxu0
  %v421 = vadd.f32 %v228, %v420
  %v422 = vpop.f32.mrb[0].mxu0
  %423 = vmatprep.mubr.f32.mxu0 0.0
  %424 = vmatmul.mubr.f32.gmra.mrb[0].mxu0 %v296
  %v425 = vpop.f32.mrb[0].mxu0
  %v426 = vadd.f32 %v233, %v425
  %v427 = vpop.f32.mrb[0].mxu0
  %428 = vmatprep.mubr.f32.mxu0 0.0
  %429 = vmatmul.mubr.f32.gmra.mrb[0].mxu0 %v299
  %v430 = vpop.f32.mrb[0].mxu0
  %v431 = vadd.f32 %v238, %v430
  %v432 = vpop.f32.mrb[0].mxu0
  %433 = vmatprep.mubr.f32.mxu0 0.0
  %434 = vmatmul.mubr.f32.gmra.mrb[0].mxu0 %v302
  %v435 = vpop.f32.mrb[0].mxu0
  %v436 = vadd.f32 %v243, %v435
  %v437 = vpop.f32.mrb[0].mxu0
  %438 = vmatprep.mubr.f32.mxu0 0.0
  %439 = vmatmul.mubr.f32.gmra.mrb[0].mxu0 %v305
  %v440 = vpop.f32.mrb[0].mxu0
  %v441 = vadd.f32 %v248, %v440
  %v442 = vpop.f32.mrb[0].mxu0
  %443 = vmatprep.mubr.f32.mxu0 0.0
  %444 = vmatmul.mubr.f32.gmra.mrb[0].mxu0 %v308
  %v445 = vpop.f32.mrb[0].mxu0
  %v446 = vadd.f32 %v253, %v445
  %v447 = vpop.f32.mrb[0].mxu0
  %448 = vmatprep.mubr.f32.mxu0 0.0
  %449 = vmatmul.mubr.f32.gmra.mrb[0].mxu0 %v311
  %v450 = vpop.f32.mrb[0].mxu0
  %v451 = vadd.f32 %v258, %v450
  %v452 = vpop.f32.mrb[0].mxu0
  %453 = vmatprep.mubr.f32.mxu0 0.0
  %454 = vmatmul.mubr.f32.gmra.mrb[0].mxu0 %v314
  %v455 = vpop.f32.mrb[0].mxu0
  %v456 = vadd.f32 %v263, %v455
  %v457 = vpop.f32.mrb[0].mxu0
  %458 = vmatprep.mubr.f32.mxu0 0.0
  %459 = vmatmul.mubr.f32.gmra.mrb[0].mxu0 %v317
  %v460 = vpop.f32.mrb[0].mxu0
  %v461 = vadd.f32 %v268, %v460
  %v462 = vpop.f32.mrb[0].mxu0
  %463 = vdwg.mxu0
  %vm464 = vcmask 64512
  %465 = vst.msk [vmem:[%s4] sm:$0xff] %vm464, %v386
  %466 = vst.msk [vmem:[%s4 + $0x8] sm:$0xff] %vm464, %v391
  %467 = vst.msk [vmem:[%s4 + $0x10] sm:$0xff] %vm464, %v396
  %468 = vst.msk [vmem:[%s4 + $0x18] sm:$0xff] %vm464, %v401
  %469 = vst.msk [vmem:[%s4 + $0x20] sm:$0xff] %vm464, %v406
  %470 = vst.msk [vmem:[%s4 + $0x28] sm:$0xff] %vm464, %v411
  %471 = vst.msk [vmem:[%s4 + $0x30] sm:$0xff] %vm464, %v416
  %472 = vst.msk [vmem:[%s4 + $0x38] sm:$0xff] %vm464, %v421
  %473 = vst.msk [vmem:[%s4 + $0x40] sm:$0xff] %vm464, %v426
  %474 = vst.msk [vmem:[%s4 + $0x48] sm:$0xff] %vm464, %v431
  %475 = vst.msk [vmem:[%s4 + $0x50] sm:$0xff] %vm464, %v436
  %476 = vst.msk [vmem:[%s4 + $0x58] sm:$0xff] %vm464, %v441
  %477 = vst.msk [vmem:[%s4 + $0x60] sm:$0xff] %vm464, %v446
  %478 = vst.msk [vmem:[%s4 + $0x68] sm:$0xff] %vm464, %v451
  %479 = vst.msk [vmem:[%s4 + $0x70] sm:$0xff] %vm464, %v456
  %480 = vst.msk [vmem:[%s4 + $0x78] sm:$0xff] %vm464, %v461
  %v481 = vld [vmem:[%s5] sm:$0x1]
  %v482 = vsel %vm464, %v386, 0.0
  %v483 = vsel %vm464, %v391, 0.0
  %v484 = vadd.f32 %v482, %v483
  %v485 = vsel %vm464, %v396, 0.0
  %v486 = vadd.f32 %v484, %v485
  %v487 = vsel %vm464, %v401, 0.0
  %v488 = vadd.f32 %v486, %v487
  %v489 = vsel %vm464, %v406, 0.0
  %v490 = vadd.f32 %v488, %v489
  %v491 = vsel %vm464, %v411, 0.0
  %v492 = vadd.f32 %v490, %v491
  %v493 = vsel %vm464, %v416, 0.0
  %v494 = vadd.f32 %v492, %v493
  %v495 = vsel %vm464, %v421, 0.0
  %v496 = vadd.f32 %v494, %v495
  %v497 = vsel %vm464, %v426, 0.0
  %v498 = vadd.f32 %v496, %v497
  %v499 = vsel %vm464, %v431, 0.0
  %v500 = vadd.f32 %v498, %v499
  %v501 = vsel %vm464, %v436, 0.0
  %v502 = vadd.f32 %v500, %v501
  %v503 = vsel %vm464, %v441, 0.0
  %v504 = vadd.f32 %v502, %v503
  %v505 = vsel %vm464, %v446, 0.0
  %v506 = vadd.f32 %v504, %v505
  %v507 = vsel %vm464, %v451, 0.0
  %v508 = vadd.f32 %v506, %v507
  %v509 = vsel %vm464, %v456, 0.0
  %v510 = vadd.f32 %v508, %v509
  %v511 = vsel %vm464, %v461, 0.0
  %v512 = vadd.f32 %v510, %v511
  %v513 = vrot.slane %v512, 4
  %v514 = vadd.f32 %v512, %v513
  %v515 = vrot.slane %v514, 2
  %v516 = vadd.f32 %v514, %v515
  %v517 = vrot.slane %v516, 1
  %v518 = vadd.f32 %v516, %v517
  %v519 = vadd.f32 %v481, %v518
  %vm520 = vcmask 57344
  %521 = vst.msk [vmem:[%s5] sm:$0x1] %vm520, %v519
  %v522 = vld [vmem:[%s6] sm:$0x1]
  %v523 = vmul.f32 %v386, %v386
  %v524 = vmul.f32 %v391, %v391
  %v525 = vmul.f32 %v396, %v396
  %v526 = vmul.f32 %v401, %v401
  %v527 = vmul.f32 %v406, %v406
  %v528 = vmul.f32 %v411, %v411
  %v529 = vmul.f32 %v416, %v416
  %v530 = vmul.f32 %v421, %v421
  %v531 = vmul.f32 %v426, %v426
  %v532 = vmul.f32 %v431, %v431
  %v533 = vmul.f32 %v436, %v436
  %v534 = vmul.f32 %v441, %v441
  %v535 = vmul.f32 %v446, %v446
  %v536 = vmul.f32 %v451, %v451
  %v537 = vmul.f32 %v456, %v456
  %v538 = vmul.f32 %v461, %v461
  %v539 = vsel %vm464, %v523, 0.0
  %v540 = vsel %vm464, %v524, 0.0
  %v541 = vadd.f32 %v539, %v540
  %v542 = vsel %vm464, %v525, 0.0
  %v543 = vadd.f32 %v541, %v542
  %v544 = vsel %vm464, %v526, 0.0
  %v545 = vadd.f32 %v543, %v544
  %v546 = vsel %vm464, %v527, 0.0
  %v547 = vadd.f32 %v545, %v546
  %v548 = vsel %vm464, %v528, 0.0
  %v549 = vadd.f32 %v547, %v548
  %v550 = vsel %vm464, %v529, 0.0
  %v551 = vadd.f32 %v549, %v550
  %v552 = vsel %vm464, %v530, 0.0
  %v553 = vadd.f32 %v551, %v552
  %v554 = vsel %vm464, %v531, 0.0
  %v555 = vadd.f32 %v553, %v554
  %v556 = vsel %vm464, %v532, 0.0
  %v557 = vadd.f32 %v555, %v556
  %v558 = vsel %vm464, %v533, 0.0
  %v559 = vadd.f32 %v557, %v558
  %v560 = vsel %vm464, %v534, 0.0
  %v561 = vadd.f32 %v559, %v560
  %v562 = vsel %vm464, %v535, 0.0
  %v563 = vadd.f32 %v561, %v562
  %v564 = vsel %vm464, %v536, 0.0
  %v565 = vadd.f32 %v563, %v564
  %v566 = vsel %vm464, %v537, 0.0
  %v567 = vadd.f32 %v565, %v566
  %v568 = vsel %vm464, %v538, 0.0
  %v569 = vadd.f32 %v567, %v568
  %v570 = vrot.slane %v569, 4
  %v571 = vadd.f32 %v569, %v570
  %v572 = vrot.slane %v571, 2
  %v573 = vadd.f32 %v571, %v572
  %v574 = vrot.slane %v573, 1
  %v575 = vadd.f32 %v573, %v574
  %v576 = vadd.f32 %v522, %v575
  %577 = vst.msk [vmem:[%s6] sm:$0x1] %vm520, %v576
  // Predicated region
  $region22: #{conv_2nV1_forward.18} parent=0 // pred_check
    _
  $region23: #{conv_2nV1_forward.18} parent=0 // pred_check_branch
    %579 = sbr.rel (0) target = $region25
  $region24: #{conv_2nV1_forward.18} parent=0 // pred_region
    _
  $region25: #{conv_2nV1_forward.18} parent=0 // pred_fallthru
    _
  // Predicated region
  $region26: #{conv_2nV1_forward.18} parent=0 // pred_check
    _
  $region27: #{conv_2nV1_forward.18} parent=0 // pred_check_branch
    %581 = sbr.rel (0) target = $region29
  $region28: #{conv_2nV1_forward.18} parent=0 // pred_region
    _
  $region29: #{conv_2nV1_forward.18} parent=0 // pred_fallthru
    _
  // Predicated region
  $region30: #{conv_2nV1_forward.18} parent=0 // pred_check
    _
  $region31: #{conv_2nV1_forward.18} parent=0 // pred_check_branch
    %583 = sbr.rel (0) target = $region33
  $region32: #{conv_2nV1_forward.18} parent=0 // pred_region
    _
  $region33: #{conv_2nV1_forward.18} parent=0 // pred_fallthru
    _
  // Predicated region
  $region34: #{conv_2nV1_forward.18} parent=0 // pred_check
    _
  $region35: #{conv_2nV1_forward.18} parent=0 // pred_check_branch
    %585 = sbr.rel (0) target = $region37
  $region36: #{conv_2nV1_forward.18} parent=0 // pred_region
    _
  $region37: #{conv_2nV1_forward.18} parent=0 // pred_fallthru
    _
  // Predicated region
  $region38: #{conv_2nV1_forward.18} parent=0 // pred_check
    _
  $region39: #{conv_2nV1_forward.18} parent=0 // pred_check_branch
    %587 = sbr.rel (0) target = $region41
  $region40: #{conv_2nV1_forward.18} parent=0 // pred_region
    _
  $region41: #{conv_2nV1_forward.18} parent=0 // pred_fallthru
    _
  // Predicated region
  $region42: #{conv_2nV1_forward.18} parent=0 // pred_check
    _
  $region43: #{conv_2nV1_forward.18} parent=0 // pred_check_branch
    %589 = sbr.rel (0) target = $region45
  $region44: #{conv_2nV1_forward.18} parent=0 // pred_region
    _
  $region45: #{conv_2nV1_forward.18} parent=0 // pred_fallthru
    _

// kernel: conv_2nV1_forward.23
$region0: #{conv_2nV1_forward.23}
  #allocation0 [shape = 'u32[]', space=smem, size = 0x4, offset = 0x4, fixed_abs, tag = 'smem constant byte address 0x4 - core index']
  #allocation1 [shape = 'u32[144,128]{1,0:T(1,128)}', space=vmem, size = 0x12000, scoped, tag = 'internal scratch']
  %s0 = inlined_call_operand.vmem [shape: f32[512,8], index: 0, kind: input, shape index: {}]
  %s1 = inlined_call_operand.vmem [shape: f32[512,8], index: 1, kind: input, shape index: {}]
  %s2 = inlined_call_operand.vmem [shape: f32[8,8], index: 2, kind: input, shape index: {}]
  %s3 = inlined_call_operand.vmem [shape: f32[1,8], index: 3, kind: input, shape index: {}]
  %s4 = inlined_call_operand.vmem [shape: f32[1,8], index: 4, kind: input, shape index: {}]
  %s5 = inlined_call_operand.vmem [shape: f32[512,8], index: 5, kind: output, shape index: {}]
  %s6 = sld [smem:[#allocation0]]
  $region53: #{conv_2nV1_forward.23} parent=0
    _
  %s8 = ssub.s32 1, %s6
  %s9 = scalar_select 0, %s8, %s6
  loop: start=0, step=1, limit=4
  $region2: #{conv_2nV1_forward.23} parent=0 // loop_pre_header
    _
  $region3: #{conv_2nV1_forward.23} parent=0 // loop_header
    %s11 = sphi 0, %s15
    %p12 = scmp.ge.s32.totalorder %s11, 4
    %s21 = sphi 0, %s23
    %s24 = sphi 0, %s21
    %s25 = sphi 0, %s24
    %s41 = sphi 0, %s25
    %s47 = sphi 0, %s49
    %s50 = sphi 0, %s47
    %s51 = sphi 0, %s50
    %s67 = sphi 0, %s51
    %s71 = sphi 0, %s71
    %s73 = sphi 0, %s71
    %s74 = sphi 0, %s73
    %s88 = sphi 0, %s74
    %s92 = sphi 0, %s92
    %s94 = sphi 0, %s92
    %s95 = sphi 0, %s94
    %s109 = sphi 0, %s95
    %s113 = sphi 0, %s113
    %s115 = sphi 0, %s113
    %s116 = sphi 0, %s115
    %s130 = sphi 0, %s116
    %s136 = sphi 0, %s138
    %s139 = sphi 0, %s136
    %s140 = sphi 0, %s139
    %s156 = sphi 0, %s140
  $region4: #{conv_2nV1_forward.23} parent=0 // loop_header_branch
    %14 = sbr.rel (%p12) target = $region8
  $region5: #{conv_2nV1_forward.23} parent=0 // loop_body
    %s16 = ssub.s32 %s11, 1
    %s17 = ssub.s32 %s11, 2
    %s18 = sadd.s32 %s11, 1
    %s19 = ssub.s32 %s11, %s18
    %p20 = scmp.eq.s32.totalorder %s19, 0
    %s22 = sadd.s32 %s21, 1
    %s23 = scalar_select %p20, %s21, %s22
    %p26 = pneg %p20
    %p27 = scmp.eq.s32.totalorder %s11, 1
    %p28 = por %p26, %p27
    %p29 = scmp.ne.s32.totalorder %s21, %s24
    %p30 = scmp.eq.s32.totalorder %s11, 0
    %p31 = por %p29, %p30
    %p32 = scmp.ne.s32.totalorder %s21, %s24
    %p33 = scmp.eq.s32.totalorder %s16, 1
    %p34 = por %p32, %p33
    %p35 = scmp.ne.s32.totalorder %s24, %s25
    %p36 = scmp.eq.s32.totalorder %s16, 0
    %p37 = por %p35, %p36
    %p38 = scmp.ne.s32.totalorder %s24, %s25
    %p39 = scmp.eq.s32.totalorder %s17, 1
    %p40 = por %p38, %p39
    %p42 = scmp.ne.s32.totalorder %s25, %s41
    %p43 = scmp.eq.s32.totalorder %s17, 0
    %p44 = por %p42, %p43
    %s45 = ssub.s32 %s11, %s18
    %p46 = scmp.eq.s32.totalorder %s45, 0
    %s48 = sadd.s32 %s47, 1
    %s49 = scalar_select %p46, %s47, %s48
    %p52 = pneg %p46
    %p53 = scmp.eq.s32.totalorder %s11, 1
    %p54 = por %p52, %p53
    %p55 = scmp.ne.s32.totalorder %s47, %s50
    %p56 = scmp.eq.s32.totalorder %s11, 0
    %p57 = por %p55, %p56
    %p58 = scmp.ne.s32.totalorder %s47, %s50
    %p59 = scmp.eq.s32.totalorder %s16, 1
    %p60 = por %p58, %p59
    %p61 = scmp.ne.s32.totalorder %s50, %s51
    %p62 = scmp.eq.s32.totalorder %s16, 0
    %p63 = por %p61, %p62
    %p64 = scmp.ne.s32.totalorder %s50, %s51
    %p65 = scmp.eq.s32.totalorder %s17, 1
    %p66 = por %p64, %p65
    %p68 = scmp.ne.s32.totalorder %s51, %s67
    %p69 = scmp.eq.s32.totalorder %s17, 0
    %p70 = por %p68, %p69
    %s72 = sadd.s32 %s71, 1
    %p75 = scmp.eq.s32.totalorder %s11, 1
    %p76 = scmp.ne.s32.totalorder %s71, %s73
    %p77 = scmp.eq.s32.totalorder %s11, 0
    %p78 = por %p76, %p77
    %p79 = scmp.ne.s32.totalorder %s71, %s73
    %p80 = scmp.eq.s32.totalorder %s16, 1
    %p81 = por %p79, %p80
    %p82 = scmp.ne.s32.totalorder %s73, %s74
    %p83 = scmp.eq.s32.totalorder %s16, 0
    %p84 = por %p82, %p83
    %p85 = scmp.ne.s32.totalorder %s73, %s74
    %p86 = scmp.eq.s32.totalorder %s17, 1
    %p87 = por %p85, %p86
    %p89 = scmp.ne.s32.totalorder %s74, %s88
    %p90 = scmp.eq.s32.totalorder %s17, 0
    %p91 = por %p89, %p90
    %s93 = sadd.s32 %s92, 1
    %p96 = scmp.eq.s32.totalorder %s11, 1
    %p97 = scmp.ne.s32.totalorder %s92, %s94
    %p98 = scmp.eq.s32.totalorder %s11, 0
    %p99 = por %p97, %p98
    %p100 = scmp.ne.s32.totalorder %s92, %s94
    %p101 = scmp.eq.s32.totalorder %s16, 1
    %p102 = por %p100, %p101
    %p103 = scmp.ne.s32.totalorder %s94, %s95
    %p104 = scmp.eq.s32.totalorder %s16, 0
    %p105 = por %p103, %p104
    %p106 = scmp.ne.s32.totalorder %s94, %s95
    %p107 = scmp.eq.s32.totalorder %s17, 1
    %p108 = por %p106, %p107
    %p110 = scmp.ne.s32.totalorder %s95, %s109
    %p111 = scmp.eq.s32.totalorder %s17, 0
    %p112 = por %p110, %p111
    %s114 = sadd.s32 %s113, 1
    %p117 = scmp.eq.s32.totalorder %s11, 1
    %p118 = scmp.ne.s32.totalorder %s113, %s115
    %p119 = scmp.eq.s32.totalorder %s11, 0
    %p120 = por %p118, %p119
    %p121 = scmp.ne.s32.totalorder %s113, %s115
    %p122 = scmp.eq.s32.totalorder %s16, 1
    %p123 = por %p121, %p122
    %p124 = scmp.ne.s32.totalorder %s115, %s116
    %p125 = scmp.eq.s32.totalorder %s16, 0
    %p126 = por %p124, %p125
    %p127 = scmp.ne.s32.totalorder %s115, %s116
    %p128 = scmp.eq.s32.totalorder %s17, 1
    %p129 = por %p127, %p128
    %p131 = scmp.ne.s32.totalorder %s116, %s130
    %p132 = scmp.eq.s32.totalorder %s17, 0
    %p133 = por %p131, %p132
    %s134 = ssub.s32 %s11, %s18
    %p135 = scmp.eq.s32.totalorder %s134, 0
    %s137 = sadd.s32 %s136, 1
    %s138 = scalar_select %p135, %s136, %s137
    %p141 = pneg %p135
    %p142 = scmp.eq.s32.totalorder %s11, 1
    %p143 = por %p141, %p142
    %p144 = scmp.ne.s32.totalorder %s136, %s139
    %p145 = scmp.eq.s32.totalorder %s11, 0
    %p146 = por %p144, %p145
    %p147 = scmp.ne.s32.totalorder %s136, %s139
    %p148 = scmp.eq.s32.totalorder %s16, 1
    %p149 = por %p147, %p148
    %p150 = scmp.ne.s32.totalorder %s139, %s140
    %p151 = scmp.eq.s32.totalorder %s16, 0
    %p152 = por %p150, %p151
    %p153 = scmp.ne.s32.totalorder %s139, %s140
    %p154 = scmp.eq.s32.totalorder %s17, 1
    %p155 = por %p153, %p154
    %p157 = scmp.ne.s32.totalorder %s140, %s156
    %p158 = scmp.eq.s32.totalorder %s17, 0
    %p159 = por %p157, %p158
    %p160 = scmp.le.s32.totalorder 1, %s11
    %p161 = scmp.lt.s32.totalorder %s11, 3
    %p162 = pnand %p160, %p161
    %p163 = pneg %p162
    // Predicated region
    $region9: #{conv_2nV1_forward.23} parent=5 // pred_check
      _
    $region10: #{conv_2nV1_forward.23} parent=5 // pred_check_branch
      %165 = sbr.rel (%p162) target = $region12
    $region11: #{conv_2nV1_forward.23} parent=5 // pred_region
      %s166 = ssub.s32 %s11, 1
      // Predicated region
      $region13: #{conv_2nV1_forward.23} parent=11 // pred_check
        %p167 = pneg %p84
      $region14: #{conv_2nV1_forward.23} parent=11 // pred_check_branch
        %169 = sbr.rel (%p167) target = $region16
      $region15: #{conv_2nV1_forward.23} parent=11 // pred_region
        _
      $region16: #{conv_2nV1_forward.23} parent=11 // pred_fallthru
        _
      // Predicated region
      $region17: #{conv_2nV1_forward.23} parent=11 // pred_check
        %p170 = pneg %p105
      $region18: #{conv_2nV1_forward.23} parent=11 // pred_check_branch
        %172 = sbr.rel (%p170) target = $region20
      $region19: #{conv_2nV1_forward.23} parent=11 // pred_region
        _
      $region20: #{conv_2nV1_forward.23} parent=11 // pred_fallthru
        _
      // Predicated region
      $region21: #{conv_2nV1_forward.23} parent=11 // pred_check
        %p173 = pneg %p126
      $region22: #{conv_2nV1_forward.23} parent=11 // pred_check_branch
        %175 = sbr.rel (%p173) target = $region24
      $region23: #{conv_2nV1_forward.23} parent=11 // pred_region
        _
      $region24: #{conv_2nV1_forward.23} parent=11 // pred_fallthru
        _
    $region12: #{conv_2nV1_forward.23} parent=5 // pred_fallthru
      _
    %p176 = scmp.lt.s32.totalorder %s11, 2
    // Predicated region
    $region25: #{conv_2nV1_forward.23} parent=5 // pred_check
      %p177 = pneg %p176
    $region26: #{conv_2nV1_forward.23} parent=5 // pred_check_branch
      %179 = sbr.rel (%p177) target = $region28
    $region27: #{conv_2nV1_forward.23} parent=5 // pred_region
      // Predicated region
      $region29: #{conv_2nV1_forward.23} parent=27 // pred_check
        %p180 = pneg %p31
      $region30: #{conv_2nV1_forward.23} parent=27 // pred_check_branch
        %182 = sbr.rel (%p180) target = $region32
      $region31: #{conv_2nV1_forward.23} parent=27 // pred_region
        %s183 = smul.u32 32, %s11
        %p184 = scmp.lt.s32.totalorder %s183, 63
        %s185 = scalar_select %p184, %s183, 63
        %s186 = smul.addr %s185, 8
        %s187 = scalar_lea.vmem %s0, %s186
        %s188 = smul.u32 32, %s11
      $region32: #{conv_2nV1_forward.23} parent=27 // pred_fallthru
        _
      // Predicated region
      $region33: #{conv_2nV1_forward.23} parent=27 // pred_check
        %p189 = pneg %p57
      $region34: #{conv_2nV1_forward.23} parent=27 // pred_check_branch
        %191 = sbr.rel (%p189) target = $region36
      $region35: #{conv_2nV1_forward.23} parent=27 // pred_region
        %s192 = smul.u32 32, %s11
        %p193 = scmp.lt.s32.totalorder %s192, 63
        %s194 = scalar_select %p193, %s192, 63
        %s195 = smul.addr %s194, 8
        %s196 = scalar_lea.vmem %s1, %s195
        %s197 = smul.u32 32, %s11
      $region36: #{conv_2nV1_forward.23} parent=27 // pred_fallthru
        _
    $region28: #{conv_2nV1_forward.23} parent=5 // pred_fallthru
      _
    %p198 = scmp.le.s32.totalorder 1, %s11
    %p199 = scmp.lt.s32.totalorder %s11, 3
    %p200 = pnand %p198, %p199
    %p201 = pneg %p200
    // Predicated region
    $region37: #{conv_2nV1_forward.23} parent=5 // pred_check
      _
    $region38: #{conv_2nV1_forward.23} parent=5 // pred_check_branch
      %203 = sbr.rel (%p200) target = $region40
    $region39: #{conv_2nV1_forward.23} parent=5 // pred_region
      %s204 = ssub.s32 %s11, 1
      %s205 = smul.u32 32, %s16
      %p206 = scmp.lt.s32.totalorder %s205, 63
      %s207 = scalar_select %p206, %s205, 63
      %s208 = smul.addr %s207, 8
      %s209 = scalar_lea.vmem %s0, %s208
      %p210 = pneg %p37
      %p211 = pneg %p34
      %s212 = smul.u32 32, %s16
      %p213 = scmp.lt.s32.totalorder %s212, 63
      %s214 = scalar_select %p213, %s212, 63
      %s215 = smul.addr %s214, 8
      %s216 = scalar_lea.vmem %s1, %s215
      %p217 = pneg %p63
      %p218 = pneg %p60
      %p219 = pneg %p84
      %p220 = pneg %p81
      %p221 = pneg %p105
      %p222 = pneg %p102
      %p223 = pneg %p126
      %p224 = pneg %p123
      %p225 = pneg %p152
      %p226 = pneg %p149
      %s227 = smul.u32 32, %s16
      %p228 = scmp.lt.s32.totalorder %s227, 63
      %s229 = scalar_select %p228, %s227, 63
      %s230 = smul.addr %s229, 8
      %s231 = scalar_lea.vmem %s5, %s230
      %s232 = smul.u32 32, %s16
      %p233 = scmp.lt.s32.totalorder %s232, 63
      %s234 = scalar_select %p233, %s232, 63
      %s235 = smul.addr %s234, 8
      %s236 = scalar_lea.vmem %s0, %s235
      %s237 = smul.u32 32, %s16
      %s238 = smul.u32 32, %s16
      %p239 = scmp.lt.s32.totalorder %s238, 63
      %s240 = scalar_select %p239, %s238, 63
      %s241 = smul.addr %s240, 8
      %s242 = scalar_lea.vmem %s1, %s241
      %s243 = smul.u32 32, %s16
      %s244 = smul.u32 32, %s16
      %p245 = scmp.lt.s32.totalorder %s244, 63
      %s246 = scalar_select %p245, %s244, 63
      %s247 = smul.addr %s246, 8
      %s248 = scalar_lea.vmem %s5, %s247
      %s249 = smul.u32 32, %s16
      %v250 = vld [vmem:[%s242] sm:$0xff]
      %v251 = vld [vmem:[%s242 + $0x8] sm:$0xff]
      %v252 = vld [vmem:[%s242 + $0x10] sm:$0xff]
      %v253 = vld [vmem:[%s242 + $0x18] sm:$0xff]
      %v254 = vld [vmem:[%s242 + $0x20] sm:$0xff]
      %v255 = vld [vmem:[%s242 + $0x28] sm:$0xff]
      %v256 = vld [vmem:[%s242 + $0x30] sm:$0xff]
      %v257 = vld [vmem:[%s242 + $0x38] sm:$0xff]
      %v258 = vld [vmem:[%s242 + $0x40] sm:$0xff]
      %v259 = vld [vmem:[%s242 + $0x48] sm:$0xff]
      %v260 = vld [vmem:[%s242 + $0x50] sm:$0xff]
      %v261 = vld [vmem:[%s242 + $0x58] sm:$0xff]
      %v262 = vld [vmem:[%s242 + $0x60] sm:$0xff]
      %v263 = vld [vmem:[%s242 + $0x68] sm:$0xff]
      %v264 = vld [vmem:[%s242 + $0x70] sm:$0xff]
      %v265 = vld [vmem:[%s242 + $0x78] sm:$0xff]
      %v266 = vld [vmem:[%s242 + $0x80] sm:$0xff]
      %v267 = vld [vmem:[%s242 + $0x88] sm:$0xff]
      %v268 = vld [vmem:[%s242 + $0x90] sm:$0xff]
      %v269 = vld [vmem:[%s242 + $0x98] sm:$0xff]
      %v270 = vld [vmem:[%s242 + $0xa0] sm:$0xff]
      %v271 = vld [vmem:[%s242 + $0xa8] sm:$0xff]
      %v272 = vld [vmem:[%s242 + $0xb0] sm:$0xff]
      %v273 = vld [vmem:[%s242 + $0xb8] sm:$0xff]
      %v274 = vld [vmem:[%s242 + $0xc0] sm:$0xff]
      %v275 = vld [vmem:[%s242 + $0xc8] sm:$0xff]
      %v276 = vld [vmem:[%s242 + $0xd0] sm:$0xff]
      %v277 = vld [vmem:[%s242 + $0xd8] sm:$0xff]
      %v278 = vld [vmem:[%s242 + $0xe0] sm:$0xff]
      %v279 = vld [vmem:[%s242 + $0xe8] sm:$0xff]
      %v280 = vld [vmem:[%s242 + $0xf0] sm:$0xff]
      %v281 = vld [vmem:[%s242 + $0xf8] sm:$0xff]
      %v282 = vld [vmem:[%s2] sm:$0xff]
      %vm283 = vcmask 64512
      %v285 = vsel %vm283, %v250, 0
      %v288 = vsel %vm283, %v251, 0
      %v291 = vsel %vm283, %v252, 0
      %v294 = vsel %vm283, %v253, 0
      %v297 = vsel %vm283, %v254, 0
      %v300 = vsel %vm283, %v255, 0
      %v303 = vsel %vm283, %v256, 0
      %v306 = vsel %vm283, %v257, 0
      %v309 = vsel %vm283, %v258, 0
      %v312 = vsel %vm283, %v259, 0
      %v315 = vsel %vm283, %v260, 0
      %v318 = vsel %vm283, %v261, 0
      %v321 = vsel %vm283, %v262, 0
      %v324 = vsel %vm283, %v263, 0
      %v327 = vsel %vm283, %v264, 0
      %v330 = vsel %vm283, %v265, 0
      %v333 = vsel %vm283, %v266, 0
      %v336 = vsel %vm283, %v267, 0
      %v339 = vsel %vm283, %v268, 0
      %v342 = vsel %vm283, %v269, 0
      %v345 = vsel %vm283, %v270, 0
      %v348 = vsel %vm283, %v271, 0
      %v351 = vsel %vm283, %v272, 0
      %v354 = vsel %vm283, %v273, 0
      %v357 = vsel %vm283, %v274, 0
      %v360 = vsel %vm283, %v275, 0
      %v363 = vsel %vm283, %v276, 0
      %v366 = vsel %vm283, %v277, 0
      %v369 = vsel %vm283, %v278, 0
      %v372 = vsel %vm283, %v279, 0
      %v375 = vsel %vm283, %v280, 0
      %v378 = vsel %vm283, %v281, 0
      %380 = vmatprep.subr.mxu0 0.0
      %381 = vmatpush1.msra.mxu0 %v282
      %382 = vmatprep.subr.mxu0 0.0
      %383 = vmatpush1.msra.mxu0 0.0
      %384 = vmatprep.subr.mxu0 0.0
      %385 = vmatpush1.msra.mxu0 0.0
      %386 = vmatprep.subr.mxu0 0.0
      %387 = vmatpush1.msra.mxu0 0.0
      %388 = vmatprep.subr.mxu0 0.0
      %389 = vmatpush1.msra.mxu0 0.0
      %390 = vmatprep.subr.mxu0 0.0
      %391 = vmatpush1.msra.mxu0 0.0
      %392 = vmatprep.subr.mxu0 0.0
      %393 = vmatpush1.msra.mxu0 0.0
      %394 = vmatprep.subr.mxu0 0.0
      %395 = vmatpush1.msra.mxu0 0.0
      %396 = vmatprep.subr.mxu0 0.0
      %397 = vmatpush1.msra.mxu0 0.0
      %398 = vmatprep.subr.mxu0 0.0
      %399 = vmatpush1.msra.mxu0 0.0
      %400 = vmatprep.subr.mxu0 0.0
      %401 = vmatpush1.msra.mxu0 0.0
      %402 = vmatprep.subr.mxu0 0.0
      %403 = vmatpush1.msra.mxu0 0.0
      %404 = vmatprep.subr.mxu0 0.0
      %405 = vmatpush1.msra.mxu0 0.0
      %406 = vmatprep.subr.mxu0 0.0
      %407 = vmatpush1.msra.mxu0 0.0
      %408 = vmatprep.subr.mxu0 0.0
      %409 = vmatpush1.msra.mxu0 0.0
      %410 = vmatprep.subr.mxu0 0.0
      %411 = vmatpush1.msra.mxu0 0.0
      %412 = vmatprep.subr.mxu0 0.0
      %413 = vmatpush1.msra.mxu0 0.0
      %414 = vmatprep.subr.mxu0 0.0
      %415 = vmatpush1.msra.mxu0 0.0
      %416 = vmatprep.subr.mxu0 0.0
      %417 = vmatpush1.msra.mxu0 0.0
      %418 = vmatprep.subr.mxu0 0.0
      %419 = vmatpush1.msra.mxu0 0.0
      %420 = vmatprep.subr.mxu0 0.0
      %421 = vmatpush1.msra.mxu0 0.0
      %422 = vmatprep.subr.mxu0 0.0
      %423 = vmatpush1.msra.mxu0 0.0
      %424 = vmatprep.subr.mxu0 0.0
      %425 = vmatpush1.msra.mxu0 0.0
      %426 = vmatprep.subr.mxu0 0.0
      %427 = vmatpush1.msra.mxu0 0.0
      %428 = vmatprep.subr.mxu0 0.0
      %429 = vmatpush1.msra.mxu0 0.0
      %430 = vmatprep.subr.mxu0 0.0
      %431 = vmatpush1.msra.mxu0 0.0
      %432 = vmatprep.subr.mxu0 0.0
      %433 = vmatpush1.msra.mxu0 0.0
      %434 = vmatprep.subr.mxu0 0.0
      %435 = vmatpush1.msra.mxu0 0.0
      %436 = vmatprep.subr.mxu0 0.0
      %437 = vmatpush1.msra.mxu0 0.0
      %438 = vmatprep.subr.mxu0 0.0
      %439 = vmatpush1.msra.mxu0 0.0
      %440 = vmatprep.subr.mxu0 0.0
      %441 = vmatpush1.msra.mxu0 0.0
      %442 = vmatprep.subr.mxu0 0.0
      %443 = vmatpush1.msra.mxu0 0.0
      %444 = vmatprep.mubr.f32.mxu0 0.0
      %445 = vmatmul.mubr.f32.gmra.mrb[0].mxu0 %v285
      %v446 = vpop.f32.mrb[0].mxu0
      %v447 = vadd.f32 0.0, %v446
      %v448 = vpop.f32.mrb[0].mxu0
      %449 = vmatprep.mubr.f32.mxu0 0.0
      %450 = vmatmul.mubr.f32.gmra.mrb[0].mxu0 %v288
      %v451 = vpop.f32.mrb[0].mxu0
      %v452 = vadd.f32 0.0, %v451
      %v453 = vpop.f32.mrb[0].mxu0
      %454 = vmatprep.mubr.f32.mxu0 0.0
      %455 = vmatmul.mubr.f32.gmra.mrb[0].mxu0 %v291
      %v456 = vpop.f32.mrb[0].mxu0
      %v457 = vadd.f32 0.0, %v456
      %v458 = vpop.f32.mrb[0].mxu0
      %459 = vmatprep.mubr.f32.mxu0 0.0
      %460 = vmatmul.mubr.f32.gmra.mrb[0].mxu0 %v294
      %v461 = vpop.f32.mrb[0].mxu0
      %v462 = vadd.f32 0.0, %v461
      %v463 = vpop.f32.mrb[0].mxu0
      %464 = vmatprep.mubr.f32.mxu0 0.0
      %465 = vmatmul.mubr.f32.gmra.mrb[0].mxu0 %v297
      %v466 = vpop.f32.mrb[0].mxu0
      %v467 = vadd.f32 0.0, %v466
      %v468 = vpop.f32.mrb[0].mxu0
      %469 = vmatprep.mubr.f32.mxu0 0.0
      %470 = vmatmul.mubr.f32.gmra.mrb[0].mxu0 %v300
      %v471 = vpop.f32.mrb[0].mxu0
      %v472 = vadd.f32 0.0, %v471
      %v473 = vpop.f32.mrb[0].mxu0
      %474 = vmatprep.mubr.f32.mxu0 0.0
      %475 = vmatmul.mubr.f32.gmra.mrb[0].mxu0 %v303
      %v476 = vpop.f32.mrb[0].mxu0
      %v477 = vadd.f32 0.0, %v476
      %v478 = vpop.f32.mrb[0].mxu0
      %479 = vmatprep.mubr.f32.mxu0 0.0
      %480 = vmatmul.mubr.f32.gmra.mrb[0].mxu0 %v306
      %v481 = vpop.f32.mrb[0].mxu0
      %v482 = vadd.f32 0.0, %v481
      %v483 = vpop.f32.mrb[0].mxu0
      %484 = vmatprep.mubr.f32.mxu0 0.0
      %485 = vmatmul.mubr.f32.gmra.mrb[0].mxu0 %v309
      %v486 = vpop.f32.mrb[0].mxu0
      %v487 = vadd.f32 0.0, %v486
      %v488 = vpop.f32.mrb[0].mxu0
      %489 = vmatprep.mubr.f32.mxu0 0.0
      %490 = vmatmul.mubr.f32.gmra.mrb[0].mxu0 %v312
      %v491 = vpop.f32.mrb[0].mxu0
      %v492 = vadd.f32 0.0, %v491
      %v493 = vpop.f32.mrb[0].mxu0
      %494 = vmatprep.mubr.f32.mxu0 0.0
      %495 = vmatmul.mubr.f32.gmra.mrb[0].mxu0 %v315
      %v496 = vpop.f32.mrb[0].mxu0
      %v497 = vadd.f32 0.0, %v496
      %v498 = vpop.f32.mrb[0].mxu0
      %499 = vmatprep.mubr.f32.mxu0 0.0
      %500 = vmatmul.mubr.f32.gmra.mrb[0].mxu0 %v318
      %v501 = vpop.f32.mrb[0].mxu0
      %v502 = vadd.f32 0.0, %v501
      %v503 = vpop.f32.mrb[0].mxu0
      %504 = vmatprep.mubr.f32.mxu0 0.0
      %505 = vmatmul.mubr.f32.gmra.mrb[0].mxu0 %v321
      %v506 = vpop.f32.mrb[0].mxu0
      %v507 = vadd.f32 0.0, %v506
      %v508 = vpop.f32.mrb[0].mxu0
      %509 = vmatprep.mubr.f32.mxu0 0.0
      %510 = vmatmul.mubr.f32.gmra.mrb[0].mxu0 %v324
      %v511 = vpop.f32.mrb[0].mxu0
      %v512 = vadd.f32 0.0, %v511
      %v513 = vpop.f32.mrb[0].mxu0
      %514 = vmatprep.mubr.f32.mxu0 0.0
      %515 = vmatmul.mubr.f32.gmra.mrb[0].mxu0 %v327
      %v516 = vpop.f32.mrb[0].mxu0
      %v517 = vadd.f32 0.0, %v516
      %v518 = vpop.f32.mrb[0].mxu0
      %519 = vmatprep.mubr.f32.mxu0 0.0
      %520 = vmatmul.mubr.f32.gmra.mrb[0].mxu0 %v330
      %v521 = vpop.f32.mrb[0].mxu0
      %v522 = vadd.f32 0.0, %v521
      %v523 = vpop.f32.mrb[0].mxu0
      %524 = vmatprep.mubr.f32.mxu0 0.0
      %525 = vmatmul.mubr.f32.gmra.mrb[0].mxu0 %v333
      %v526 = vpop.f32.mrb[0].mxu0
      %v527 = vadd.f32 0.0, %v526
      %v528 = vpop.f32.mrb[0].mxu0
      %529 = vmatprep.mubr.f32.mxu0 0.0
      %530 = vmatmul.mubr.f32.gmra.mrb[0].mxu0 %v336
      %v531 = vpop.f32.mrb[0].mxu0
      %v532 = vadd.f32 0.0, %v531
      %v533 = vpop.f32.mrb[0].mxu0
      %534 = vmatprep.mubr.f32.mxu0 0.0
      %535 = vmatmul.mubr.f32.gmra.mrb[0].mxu0 %v339
      %v536 = vpop.f32.mrb[0].mxu0
      %v537 = vadd.f32 0.0, %v536
      %v538 = vpop.f32.mrb[0].mxu0
      %539 = vmatprep.mubr.f32.mxu0 0.0
      %540 = vmatmul.mubr.f32.gmra.mrb[0].mxu0 %v342
      %v541 = vpop.f32.mrb[0].mxu0
      %v542 = vadd.f32 0.0, %v541
      %v543 = vpop.f32.mrb[0].mxu0
      %544 = vmatprep.mubr.f32.mxu0 0.0
      %545 = vmatmul.mubr.f32.gmra.mrb[0].mxu0 %v345
      %v546 = vpop.f32.mrb[0].mxu0
      %v547 = vadd.f32 0.0, %v546
      %v548 = vpop.f32.mrb[0].mxu0
      %549 = vmatprep.mubr.f32.mxu0 0.0
      %550 = vmatmul.mubr.f32.gmra.mrb[0].mxu0 %v348
      %v551 = vpop.f32.mrb[0].mxu0
      %v552 = vadd.f32 0.0, %v551
      %v553 = vpop.f32.mrb[0].mxu0
      %554 = vmatprep.mubr.f32.mxu0 0.0
      %555 = vmatmul.mubr.f32.gmra.mrb[0].mxu0 %v351
      %v556 = vpop.f32.mrb[0].mxu0
      %v557 = vadd.f32 0.0, %v556
      %v558 = vpop.f32.mrb[0].mxu0
      %559 = vmatprep.mubr.f32.mxu0 0.0
      %560 = vmatmul.mubr.f32.gmra.mrb[0].mxu0 %v354
      %v561 = vpop.f32.mrb[0].mxu0
      %v562 = vadd.f32 0.0, %v561
      %v563 = vpop.f32.mrb[0].mxu0
      %564 = vmatprep.mubr.f32.mxu0 0.0
      %565 = vmatmul.mubr.f32.gmra.mrb[0].mxu0 %v357
      %v566 = vpop.f32.mrb[0].mxu0
      %v567 = vadd.f32 0.0, %v566
      %v568 = vpop.f32.mrb[0].mxu0
      %569 = vmatprep.mubr.f32.mxu0 0.0
      %570 = vmatmul.mubr.f32.gmra.mrb[0].mxu0 %v360
      %v571 = vpop.f32.mrb[0].mxu0
      %v572 = vadd.f32 0.0, %v571
      %v573 = vpop.f32.mrb[0].mxu0
      %574 = vmatprep.mubr.f32.mxu0 0.0
      %575 = vmatmul.mubr.f32.gmra.mrb[0].mxu0 %v363
      %v576 = vpop.f32.mrb[0].mxu0
      %v577 = vadd.f32 0.0, %v576
      %v578 = vpop.f32.mrb[0].mxu0
      %579 = vmatprep.mubr.f32.mxu0 0.0
      %580 = vmatmul.mubr.f32.gmra.mrb[0].mxu0 %v366
      %v581 = vpop.f32.mrb[0].mxu0
      %v582 = vadd.f32 0.0, %v581
      %v583 = vpop.f32.mrb[0].mxu0
      %584 = vmatprep.mubr.f32.mxu0 0.0
      %585 = vmatmul.mubr.f32.gmra.mrb[0].mxu0 %v369
      %v586 = vpop.f32.mrb[0].mxu0
      %v587 = vadd.f32 0.0, %v586
      %v588 = vpop.f32.mrb[0].mxu0
      %589 = vmatprep.mubr.f32.mxu0 0.0
      %590 = vmatmul.mubr.f32.gmra.mrb[0].mxu0 %v372
      %v591 = vpop.f32.mrb[0].mxu0
      %v592 = vadd.f32 0.0, %v591
      %v593 = vpop.f32.mrb[0].mxu0
      %594 = vmatprep.mubr.f32.mxu0 0.0
      %595 = vmatmul.mubr.f32.gmra.mrb[0].mxu0 %v375
      %v596 = vpop.f32.mrb[0].mxu0
      %v597 = vadd.f32 0.0, %v596
      %v598 = vpop.f32.mrb[0].mxu0
      %599 = vmatprep.mubr.f32.mxu0 0.0
      %600 = vmatmul.mubr.f32.gmra.mrb[0].mxu0 %v378
      %v601 = vpop.f32.mrb[0].mxu0
      %v602 = vadd.f32 0.0, %v601
      %v603 = vpop.f32.mrb[0].mxu0
      %604 = vdwg.mxu0
      %v605 = vld [vmem:[%s236] sm:$0xff]
      %v606 = vld [vmem:[%s236 + $0x8] sm:$0xff]
      %v607 = vld [vmem:[%s236 + $0x10] sm:$0xff]
      %v608 = vld [vmem:[%s236 + $0x18] sm:$0xff]
      %v609 = vld [vmem:[%s236 + $0x20] sm:$0xff]
      %v610 = vld [vmem:[%s236 + $0x28] sm:$0xff]
      %v611 = vld [vmem:[%s236 + $0x30] sm:$0xff]
      %v612 = vld [vmem:[%s236 + $0x38] sm:$0xff]
      %v613 = vld [vmem:[%s236 + $0x40] sm:$0xff]
      %v614 = vld [vmem:[%s236 + $0x48] sm:$0xff]
      %v615 = vld [vmem:[%s236 + $0x50] sm:$0xff]
      %v616 = vld [vmem:[%s236 + $0x58] sm:$0xff]
      %v617 = vld [vmem:[%s236 + $0x60] sm:$0xff]
      %v618 = vld [vmem:[%s236 + $0x68] sm:$0xff]
      %v619 = vld [vmem:[%s236 + $0x70] sm:$0xff]
      %v620 = vld [vmem:[%s236 + $0x78] sm:$0xff]
      %v621 = vld [vmem:[%s236 + $0x80] sm:$0xff]
      %v622 = vld [vmem:[%s236 + $0x88] sm:$0xff]
      %v623 = vld [vmem:[%s236 + $0x90] sm:$0xff]
      %v624 = vld [vmem:[%s236 + $0x98] sm:$0xff]
      %v625 = vld [vmem:[%s236 + $0xa0] sm:$0xff]
      %v626 = vld [vmem:[%s236 + $0xa8] sm:$0xff]
      %v627 = vld [vmem:[%s236 + $0xb0] sm:$0xff]
      %v628 = vld [vmem:[%s236 + $0xb8] sm:$0xff]
      %v629 = vld [vmem:[%s236 + $0xc0] sm:$0xff]
      %v630 = vld [vmem:[%s236 + $0xc8] sm:$0xff]
      %v631 = vld [vmem:[%s236 + $0xd0] sm:$0xff]
      %v632 = vld [vmem:[%s236 + $0xd8] sm:$0xff]
      %v633 = vld [vmem:[%s236 + $0xe0] sm:$0xff]
      %v634 = vld [vmem:[%s236 + $0xe8] sm:$0xff]
      %v635 = vld [vmem:[%s236 + $0xf0] sm:$0xff]
      %v636 = vld [vmem:[%s236 + $0xf8] sm:$0xff]
      %v637 = vld [vmem:[%s3] sm:$0x1]
      %v639 = vlaneseq
      %v640 = vshrl.u32 %v639, 7
      %v641 = vsub.s32 0, %v640
      %v642 = vrot.slane %v637, %v641
      %v644 = vmul.f32 %v605, %v642
      %v645 = vmul.f32 %v606, %v642
      %v646 = vmul.f32 %v607, %v642
      %v647 = vmul.f32 %v608, %v642
      %v648 = vmul.f32 %v609, %v642
      %v649 = vmul.f32 %v610, %v642
      %v650 = vmul.f32 %v611, %v642
      %v651 = vmul.f32 %v612, %v642
      %v652 = vmul.f32 %v613, %v642
      %v653 = vmul.f32 %v614, %v642
      %v654 = vmul.f32 %v615, %v642
      %v655 = vmul.f32 %v616, %v642
      %v656 = vmul.f32 %v617, %v642
      %v657 = vmul.f32 %v618, %v642
      %v658 = vmul.f32 %v619, %v642
      %v659 = vmul.f32 %v620, %v642
      %v660 = vmul.f32 %v621, %v642
      %v661 = vmul.f32 %v622, %v642
      %v662 = vmul.f32 %v623, %v642
      %v663 = vmul.f32 %v624, %v642
      %v664 = vmul.f32 %v625, %v642
      %v665 = vmul.f32 %v626, %v642
      %v666 = vmul.f32 %v627, %v642
      %v667 = vmul.f32 %v628, %v642
      %v668 = vmul.f32 %v629, %v642
      %v669 = vmul.f32 %v630, %v642
      %v670 = vmul.f32 %v631, %v642
      %v671 = vmul.f32 %v632, %v642
      %v672 = vmul.f32 %v633, %v642
      %v673 = vmul.f32 %v634, %v642
      %v674 = vmul.f32 %v635, %v642
      %v675 = vmul.f32 %v636, %v642
      %v676 = vld [vmem:[%s4] sm:$0x1]
      %v678 = vlaneseq
      %v679 = vshrl.u32 %v678, 7
      %v680 = vsub.s32 0, %v679
      %v681 = vrot.slane %v676, %v680
      %v683 = vadd.f32 %v644, %v681
      %v684 = vadd.f32 %v645, %v681
      %v685 = vadd.f32 %v646, %v681
      %v686 = vadd.f32 %v647, %v681
      %v687 = vadd.f32 %v648, %v681
      %v688 = vadd.f32 %v649, %v681
      %v689 = vadd.f32 %v650, %v681
      %v690 = vadd.f32 %v651, %v681
      %v691 = vadd.f32 %v652, %v681
      %v692 = vadd.f32 %v653, %v681
      %v693 = vadd.f32 %v654, %v681
      %v694 = vadd.f32 %v655, %v681
      %v695 = vadd.f32 %v656, %v681
      %v696 = vadd.f32 %v657, %v681
      %v697 = vadd.f32 %v658, %v681
      %v698 = vadd.f32 %v659, %v681
      %v699 = vadd.f32 %v660, %v681
      %v700 = vadd.f32 %v661, %v681
      %v701 = vadd.f32 %v662, %v681
      %v702 = vadd.f32 %v663, %v681
      %v703 = vadd.f32 %v664, %v681
      %v704 = vadd.f32 %v665, %v681
      %v705 = vadd.f32 %v666, %v681
      %v706 = vadd.f32 %v667, %v681
      %v707 = vadd.f32 %v668, %v681
      %v708 = vadd.f32 %v669, %v681
      %v709 = vadd.f32 %v670, %v681
      %v710 = vadd.f32 %v671, %v681
      %v711 = vadd.f32 %v672, %v681
      %v712 = vadd.f32 %v673, %v681
      %v713 = vadd.f32 %v674, %v681
      %v714 = vadd.f32 %v675, %v681
      %v715 = vadd.f32 %v683, %v447
      %v716 = vadd.f32 %v684, %v452
      %v717 = vadd.f32 %v685, %v457
      %v718 = vadd.f32 %v686, %v462
      %v719 = vadd.f32 %v687, %v467
      %v720 = vadd.f32 %v688, %v472
      %v721 = vadd.f32 %v689, %v477
      %v722 = vadd.f32 %v690, %v482
      %v723 = vadd.f32 %v691, %v487
      %v724 = vadd.f32 %v692, %v492
      %v725 = vadd.f32 %v693, %v497
      %v726 = vadd.f32 %v694, %v502
      %v727 = vadd.f32 %v695, %v507
      %v728 = vadd.f32 %v696, %v512
      %v729 = vadd.f32 %v697, %v517
      %v730 = vadd.f32 %v698, %v522
      %v731 = vadd.f32 %v699, %v527
      %v732 = vadd.f32 %v700, %v532
      %v733 = vadd.f32 %v701, %v537
      %v734 = vadd.f32 %v702, %v542
      %v735 = vadd.f32 %v703, %v547
      %v736 = vadd.f32 %v704, %v552
      %v737 = vadd.f32 %v705, %v557
      %v738 = vadd.f32 %v706, %v562
      %v739 = vadd.f32 %v707, %v567
      %v740 = vadd.f32 %v708, %v572
      %v741 = vadd.f32 %v709, %v577
      %v742 = vadd.f32 %v710, %v582
      %v743 = vadd.f32 %v711, %v587
      %v744 = vadd.f32 %v712, %v592
      %v745 = vadd.f32 %v713, %v597
      %v746 = vadd.f32 %v714, %v602
      %v747 = vmax.f32 %v715, 0.0
      %v748 = vmax.f32 %v716, 0.0
      %v749 = vmax.f32 %v717, 0.0
      %v750 = vmax.f32 %v718, 0.0
      %v751 = vmax.f32 %v719, 0.0
      %v752 = vmax.f32 %v720, 0.0
      %v753 = vmax.f32 %v721, 0.0
      %v754 = vmax.f32 %v722, 0.0
      %v755 = vmax.f32 %v723, 0.0
      %v756 = vmax.f32 %v724, 0.0
      %v757 = vmax.f32 %v725, 0.0
      %v758 = vmax.f32 %v726, 0.0
      %v759 = vmax.f32 %v727, 0.0
      %v760 = vmax.f32 %v728, 0.0
      %v761 = vmax.f32 %v729, 0.0
      %v762 = vmax.f32 %v730, 0.0
      %v763 = vmax.f32 %v731, 0.0
      %v764 = vmax.f32 %v732, 0.0
      %v765 = vmax.f32 %v733, 0.0
      %v766 = vmax.f32 %v734, 0.0
      %v767 = vmax.f32 %v735, 0.0
      %v768 = vmax.f32 %v736, 0.0
      %v769 = vmax.f32 %v737, 0.0
      %v770 = vmax.f32 %v738, 0.0
      %v771 = vmax.f32 %v739, 0.0
      %v772 = vmax.f32 %v740, 0.0
      %v773 = vmax.f32 %v741, 0.0
      %v774 = vmax.f32 %v742, 0.0
      %v775 = vmax.f32 %v743, 0.0
      %v776 = vmax.f32 %v744, 0.0
      %v777 = vmax.f32 %v745, 0.0
      %v778 = vmax.f32 %v746, 0.0
      %779 = vst.msk [vmem:[%s248] sm:$0xff] %vm283, %v747
      %780 = vst.msk [vmem:[%s248 + $0x8] sm:$0xff] %vm283, %v748
      %781 = vst.msk [vmem:[%s248 + $0x10] sm:$0xff] %vm283, %v749
      %782 = vst.msk [vmem:[%s248 + $0x18] sm:$0xff] %vm283, %v750
      %783 = vst.msk [vmem:[%s248 + $0x20] sm:$0xff] %vm283, %v751
      %784 = vst.msk [vmem:[%s248 + $0x28] sm:$0xff] %vm283, %v752
      %785 = vst.msk [vmem:[%s248 + $0x30] sm:$0xff] %vm283, %v753
      %786 = vst.msk [vmem:[%s248 + $0x38] sm:$0xff] %vm283, %v754
      %787 = vst.msk [vmem:[%s248 + $0x40] sm:$0xff] %vm283, %v755
      %788 = vst.msk [vmem:[%s248 + $0x48] sm:$0xff] %vm283, %v756
      %789 = vst.msk [vmem:[%s248 + $0x50] sm:$0xff] %vm283, %v757
      %790 = vst.msk [vmem:[%s248 + $0x58] sm:$0xff] %vm283, %v758
      %791 = vst.msk [vmem:[%s248 + $0x60] sm:$0xff] %vm283, %v759
      %792 = vst.msk [vmem:[%s248 + $0x68] sm:$0xff] %vm283, %v760
      %793 = vst.msk [vmem:[%s248 + $0x70] sm:$0xff] %vm283, %v761
      %794 = vst.msk [vmem:[%s248 + $0x78] sm:$0xff] %vm283, %v762
      %795 = vst.msk [vmem:[%s248 + $0x80] sm:$0xff] %vm283, %v763
      %796 = vst.msk [vmem:[%s248 + $0x88] sm:$0xff] %vm283, %v764
      %797 = vst.msk [vmem:[%s248 + $0x90] sm:$0xff] %vm283, %v765
      %798 = vst.msk [vmem:[%s248 + $0x98] sm:$0xff] %vm283, %v766
      %799 = vst.msk [vmem:[%s248 + $0xa0] sm:$0xff] %vm283, %v767
      %800 = vst.msk [vmem:[%s248 + $0xa8] sm:$0xff] %vm283, %v768
      %801 = vst.msk [vmem:[%s248 + $0xb0] sm:$0xff] %vm283, %v769
      %802 = vst.msk [vmem:[%s248 + $0xb8] sm:$0xff] %vm283, %v770
      %803 = vst.msk [vmem:[%s248 + $0xc0] sm:$0xff] %vm283, %v771
      %804 = vst.msk [vmem:[%s248 + $0xc8] sm:$0xff] %vm283, %v772
      %805 = vst.msk [vmem:[%s248 + $0xd0] sm:$0xff] %vm283, %v773
      %806 = vst.msk [vmem:[%s248 + $0xd8] sm:$0xff] %vm283, %v774
      %807 = vst.msk [vmem:[%s248 + $0xe0] sm:$0xff] %vm283, %v775
      %808 = vst.msk [vmem:[%s248 + $0xe8] sm:$0xff] %vm283, %v776
      %809 = vst.msk [vmem:[%s248 + $0xf0] sm:$0xff] %vm283, %v777
      %810 = vst.msk [vmem:[%s248 + $0xf8] sm:$0xff] %vm283, %v778
      %s811 = smul.u32 32, %s16
      %p812 = scmp.lt.s32.totalorder %s811, 63
      %s813 = scalar_select %p812, %s811, 63
      %s814 = smul.addr %s813, 8
      %s815 = scalar_lea.vmem %s5, %s814
      // Predicated region
      $region41: #{conv_2nV1_forward.23} parent=39 // pred_check
        %p816 = pneg %p149
      $region42: #{conv_2nV1_forward.23} parent=39 // pred_check_branch
        %818 = sbr.rel (%p816) target = $region44
      $region43: #{conv_2nV1_forward.23} parent=39 // pred_region
        %s819 = smul.u32 32, %s16
      $region44: #{conv_2nV1_forward.23} parent=39 // pred_fallthru
        _
    $region40: #{conv_2nV1_forward.23} parent=5 // pred_fallthru
      _
    %p820 = scmp.le.s32.totalorder 2, %s11
    // Predicated region
    $region45: #{conv_2nV1_forward.23} parent=5 // pred_check
      %p821 = pneg %p820
    $region46: #{conv_2nV1_forward.23} parent=5 // pred_check_branch
      %823 = sbr.rel (%p821) target = $region48
    $region47: #{conv_2nV1_forward.23} parent=5 // pred_region
      %s824 = ssub.s32 %s11, 2
      // Predicated region
      $region49: #{conv_2nV1_forward.23} parent=47 // pred_check
        %p825 = pneg %p155
      $region50: #{conv_2nV1_forward.23} parent=47 // pred_check_branch
        %827 = sbr.rel (%p825) target = $region52
      $region51: #{conv_2nV1_forward.23} parent=47 // pred_region
        %s828 = smul.u32 32, %s17
        %p829 = scmp.lt.s32.totalorder %s828, 63
        %s830 = scalar_select %p829, %s828, 63
        %s831 = smul.addr %s830, 8
        %s832 = scalar_lea.vmem %s5, %s831
      $region52: #{conv_2nV1_forward.23} parent=47 // pred_fallthru
        _
    $region48: #{conv_2nV1_forward.23} parent=5 // pred_fallthru
      _
  $region6: #{conv_2nV1_forward.23} parent=0 // loop_footer
    %s15 = sadd.s32 1, %s11
  $region7: #{conv_2nV1_forward.23} parent=0 // loop_footer_branch
    %10 = sbr.rel target = $region3
  $region8: #{conv_2nV1_forward.23} parent=0 // loop_exit
    _

</llo_original>
